<compile_context>
chip_gen: v6e
topology: v6e:2x2x1
jax: 0.10.0
libtpu: 0.0.40
codegen_flags: <defaults>
</compile_context>

<pallas_src>
import functools

import jax
import jax.numpy as jnp
from jax.experimental import pallas as pl
from jax.experimental.pallas import tpu as pltpu


# ---------------------------------------------------------------------------
# LSTM cell (PyTorch gate order: i, f, g, o); weights pre-transposed so the
# kernel does x @ W^T as x @ W_t on the MXU with f32 accumulation.
# ---------------------------------------------------------------------------
def _lstm_step(x, h, c, wih_t, whh_t, b, L):
    gates = (jnp.dot(x, wih_t, preferred_element_type=jnp.float32)
             + jnp.dot(h, whh_t, preferred_element_type=jnp.float32)
             + b)
    i = jax.nn.sigmoid(gates[:, 0 * L:1 * L])
    f = jax.nn.sigmoid(gates[:, 1 * L:2 * L])
    g = jnp.tanh(gates[:, 2 * L:3 * L])
    o = jax.nn.sigmoid(gates[:, 3 * L:4 * L])
    c_new = f * c + i * g
    h_new = o * jnp.tanh(c_new)
    return h_new, c_new


# ---------------------------------------------------------------------------
# Fused kernel: encoder over S timesteps, then S autoregressive decoder steps.
# State lives in values (vregs); the only HBM traffic is the input slab, the
# weights (once) and one lane-dense output block.
# ---------------------------------------------------------------------------
def fused_autoencoder_kernel(x_ref,
                             enc_wih_ref, enc_whh_ref, enc_b_ref,
                             dec_wih_ref, dec_whh_ref, dec_b_ref,
                             dec_wfc_ref, dec_bfc_ref,
                             out_ref, *, S, V, L):
    B = x_ref.shape[0]

    # Weights: one resident copy each (whole-array VMEM blocks).
    enc_wih = enc_wih_ref[...]          # (V, 4L)
    enc_whh = enc_whh_ref[...]          # (L, 4L)
    enc_b = enc_b_ref[...]              # (1, 4L)
    dec_wih = dec_wih_ref[...]
    dec_whh = dec_whh_ref[...]
    dec_b = dec_b_ref[...]
    dec_wfc = dec_wfc_ref[...]          # (L, V)
    dec_bfc = dec_bfc_ref[...]          # (1, V)

    # ---- Encoder: h, c carried as values across the unrolled time loop ----
    h = jnp.zeros((B, L), jnp.float32)
    c = jnp.zeros((B, L), jnp.float32)
    for t in range(S):                  # static unroll; S is small
        x_t = x_ref[:, t * V:(t + 1) * V]          # (B, V) lane sub-slice
        h, c = _lstm_step(x_t, h, c, enc_wih, enc_whh, enc_b, L)

    # ---- Decoder: autoregressive, prediction feeds the next step ----
    x_t = jnp.zeros((B, V), jnp.float32)           # torch.zeros((B, 1, V))
    for t in range(S):
        h, c = _lstm_step(x_t, h, c, dec_wih, dec_whh, dec_b, L)
        pred = jnp.dot(h, dec_wfc,
                       preferred_element_type=jnp.float32) + dec_bfc
        # Fold the time reversal (inv_idx) into the store slot: step t -> S-1-t.
        out_ref[:, (S - 1 - t) * V:(S - t) * V] = pred
        x_t = pred


# ---------------------------------------------------------------------------
# Parameter construction (deterministic, shapes match nn.LSTM / nn.Linear)
# ---------------------------------------------------------------------------
def init_params(key, input_dim, latent_dim):
    V, L = input_dim, latent_dim
    ks = jax.random.split(key, 10)
    u = lambda k, shape, bound: jax.random.uniform(
        k, shape, jnp.float32, minval=-bound, maxval=bound)
    bl = 1.0 / jnp.sqrt(L)
    bv = 1.0 / jnp.sqrt(L)
    return dict(
        enc_wih=u(ks[0], (4 * L, V), bl), enc_whh=u(ks[1], (4 * L, L), bl),
        enc_bih=u(ks[2], (4 * L,), bl),   enc_bhh=u(ks[3], (4 * L,), bl),
        dec_wih=u(ks[4], (4 * L, V), bl), dec_whh=u(ks[5], (4 * L, L), bl),
        dec_bih=u(ks[6], (4 * L,), bl),   dec_bhh=u(ks[7], (4 * L,), bl),
        dec_wfc=u(ks[8], (V, L), bv),     dec_bfc=u(ks[9], (V,), bv),
    )


# ---------------------------------------------------------------------------
# Forward wrapper (matches LSTMAutoEncoder.forward: returns [recon, src])
# ---------------------------------------------------------------------------
def lstm_autoencoder_forward(src, params, latent_dim):
    B, S, V = src.shape
    L = latent_dim
    f32 = jnp.float32

    # Pre-transpose weights; combine the two LSTM biases.
    enc_wih_t = params["enc_wih"].T.astype(f32)                    # (V, 4L)
    enc_whh_t = params["enc_whh"].T.astype(f32)                    # (L, 4L)
    enc_b = (params["enc_bih"] + params["enc_bhh"])[None, :].astype(f32)
    dec_wih_t = params["dec_wih"].T.astype(f32)
    dec_whh_t = params["dec_whh"].T.astype(f32)
    dec_b = (params["dec_bih"] + params["dec_bhh"])[None, :].astype(f32)
    dec_wfc_t = params["dec_wfc"].T.astype(f32)                    # (L, V)
    dec_bfc = params["dec_bfc"][None, :].astype(f32)               # (1, V)

    # Lane-dense input: (B, S*V) is a free contiguous view of batch-first src.
    src_flat = src.astype(f32).reshape(B, S * V)

    out_flat = pl.pallas_call(
        functools.partial(fused_autoencoder_kernel, S=S, V=V, L=L),
        out_shape=jax.ShapeDtypeStruct((B, S * V), f32),
    )(src_flat, enc_wih_t, enc_whh_t, enc_b,
      dec_wih_t, dec_whh_t, dec_b, dec_wfc_t, dec_bfc)

    # Free contiguous reshape back to (B, S, V); reversal already folded in.
    reconstruct_output = out_flat.reshape(B, S, V)
    return [reconstruct_output, src]


# ---------------------------------------------------------------------------
# Pure-JAX reference (for verification)
# ---------------------------------------------------------------------------
def reference_forward(src, p, latent_dim):
    B, S, V = src.shape
    L = latent_dim

    def cell(x, h, c, wih, whh, bih, bhh):
        g = x @ wih.T + h @ whh.T + bih + bhh
        i = jax.nn.sigmoid(g[:, :L])
        f = jax.nn.sigmoid(g[:, L:2 * L])
        gg = jnp.tanh(g[:, 2 * L:3 * L])
        o = jax.nn.sigmoid(g[:, 3 * L:])
        c = f * c + i * gg
        return o * jnp.tanh(c), c

    h = jnp.zeros((B, L), jnp.float32)
    c = jnp.zeros((B, L), jnp.float32)
    for t in range(S):
        h, c = cell(src[:, t], h, c, p["enc_wih"], p["enc_whh"],
                    p["enc_bih"], p["enc_bhh"])
    x = jnp.zeros((B, V), jnp.float32)
    outs = []
    for t in range(S):
        h, c = cell(x, h, c, p["dec_wih"], p["dec_whh"],
                    p["dec_bih"], p["dec_bhh"])
        x = h @ p["dec_wfc"].T + p["dec_bfc"]
        outs.append(x)
    out = jnp.stack(outs, axis=1)[:, ::-1, :]
    return out


if __name__ == "__main__":
    B, S, V, L = 2, 8, 16, 32   # batch, seq, input_dim, latent_dim

    key = jax.random.PRNGKey(0)
    k_src, k_par = jax.random.split(key)
    src = jax.random.normal(k_src, (B, S, V), jnp.float32)
    params = init_params(k_par, input_dim=V, latent_dim=L)

    recon, src_out = lstm_autoencoder_forward(src, params, latent_dim=L)
    recon = jax.block_until_ready(recon)

    ref = reference_forward(src, params, latent_dim=L)
    assert recon.shape == (B, S, V) and src_out.shape == (B, S, V)
    assert jnp.allclose(recon, ref, atol=1e-4, rtol=1e-4), (
        float(jnp.max(jnp.abs(recon - ref))))
    assert jnp.allclose(src_out, src)

    print("KERNEL_OK")
</pallas_src>

<mosaic_0001>
module attributes {stable_mosaic.version = 11 : i64} {
  func.func @fused_autoencoder_kernel(%arg0: memref<2x128xf32, #tpu.memory_space<vmem>>, %arg1: memref<16x128xf32, #tpu.memory_space<vmem>>, %arg2: memref<32x128xf32, #tpu.memory_space<vmem>>, %arg3: memref<1x128xf32, #tpu.memory_space<vmem>>, %arg4: memref<16x128xf32, #tpu.memory_space<vmem>>, %arg5: memref<32x128xf32, #tpu.memory_space<vmem>>, %arg6: memref<1x128xf32, #tpu.memory_space<vmem>>, %arg7: memref<32x16xf32, #tpu.memory_space<vmem>>, %arg8: memref<1x16xf32, #tpu.memory_space<vmem>>, %arg9: memref<2x128xf32, #tpu.memory_space<vmem>>) attributes {dimension_semantics = [], scalar_prefetch = 0 : i64, scratch_operands = 0 : i64, tpu.core_type = #tpu.core_type<tc>} {
    %c0 = arith.constant 0 : index
    %c0_0 = arith.constant 0 : index
    %0 = vector.load %arg1[%c0, %c0_0] : memref<16x128xf32, #tpu.memory_space<vmem>>, vector<16x128xf32>
    %c0_1 = arith.constant 0 : index
    %c0_2 = arith.constant 0 : index
    %1 = vector.load %arg2[%c0_1, %c0_2] : memref<32x128xf32, #tpu.memory_space<vmem>>, vector<32x128xf32>
    %c0_3 = arith.constant 0 : index
    %c0_4 = arith.constant 0 : index
    %2 = vector.load %arg3[%c0_3, %c0_4] : memref<1x128xf32, #tpu.memory_space<vmem>>, vector<1x128xf32>
    %c0_5 = arith.constant 0 : index
    %c0_6 = arith.constant 0 : index
    %3 = vector.load %arg4[%c0_5, %c0_6] : memref<16x128xf32, #tpu.memory_space<vmem>>, vector<16x128xf32>
    %c0_7 = arith.constant 0 : index
    %c0_8 = arith.constant 0 : index
    %4 = vector.load %arg5[%c0_7, %c0_8] : memref<32x128xf32, #tpu.memory_space<vmem>>, vector<32x128xf32>
    %c0_9 = arith.constant 0 : index
    %c0_10 = arith.constant 0 : index
    %5 = vector.load %arg6[%c0_9, %c0_10] : memref<1x128xf32, #tpu.memory_space<vmem>>, vector<1x128xf32>
    %c0_11 = arith.constant 0 : index
    %c0_12 = arith.constant 0 : index
    %6 = vector.load %arg7[%c0_11, %c0_12] : memref<32x16xf32, #tpu.memory_space<vmem>>, vector<32x16xf32>
    %c0_13 = arith.constant 0 : index
    %c0_14 = arith.constant 0 : index
    %7 = vector.load %arg8[%c0_13, %c0_14] : memref<1x16xf32, #tpu.memory_space<vmem>>, vector<1x16xf32>
    %cst = arith.constant 0.000000e+00 : f32
    %8 = vector.broadcast %cst : f32 to vector<2x32xf32>
    %cst_15 = arith.constant 0.000000e+00 : f32
    %9 = vector.broadcast %cst_15 : f32 to vector<2x32xf32>
    %c0_16 = arith.constant 0 : index
    %c0_17 = arith.constant 0 : index
    %10 = vector.load %arg0[%c0_16, %c0_17] : memref<2x128xf32, #tpu.memory_space<vmem>>, vector<2x16xf32>
    %cst_18 = arith.constant dense<0.000000e+00> : vector<2x128xf32>
    %11 = tpu.matmul %10, %0, %cst_18 {dimension_numbers = #tpu.dot_dimension_numbers<[1], [0], [0], [1], [0, 0, 1, 1], [], []>} : vector<2x16xf32>, vector<16x128xf32>, vector<2x128xf32> -> vector<2x128xf32>
    %cst_19 = arith.constant dense<0.000000e+00> : vector<2x128xf32>
    %12 = tpu.matmul %8, %1, %cst_19 {dimension_numbers = #tpu.dot_dimension_numbers<[1], [0], [0], [1], [0, 0, 1, 1], [], []>} : vector<2x32xf32>, vector<32x128xf32>, vector<2x128xf32> -> vector<2x128xf32>
    %13 = arith.addf %11, %12 : vector<2x128xf32>
    %14 = vector.broadcast %2 : vector<1x128xf32> to vector<2x128xf32>
    %15 = arith.addf %13, %14 : vector<2x128xf32>
    %16 = vector.extract_strided_slice %15 {offsets = [0, 0], sizes = [2, 32], strides = [1, 1]} : vector<2x128xf32> to vector<2x32xf32>
    %17 = arith.negf %16 : vector<2x32xf32>
    %18 = math.exp %17 : vector<2x32xf32>
    %cst_20 = arith.constant 1.000000e+00 : f32
    %19 = vector.broadcast %cst_20 : f32 to vector<2x32xf32>
    %20 = arith.addf %19, %18 : vector<2x32xf32>
    %21 = arith.divf %19, %20 : vector<2x32xf32>
    %22 = vector.extract_strided_slice %15 {offsets = [0, 32], sizes = [2, 32], strides = [1, 1]} : vector<2x128xf32> to vector<2x32xf32>
    %23 = arith.negf %22 : vector<2x32xf32>
    %24 = math.exp %23 : vector<2x32xf32>
    %cst_21 = arith.constant 1.000000e+00 : f32
    %25 = vector.broadcast %cst_21 : f32 to vector<2x32xf32>
    %26 = arith.addf %25, %24 : vector<2x32xf32>
    %27 = arith.divf %25, %26 : vector<2x32xf32>
    %28 = vector.extract_strided_slice %15 {offsets = [0, 64], sizes = [2, 32], strides = [1, 1]} : vector<2x128xf32> to vector<2x32xf32>
    %29 = math.tanh %28 : vector<2x32xf32>
    %30 = vector.extract_strided_slice %15 {offsets = [0, 96], sizes = [2, 32], strides = [1, 1]} : vector<2x128xf32> to vector<2x32xf32>
    %31 = arith.negf %30 : vector<2x32xf32>
    %32 = math.exp %31 : vector<2x32xf32>
    %cst_22 = arith.constant 1.000000e+00 : f32
    %33 = vector.broadcast %cst_22 : f32 to vector<2x32xf32>
    %34 = arith.addf %33, %32 : vector<2x32xf32>
    %35 = arith.divf %33, %34 : vector<2x32xf32>
    %36 = arith.mulf %27, %9 : vector<2x32xf32>
    %37 = arith.mulf %21, %29 : vector<2x32xf32>
    %38 = arith.addf %36, %37 : vector<2x32xf32>
    %39 = math.tanh %38 : vector<2x32xf32>
    %40 = arith.mulf %35, %39 : vector<2x32xf32>
    %c0_23 = arith.constant 0 : index
    %c16 = arith.constant 16 : index
    %41 = vector.load %arg0[%c0_23, %c16] : memref<2x128xf32, #tpu.memory_space<vmem>>, vector<2x16xf32>
    %cst_24 = arith.constant dense<0.000000e+00> : vector<2x128xf32>
    %42 = tpu.matmul %41, %0, %cst_24 {dimension_numbers = #tpu.dot_dimension_numbers<[1], [0], [0], [1], [0, 0, 1, 1], [], []>} : vector<2x16xf32>, vector<16x128xf32>, vector<2x128xf32> -> vector<2x128xf32>
    %cst_25 = arith.constant dense<0.000000e+00> : vector<2x128xf32>
    %43 = tpu.matmul %40, %1, %cst_25 {dimension_numbers = #tpu.dot_dimension_numbers<[1], [0], [0], [1], [0, 0, 1, 1], [], []>} : vector<2x32xf32>, vector<32x128xf32>, vector<2x128xf32> -> vector<2x128xf32>
    %44 = arith.addf %42, %43 : vector<2x128xf32>
    %45 = vector.broadcast %2 : vector<1x128xf32> to vector<2x128xf32>
    %46 = arith.addf %44, %45 : vector<2x128xf32>
    %47 = vector.extract_strided_slice %46 {offsets = [0, 0], sizes = [2, 32], strides = [1, 1]} : vector<2x128xf32> to vector<2x32xf32>
    %48 = arith.negf %47 : vector<2x32xf32>
    %49 = math.exp %48 : vector<2x32xf32>
    %cst_26 = arith.constant 1.000000e+00 : f32
    %50 = vector.broadcast %cst_26 : f32 to vector<2x32xf32>
    %51 = arith.addf %50, %49 : vector<2x32xf32>
    %52 = arith.divf %50, %51 : vector<2x32xf32>
    %53 = vector.extract_strided_slice %46 {offsets = [0, 32], sizes = [2, 32], strides = [1, 1]} : vector<2x128xf32> to vector<2x32xf32>
    %54 = arith.negf %53 : vector<2x32xf32>
    %55 = math.exp %54 : vector<2x32xf32>
    %cst_27 = arith.constant 1.000000e+00 : f32
    %56 = vector.broadcast %cst_27 : f32 to vector<2x32xf32>
    %57 = arith.addf %56, %55 : vector<2x32xf32>
    %58 = arith.divf %56, %57 : vector<2x32xf32>
    %59 = vector.extract_strided_slice %46 {offsets = [0, 64], sizes = [2, 32], strides = [1, 1]} : vector<2x128xf32> to vector<2x32xf32>
    %60 = math.tanh %59 : vector<2x32xf32>
    %61 = vector.extract_strided_slice %46 {offsets = [0, 96], sizes = [2, 32], strides = [1, 1]} : vector<2x128xf32> to vector<2x32xf32>
    %62 = arith.negf %61 : vector<2x32xf32>
    %63 = math.exp %62 : vector<2x32xf32>
    %cst_28 = arith.constant 1.000000e+00 : f32
    %64 = vector.broadcast %cst_28 : f32 to vector<2x32xf32>
    %65 = arith.addf %64, %63 : vector<2x32xf32>
    %66 = arith.divf %64, %65 : vector<2x32xf32>
    %67 = arith.mulf %58, %38 : vector<2x32xf32>
    %68 = arith.mulf %52, %60 : vector<2x32xf32>
    %69 = arith.addf %67, %68 : vector<2x32xf32>
    %70 = math.tanh %69 : vector<2x32xf32>
    %71 = arith.mulf %66, %70 : vector<2x32xf32>
    %c0_29 = arith.constant 0 : index
    %c32 = arith.constant 32 : index
    %72 = vector.load %arg0[%c0_29, %c32] : memref<2x128xf32, #tpu.memory_space<vmem>>, vector<2x16xf32>
    %cst_30 = arith.constant dense<0.000000e+00> : vector<2x128xf32>
    %73 = tpu.matmul %72, %0, %cst_30 {dimension_numbers = #tpu.dot_dimension_numbers<[1], [0], [0], [1], [0, 0, 1, 1], [], []>} : vector<2x16xf32>, vector<16x128xf32>, vector<2x128xf32> -> vector<2x128xf32>
    %cst_31 = arith.constant dense<0.000000e+00> : vector<2x128xf32>
    %74 = tpu.matmul %71, %1, %cst_31 {dimension_numbers = #tpu.dot_dimension_numbers<[1], [0], [0], [1], [0, 0, 1, 1], [], []>} : vector<2x32xf32>, vector<32x128xf32>, vector<2x128xf32> -> vector<2x128xf32>
    %75 = arith.addf %73, %74 : vector<2x128xf32>
    %76 = vector.broadcast %2 : vector<1x128xf32> to vector<2x128xf32>
    %77 = arith.addf %75, %76 : vector<2x128xf32>
    %78 = vector.extract_strided_slice %77 {offsets = [0, 0], sizes = [2, 32], strides = [1, 1]} : vector<2x128xf32> to vector<2x32xf32>
    %79 = arith.negf %78 : vector<2x32xf32>
    %80 = math.exp %79 : vector<2x32xf32>
    %cst_32 = arith.constant 1.000000e+00 : f32
    %81 = vector.broadcast %cst_32 : f32 to vector<2x32xf32>
    %82 = arith.addf %81, %80 : vector<2x32xf32>
    %83 = arith.divf %81, %82 : vector<2x32xf32>
    %84 = vector.extract_strided_slice %77 {offsets = [0, 32], sizes = [2, 32], strides = [1, 1]} : vector<2x128xf32> to vector<2x32xf32>
    %85 = arith.negf %84 : vector<2x32xf32>
    %86 = math.exp %85 : vector<2x32xf32>
    %cst_33 = arith.constant 1.000000e+00 : f32
    %87 = vector.broadcast %cst_33 : f32 to vector<2x32xf32>
    %88 = arith.addf %87, %86 : vector<2x32xf32>
    %89 = arith.divf %87, %88 : vector<2x32xf32>
    %90 = vector.extract_strided_slice %77 {offsets = [0, 64], sizes = [2, 32], strides = [1, 1]} : vector<2x128xf32> to vector<2x32xf32>
    %91 = math.tanh %90 : vector<2x32xf32>
    %92 = vector.extract_strided_slice %77 {offsets = [0, 96], sizes = [2, 32], strides = [1, 1]} : vector<2x128xf32> to vector<2x32xf32>
    %93 = arith.negf %92 : vector<2x32xf32>
    %94 = math.exp %93 : vector<2x32xf32>
    %cst_34 = arith.constant 1.000000e+00 : f32
    %95 = vector.broadcast %cst_34 : f32 to vector<2x32xf32>
    %96 = arith.addf %95, %94 : vector<2x32xf32>
    %97 = arith.divf %95, %96 : vector<2x32xf32>
    %98 = arith.mulf %89, %69 : vector<2x32xf32>
    %99 = arith.mulf %83, %91 : vector<2x32xf32>
    %100 = arith.addf %98, %99 : vector<2x32xf32>
    %101 = math.tanh %100 : vector<2x32xf32>
    %102 = arith.mulf %97, %101 : vector<2x32xf32>
    %c0_35 = arith.constant 0 : index
    %c48 = arith.constant 48 : index
    %103 = vector.load %arg0[%c0_35, %c48] : memref<2x128xf32, #tpu.memory_space<vmem>>, vector<2x16xf32>
    %cst_36 = arith.constant dense<0.000000e+00> : vector<2x128xf32>
    %104 = tpu.matmul %103, %0, %cst_36 {dimension_numbers = #tpu.dot_dimension_numbers<[1], [0], [0], [1], [0, 0, 1, 1], [], []>} : vector<2x16xf32>, vector<16x128xf32>, vector<2x128xf32> -> vector<2x128xf32>
    %cst_37 = arith.constant dense<0.000000e+00> : vector<2x128xf32>
    %105 = tpu.matmul %102, %1, %cst_37 {dimension_numbers = #tpu.dot_dimension_numbers<[1], [0], [0], [1], [0, 0, 1, 1], [], []>} : vector<2x32xf32>, vector<32x128xf32>, vector<2x128xf32> -> vector<2x128xf32>
    %106 = arith.addf %104, %105 : vector<2x128xf32>
    %107 = vector.broadcast %2 : vector<1x128xf32> to vector<2x128xf32>
    %108 = arith.addf %106, %107 : vector<2x128xf32>
    %109 = vector.extract_strided_slice %108 {offsets = [0, 0], sizes = [2, 32], strides = [1, 1]} : vector<2x128xf32> to vector<2x32xf32>
    %110 = arith.negf %109 : vector<2x32xf32>
    %111 = math.exp %110 : vector<2x32xf32>
    %cst_38 = arith.constant 1.000000e+00 : f32
    %112 = vector.broadcast %cst_38 : f32 to vector<2x32xf32>
    %113 = arith.addf %112, %111 : vector<2x32xf32>
    %114 = arith.divf %112, %113 : vector<2x32xf32>
    %115 = vector.extract_strided_slice %108 {offsets = [0, 32], sizes = [2, 32], strides = [1, 1]} : vector<2x128xf32> to vector<2x32xf32>
    %116 = arith.negf %115 : vector<2x32xf32>
    %117 = math.exp %116 : vector<2x32xf32>
    %cst_39 = arith.constant 1.000000e+00 : f32
    %118 = vector.broadcast %cst_39 : f32 to vector<2x32xf32>
    %119 = arith.addf %118, %117 : vector<2x32xf32>
    %120 = arith.divf %118, %119 : vector<2x32xf32>
    %121 = vector.extract_strided_slice %108 {offsets = [0, 64], sizes = [2, 32], strides = [1, 1]} : vector<2x128xf32> to vector<2x32xf32>
    %122 = math.tanh %121 : vector<2x32xf32>
    %123 = vector.extract_strided_slice %108 {offsets = [0, 96], sizes = [2, 32], strides = [1, 1]} : vector<2x128xf32> to vector<2x32xf32>
    %124 = arith.negf %123 : vector<2x32xf32>
    %125 = math.exp %124 : vector<2x32xf32>
    %cst_40 = arith.constant 1.000000e+00 : f32
    %126 = vector.broadcast %cst_40 : f32 to vector<2x32xf32>
    %127 = arith.addf %126, %125 : vector<2x32xf32>
    %128 = arith.divf %126, %127 : vector<2x32xf32>
    %129 = arith.mulf %120, %100 : vector<2x32xf32>
    %130 = arith.mulf %114, %122 : vector<2x32xf32>
    %131 = arith.addf %129, %130 : vector<2x32xf32>
    %132 = math.tanh %131 : vector<2x32xf32>
    %133 = arith.mulf %128, %132 : vector<2x32xf32>
    %c0_41 = arith.constant 0 : index
    %c64 = arith.constant 64 : index
    %134 = vector.load %arg0[%c0_41, %c64] : memref<2x128xf32, #tpu.memory_space<vmem>>, vector<2x16xf32>
    %cst_42 = arith.constant dense<0.000000e+00> : vector<2x128xf32>
    %135 = tpu.matmul %134, %0, %cst_42 {dimension_numbers = #tpu.dot_dimension_numbers<[1], [0], [0], [1], [0, 0, 1, 1], [], []>} : vector<2x16xf32>, vector<16x128xf32>, vector<2x128xf32> -> vector<2x128xf32>
    %cst_43 = arith.constant dense<0.000000e+00> : vector<2x128xf32>
    %136 = tpu.matmul %133, %1, %cst_43 {dimension_numbers = #tpu.dot_dimension_numbers<[1], [0], [0], [1], [0, 0, 1, 1], [], []>} : vector<2x32xf32>, vector<32x128xf32>, vector<2x128xf32> -> vector<2x128xf32>
    %137 = arith.addf %135, %136 : vector<2x128xf32>
    %138 = vector.broadcast %2 : vector<1x128xf32> to vector<2x128xf32>
    %139 = arith.addf %137, %138 : vector<2x128xf32>
    %140 = vector.extract_strided_slice %139 {offsets = [0, 0], sizes = [2, 32], strides = [1, 1]} : vector<2x128xf32> to vector<2x32xf32>
    %141 = arith.negf %140 : vector<2x32xf32>
    %142 = math.exp %141 : vector<2x32xf32>
    %cst_44 = arith.constant 1.000000e+00 : f32
    %143 = vector.broadcast %cst_44 : f32 to vector<2x32xf32>
    %144 = arith.addf %143, %142 : vector<2x32xf32>
    %145 = arith.divf %143, %144 : vector<2x32xf32>
    %146 = vector.extract_strided_slice %139 {offsets = [0, 32], sizes = [2, 32], strides = [1, 1]} : vector<2x128xf32> to vector<2x32xf32>
    %147 = arith.negf %146 : vector<2x32xf32>
    %148 = math.exp %147 : vector<2x32xf32>
    %cst_45 = arith.constant 1.000000e+00 : f32
    %149 = vector.broadcast %cst_45 : f32 to vector<2x32xf32>
    %150 = arith.addf %149, %148 : vector<2x32xf32>
    %151 = arith.divf %149, %150 : vector<2x32xf32>
    %152 = vector.extract_strided_slice %139 {offsets = [0, 64], sizes = [2, 32], strides = [1, 1]} : vector<2x128xf32> to vector<2x32xf32>
    %153 = math.tanh %152 : vector<2x32xf32>
    %154 = vector.extract_strided_slice %139 {offsets = [0, 96], sizes = [2, 32], strides = [1, 1]} : vector<2x128xf32> to vector<2x32xf32>
    %155 = arith.negf %154 : vector<2x32xf32>
    %156 = math.exp %155 : vector<2x32xf32>
    %cst_46 = arith.constant 1.000000e+00 : f32
    %157 = vector.broadcast %cst_46 : f32 to vector<2x32xf32>
    %158 = arith.addf %157, %156 : vector<2x32xf32>
    %159 = arith.divf %157, %158 : vector<2x32xf32>
    %160 = arith.mulf %151, %131 : vector<2x32xf32>
    %161 = arith.mulf %145, %153 : vector<2x32xf32>
    %162 = arith.addf %160, %161 : vector<2x32xf32>
    %163 = math.tanh %162 : vector<2x32xf32>
    %164 = arith.mulf %159, %163 : vector<2x32xf32>
    %c0_47 = arith.constant 0 : index
    %c80 = arith.constant 80 : index
    %165 = vector.load %arg0[%c0_47, %c80] : memref<2x128xf32, #tpu.memory_space<vmem>>, vector<2x16xf32>
    %cst_48 = arith.constant dense<0.000000e+00> : vector<2x128xf32>
    %166 = tpu.matmul %165, %0, %cst_48 {dimension_numbers = #tpu.dot_dimension_numbers<[1], [0], [0], [1], [0, 0, 1, 1], [], []>} : vector<2x16xf32>, vector<16x128xf32>, vector<2x128xf32> -> vector<2x128xf32>
    %cst_49 = arith.constant dense<0.000000e+00> : vector<2x128xf32>
    %167 = tpu.matmul %164, %1, %cst_49 {dimension_numbers = #tpu.dot_dimension_numbers<[1], [0], [0], [1], [0, 0, 1, 1], [], []>} : vector<2x32xf32>, vector<32x128xf32>, vector<2x128xf32> -> vector<2x128xf32>
    %168 = arith.addf %166, %167 : vector<2x128xf32>
    %169 = vector.broadcast %2 : vector<1x128xf32> to vector<2x128xf32>
    %170 = arith.addf %168, %169 : vector<2x128xf32>
    %171 = vector.extract_strided_slice %170 {offsets = [0, 0], sizes = [2, 32], strides = [1, 1]} : vector<2x128xf32> to vector<2x32xf32>
    %172 = arith.negf %171 : vector<2x32xf32>
    %173 = math.exp %172 : vector<2x32xf32>
    %cst_50 = arith.constant 1.000000e+00 : f32
    %174 = vector.broadcast %cst_50 : f32 to vector<2x32xf32>
    %175 = arith.addf %174, %173 : vector<2x32xf32>
    %176 = arith.divf %174, %175 : vector<2x32xf32>
    %177 = vector.extract_strided_slice %170 {offsets = [0, 32], sizes = [2, 32], strides = [1, 1]} : vector<2x128xf32> to vector<2x32xf32>
    %178 = arith.negf %177 : vector<2x32xf32>
    %179 = math.exp %178 : vector<2x32xf32>
    %cst_51 = arith.constant 1.000000e+00 : f32
    %180 = vector.broadcast %cst_51 : f32 to vector<2x32xf32>
    %181 = arith.addf %180, %179 : vector<2x32xf32>
    %182 = arith.divf %180, %181 : vector<2x32xf32>
    %183 = vector.extract_strided_slice %170 {offsets = [0, 64], sizes = [2, 32], strides = [1, 1]} : vector<2x128xf32> to vector<2x32xf32>
    %184 = math.tanh %183 : vector<2x32xf32>
    %185 = vector.extract_strided_slice %170 {offsets = [0, 96], sizes = [2, 32], strides = [1, 1]} : vector<2x128xf32> to vector<2x32xf32>
    %186 = arith.negf %185 : vector<2x32xf32>
    %187 = math.exp %186 : vector<2x32xf32>
    %cst_52 = arith.constant 1.000000e+00 : f32
    %188 = vector.broadcast %cst_52 : f32 to vector<2x32xf32>
    %189 = arith.addf %188, %187 : vector<2x32xf32>
    %190 = arith.divf %188, %189 : vector<2x32xf32>
    %191 = arith.mulf %182, %162 : vector<2x32xf32>
    %192 = arith.mulf %176, %184 : vector<2x32xf32>
    %193 = arith.addf %191, %192 : vector<2x32xf32>
    %194 = math.tanh %193 : vector<2x32xf32>
    %195 = arith.mulf %190, %194 : vector<2x32xf32>
    %c0_53 = arith.constant 0 : index
    %c96 = arith.constant 96 : index
    %196 = vector.load %arg0[%c0_53, %c96] : memref<2x128xf32, #tpu.memory_space<vmem>>, vector<2x16xf32>
    %cst_54 = arith.constant dense<0.000000e+00> : vector<2x128xf32>
    %197 = tpu.matmul %196, %0, %cst_54 {dimension_numbers = #tpu.dot_dimension_numbers<[1], [0], [0], [1], [0, 0, 1, 1], [], []>} : vector<2x16xf32>, vector<16x128xf32>, vector<2x128xf32> -> vector<2x128xf32>
    %cst_55 = arith.constant dense<0.000000e+00> : vector<2x128xf32>
    %198 = tpu.matmul %195, %1, %cst_55 {dimension_numbers = #tpu.dot_dimension_numbers<[1], [0], [0], [1], [0, 0, 1, 1], [], []>} : vector<2x32xf32>, vector<32x128xf32>, vector<2x128xf32> -> vector<2x128xf32>
    %199 = arith.addf %197, %198 : vector<2x128xf32>
    %200 = vector.broadcast %2 : vector<1x128xf32> to vector<2x128xf32>
    %201 = arith.addf %199, %200 : vector<2x128xf32>
    %202 = vector.extract_strided_slice %201 {offsets = [0, 0], sizes = [2, 32], strides = [1, 1]} : vector<2x128xf32> to vector<2x32xf32>
    %203 = arith.negf %202 : vector<2x32xf32>
    %204 = math.exp %203 : vector<2x32xf32>
    %cst_56 = arith.constant 1.000000e+00 : f32
    %205 = vector.broadcast %cst_56 : f32 to vector<2x32xf32>
    %206 = arith.addf %205, %204 : vector<2x32xf32>
    %207 = arith.divf %205, %206 : vector<2x32xf32>
    %208 = vector.extract_strided_slice %201 {offsets = [0, 32], sizes = [2, 32], strides = [1, 1]} : vector<2x128xf32> to vector<2x32xf32>
    %209 = arith.negf %208 : vector<2x32xf32>
    %210 = math.exp %209 : vector<2x32xf32>
    %cst_57 = arith.constant 1.000000e+00 : f32
    %211 = vector.broadcast %cst_57 : f32 to vector<2x32xf32>
    %212 = arith.addf %211, %210 : vector<2x32xf32>
    %213 = arith.divf %211, %212 : vector<2x32xf32>
    %214 = vector.extract_strided_slice %201 {offsets = [0, 64], sizes = [2, 32], strides = [1, 1]} : vector<2x128xf32> to vector<2x32xf32>
    %215 = math.tanh %214 : vector<2x32xf32>
    %216 = vector.extract_strided_slice %201 {offsets = [0, 96], sizes = [2, 32], strides = [1, 1]} : vector<2x128xf32> to vector<2x32xf32>
    %217 = arith.negf %216 : vector<2x32xf32>
    %218 = math.exp %217 : vector<2x32xf32>
    %cst_58 = arith.constant 1.000000e+00 : f32
    %219 = vector.broadcast %cst_58 : f32 to vector<2x32xf32>
    %220 = arith.addf %219, %218 : vector<2x32xf32>
    %221 = arith.divf %219, %220 : vector<2x32xf32>
    %222 = arith.mulf %213, %193 : vector<2x32xf32>
    %223 = arith.mulf %207, %215 : vector<2x32xf32>
    %224 = arith.addf %222, %223 : vector<2x32xf32>
    %225 = math.tanh %224 : vector<2x32xf32>
    %226 = arith.mulf %221, %225 : vector<2x32xf32>
    %c0_59 = arith.constant 0 : index
    %c112 = arith.constant 112 : index
    %227 = vector.load %arg0[%c0_59, %c112] : memref<2x128xf32, #tpu.memory_space<vmem>>, vector<2x16xf32>
    %cst_60 = arith.constant dense<0.000000e+00> : vector<2x128xf32>
    %228 = tpu.matmul %227, %0, %cst_60 {dimension_numbers = #tpu.dot_dimension_numbers<[1], [0], [0], [1], [0, 0, 1, 1], [], []>} : vector<2x16xf32>, vector<16x128xf32>, vector<2x128xf32> -> vector<2x128xf32>
    %cst_61 = arith.constant dense<0.000000e+00> : vector<2x128xf32>
    %229 = tpu.matmul %226, %1, %cst_61 {dimension_numbers = #tpu.dot_dimension_numbers<[1], [0], [0], [1], [0, 0, 1, 1], [], []>} : vector<2x32xf32>, vector<32x128xf32>, vector<2x128xf32> -> vector<2x128xf32>
    %230 = arith.addf %228, %229 : vector<2x128xf32>
    %231 = vector.broadcast %2 : vector<1x128xf32> to vector<2x128xf32>
    %232 = arith.addf %230, %231 : vector<2x128xf32>
    %233 = vector.extract_strided_slice %232 {offsets = [0, 0], sizes = [2, 32], strides = [1, 1]} : vector<2x128xf32> to vector<2x32xf32>
    %234 = arith.negf %233 : vector<2x32xf32>
    %235 = math.exp %234 : vector<2x32xf32>
    %cst_62 = arith.constant 1.000000e+00 : f32
    %236 = vector.broadcast %cst_62 : f32 to vector<2x32xf32>
    %237 = arith.addf %236, %235 : vector<2x32xf32>
    %238 = arith.divf %236, %237 : vector<2x32xf32>
    %239 = vector.extract_strided_slice %232 {offsets = [0, 32], sizes = [2, 32], strides = [1, 1]} : vector<2x128xf32> to vector<2x32xf32>
    %240 = arith.negf %239 : vector<2x32xf32>
    %241 = math.exp %240 : vector<2x32xf32>
    %cst_63 = arith.constant 1.000000e+00 : f32
    %242 = vector.broadcast %cst_63 : f32 to vector<2x32xf32>
    %243 = arith.addf %242, %241 : vector<2x32xf32>
    %244 = arith.divf %242, %243 : vector<2x32xf32>
    %245 = vector.extract_strided_slice %232 {offsets = [0, 64], sizes = [2, 32], strides = [1, 1]} : vector<2x128xf32> to vector<2x32xf32>
    %246 = math.tanh %245 : vector<2x32xf32>
    %247 = vector.extract_strided_slice %232 {offsets = [0, 96], sizes = [2, 32], strides = [1, 1]} : vector<2x128xf32> to vector<2x32xf32>
    %248 = arith.negf %247 : vector<2x32xf32>
    %249 = math.exp %248 : vector<2x32xf32>
    %cst_64 = arith.constant 1.000000e+00 : f32
    %250 = vector.broadcast %cst_64 : f32 to vector<2x32xf32>
    %251 = arith.addf %250, %249 : vector<2x32xf32>
    %252 = arith.divf %250, %251 : vector<2x32xf32>
    %253 = arith.mulf %244, %224 : vector<2x32xf32>
    %254 = arith.mulf %238, %246 : vector<2x32xf32>
    %255 = arith.addf %253, %254 : vector<2x32xf32>
    %256 = math.tanh %255 : vector<2x32xf32>
    %257 = arith.mulf %252, %256 : vector<2x32xf32>
    %cst_65 = arith.constant 0.000000e+00 : f32
    %258 = vector.broadcast %cst_65 : f32 to vector<2x16xf32>
    %cst_66 = arith.constant dense<0.000000e+00> : vector<2x128xf32>
    %259 = tpu.matmul %258, %3, %cst_66 {dimension_numbers = #tpu.dot_dimension_numbers<[1], [0], [0], [1], [0, 0, 1, 1], [], []>} : vector<2x16xf32>, vector<16x128xf32>, vector<2x128xf32> -> vector<2x128xf32>
    %cst_67 = arith.constant dense<0.000000e+00> : vector<2x128xf32>
    %260 = tpu.matmul %257, %4, %cst_67 {dimension_numbers = #tpu.dot_dimension_numbers<[1], [0], [0], [1], [0, 0, 1, 1], [], []>} : vector<2x32xf32>, vector<32x128xf32>, vector<2x128xf32> -> vector<2x128xf32>
    %261 = arith.addf %259, %260 : vector<2x128xf32>
    %262 = vector.broadcast %5 : vector<1x128xf32> to vector<2x128xf32>
    %263 = arith.addf %261, %262 : vector<2x128xf32>
    %264 = vector.extract_strided_slice %263 {offsets = [0, 0], sizes = [2, 32], strides = [1, 1]} : vector<2x128xf32> to vector<2x32xf32>
    %265 = arith.negf %264 : vector<2x32xf32>
    %266 = math.exp %265 : vector<2x32xf32>
    %cst_68 = arith.constant 1.000000e+00 : f32
    %267 = vector.broadcast %cst_68 : f32 to vector<2x32xf32>
    %268 = arith.addf %267, %266 : vector<2x32xf32>
    %269 = arith.divf %267, %268 : vector<2x32xf32>
    %270 = vector.extract_strided_slice %263 {offsets = [0, 32], sizes = [2, 32], strides = [1, 1]} : vector<2x128xf32> to vector<2x32xf32>
    %271 = arith.negf %270 : vector<2x32xf32>
    %272 = math.exp %271 : vector<2x32xf32>
    %cst_69 = arith.constant 1.000000e+00 : f32
    %273 = vector.broadcast %cst_69 : f32 to vector<2x32xf32>
    %274 = arith.addf %273, %272 : vector<2x32xf32>
    %275 = arith.divf %273, %274 : vector<2x32xf32>
    %276 = vector.extract_strided_slice %263 {offsets = [0, 64], sizes = [2, 32], strides = [1, 1]} : vector<2x128xf32> to vector<2x32xf32>
    %277 = math.tanh %276 : vector<2x32xf32>
    %278 = vector.extract_strided_slice %263 {offsets = [0, 96], sizes = [2, 32], strides = [1, 1]} : vector<2x128xf32> to vector<2x32xf32>
    %279 = arith.negf %278 : vector<2x32xf32>
    %280 = math.exp %279 : vector<2x32xf32>
    %cst_70 = arith.constant 1.000000e+00 : f32
    %281 = vector.broadcast %cst_70 : f32 to vector<2x32xf32>
    %282 = arith.addf %281, %280 : vector<2x32xf32>
    %283 = arith.divf %281, %282 : vector<2x32xf32>
    %284 = arith.mulf %275, %255 : vector<2x32xf32>
    %285 = arith.mulf %269, %277 : vector<2x32xf32>
    %286 = arith.addf %284, %285 : vector<2x32xf32>
    %287 = math.tanh %286 : vector<2x32xf32>
    %288 = arith.mulf %283, %287 : vector<2x32xf32>
    %cst_71 = arith.constant dense<0.000000e+00> : vector<2x16xf32>
    %289 = tpu.matmul %288, %6, %cst_71 {dimension_numbers = #tpu.dot_dimension_numbers<[1], [0], [0], [1], [0, 0, 1, 1], [], []>} : vector<2x32xf32>, vector<32x16xf32>, vector<2x16xf32> -> vector<2x16xf32>
    %290 = vector.broadcast %7 : vector<1x16xf32> to vector<2x16xf32>
    %291 = arith.addf %289, %290 : vector<2x16xf32>
    %c0_72 = arith.constant 0 : index
    %c112_73 = arith.constant 112 : index
    %292 = vector.load %arg9[%c0_72, %c112_73] : memref<2x128xf32, #tpu.memory_space<vmem>>, vector<2x16xf32>
    tpu.vector_store %arg9[%c0_72, %c112_73], %291 {strides = array<i32>} : memref<2x128xf32, #tpu.memory_space<vmem>>, vector<2x16xf32>,
    %cst_74 = arith.constant dense<0.000000e+00> : vector<2x128xf32>
    %293 = tpu.matmul %291, %3, %cst_74 {dimension_numbers = #tpu.dot_dimension_numbers<[1], [0], [0], [1], [0, 0, 1, 1], [], []>} : vector<2x16xf32>, vector<16x128xf32>, vector<2x128xf32> -> vector<2x128xf32>
    %cst_75 = arith.constant dense<0.000000e+00> : vector<2x128xf32>
    %294 = tpu.matmul %288, %4, %cst_75 {dimension_numbers = #tpu.dot_dimension_numbers<[1], [0], [0], [1], [0, 0, 1, 1], [], []>} : vector<2x32xf32>, vector<32x128xf32>, vector<2x128xf32> -> vector<2x128xf32>
    %295 = arith.addf %293, %294 : vector<2x128xf32>
    %296 = vector.broadcast %5 : vector<1x128xf32> to vector<2x128xf32>
    %297 = arith.addf %295, %296 : vector<2x128xf32>
    %298 = vector.extract_strided_slice %297 {offsets = [0, 0], sizes = [2, 32], strides = [1, 1]} : vector<2x128xf32> to vector<2x32xf32>
    %299 = arith.negf %298 : vector<2x32xf32>
    %300 = math.exp %299 : vector<2x32xf32>
    %cst_76 = arith.constant 1.000000e+00 : f32
    %301 = vector.broadcast %cst_76 : f32 to vector<2x32xf32>
    %302 = arith.addf %301, %300 : vector<2x32xf32>
    %303 = arith.divf %301, %302 : vector<2x32xf32>
    %304 = vector.extract_strided_slice %297 {offsets = [0, 32], sizes = [2, 32], strides = [1, 1]} : vector<2x128xf32> to vector<2x32xf32>
    %305 = arith.negf %304 : vector<2x32xf32>
    %306 = math.exp %305 : vector<2x32xf32>
    %cst_77 = arith.constant 1.000000e+00 : f32
    %307 = vector.broadcast %cst_77 : f32 to vector<2x32xf32>
    %308 = arith.addf %307, %306 : vector<2x32xf32>
    %309 = arith.divf %307, %308 : vector<2x32xf32>
    %310 = vector.extract_strided_slice %297 {offsets = [0, 64], sizes = [2, 32], strides = [1, 1]} : vector<2x128xf32> to vector<2x32xf32>
    %311 = math.tanh %310 : vector<2x32xf32>
    %312 = vector.extract_strided_slice %297 {offsets = [0, 96], sizes = [2, 32], strides = [1, 1]} : vector<2x128xf32> to vector<2x32xf32>
    %313 = arith.negf %312 : vector<2x32xf32>
    %314 = math.exp %313 : vector<2x32xf32>
    %cst_78 = arith.constant 1.000000e+00 : f32
    %315 = vector.broadcast %cst_78 : f32 to vector<2x32xf32>
    %316 = arith.addf %315, %314 : vector<2x32xf32>
    %317 = arith.divf %315, %316 : vector<2x32xf32>
    %318 = arith.mulf %309, %286 : vector<2x32xf32>
    %319 = arith.mulf %303, %311 : vector<2x32xf32>
    %320 = arith.addf %318, %319 : vector<2x32xf32>
    %321 = math.tanh %320 : vector<2x32xf32>
    %322 = arith.mulf %317, %321 : vector<2x32xf32>
    %cst_79 = arith.constant dense<0.000000e+00> : vector<2x16xf32>
    %323 = tpu.matmul %322, %6, %cst_79 {dimension_numbers = #tpu.dot_dimension_numbers<[1], [0], [0], [1], [0, 0, 1, 1], [], []>} : vector<2x32xf32>, vector<32x16xf32>, vector<2x16xf32> -> vector<2x16xf32>
    %324 = vector.broadcast %7 : vector<1x16xf32> to vector<2x16xf32>
    %325 = arith.addf %323, %324 : vector<2x16xf32>
    %c0_80 = arith.constant 0 : index
    %c96_81 = arith.constant 96 : index
    %326 = vector.load %arg9[%c0_80, %c96_81] : memref<2x128xf32, #tpu.memory_space<vmem>>, vector<2x16xf32>
    tpu.vector_store %arg9[%c0_80, %c96_81], %325 {strides = array<i32>} : memref<2x128xf32, #tpu.memory_space<vmem>>, vector<2x16xf32>,
    %cst_82 = arith.constant dense<0.000000e+00> : vector<2x128xf32>
    %327 = tpu.matmul %325, %3, %cst_82 {dimension_numbers = #tpu.dot_dimension_numbers<[1], [0], [0], [1], [0, 0, 1, 1], [], []>} : vector<2x16xf32>, vector<16x128xf32>, vector<2x128xf32> -> vector<2x128xf32>
    %cst_83 = arith.constant dense<0.000000e+00> : vector<2x128xf32>
    %328 = tpu.matmul %322, %4, %cst_83 {dimension_numbers = #tpu.dot_dimension_numbers<[1], [0], [0], [1], [0, 0, 1, 1], [], []>} : vector<2x32xf32>, vector<32x128xf32>, vector<2x128xf32> -> vector<2x128xf32>
    %329 = arith.addf %327, %328 : vector<2x128xf32>
    %330 = vector.broadcast %5 : vector<1x128xf32> to vector<2x128xf32>
    %331 = arith.addf %329, %330 : vector<2x128xf32>
    %332 = vector.extract_strided_slice %331 {offsets = [0, 0], sizes = [2, 32], strides = [1, 1]} : vector<2x128xf32> to vector<2x32xf32>
    %333 = arith.negf %332 : vector<2x32xf32>
    %334 = math.exp %333 : vector<2x32xf32>
    %cst_84 = arith.constant 1.000000e+00 : f32
    %335 = vector.broadcast %cst_84 : f32 to vector<2x32xf32>
    %336 = arith.addf %335, %334 : vector<2x32xf32>
    %337 = arith.divf %335, %336 : vector<2x32xf32>
    %338 = vector.extract_strided_slice %331 {offsets = [0, 32], sizes = [2, 32], strides = [1, 1]} : vector<2x128xf32> to vector<2x32xf32>
    %339 = arith.negf %338 : vector<2x32xf32>
    %340 = math.exp %339 : vector<2x32xf32>
    %cst_85 = arith.constant 1.000000e+00 : f32
    %341 = vector.broadcast %cst_85 : f32 to vector<2x32xf32>
    %342 = arith.addf %341, %340 : vector<2x32xf32>
    %343 = arith.divf %341, %342 : vector<2x32xf32>
    %344 = vector.extract_strided_slice %331 {offsets = [0, 64], sizes = [2, 32], strides = [1, 1]} : vector<2x128xf32> to vector<2x32xf32>
    %345 = math.tanh %344 : vector<2x32xf32>
    %346 = vector.extract_strided_slice %331 {offsets = [0, 96], sizes = [2, 32], strides = [1, 1]} : vector<2x128xf32> to vector<2x32xf32>
    %347 = arith.negf %346 : vector<2x32xf32>
    %348 = math.exp %347 : vector<2x32xf32>
    %cst_86 = arith.constant 1.000000e+00 : f32
    %349 = vector.broadcast %cst_86 : f32 to vector<2x32xf32>
    %350 = arith.addf %349, %348 : vector<2x32xf32>
    %351 = arith.divf %349, %350 : vector<2x32xf32>
    %352 = arith.mulf %343, %320 : vector<2x32xf32>
    %353 = arith.mulf %337, %345 : vector<2x32xf32>
    %354 = arith.addf %352, %353 : vector<2x32xf32>
    %355 = math.tanh %354 : vector<2x32xf32>
    %356 = arith.mulf %351, %355 : vector<2x32xf32>
    %cst_87 = arith.constant dense<0.000000e+00> : vector<2x16xf32>
    %357 = tpu.matmul %356, %6, %cst_87 {dimension_numbers = #tpu.dot_dimension_numbers<[1], [0], [0], [1], [0, 0, 1, 1], [], []>} : vector<2x32xf32>, vector<32x16xf32>, vector<2x16xf32> -> vector<2x16xf32>
    %358 = vector.broadcast %7 : vector<1x16xf32> to vector<2x16xf32>
    %359 = arith.addf %357, %358 : vector<2x16xf32>
    %c0_88 = arith.constant 0 : index
    %c80_89 = arith.constant 80 : index
    %360 = vector.load %arg9[%c0_88, %c80_89] : memref<2x128xf32, #tpu.memory_space<vmem>>, vector<2x16xf32>
    tpu.vector_store %arg9[%c0_88, %c80_89], %359 {strides = array<i32>} : memref<2x128xf32, #tpu.memory_space<vmem>>, vector<2x16xf32>,
    %cst_90 = arith.constant dense<0.000000e+00> : vector<2x128xf32>
    %361 = tpu.matmul %359, %3, %cst_90 {dimension_numbers = #tpu.dot_dimension_numbers<[1], [0], [0], [1], [0, 0, 1, 1], [], []>} : vector<2x16xf32>, vector<16x128xf32>, vector<2x128xf32> -> vector<2x128xf32>
    %cst_91 = arith.constant dense<0.000000e+00> : vector<2x128xf32>
    %362 = tpu.matmul %356, %4, %cst_91 {dimension_numbers = #tpu.dot_dimension_numbers<[1], [0], [0], [1], [0, 0, 1, 1], [], []>} : vector<2x32xf32>, vector<32x128xf32>, vector<2x128xf32> -> vector<2x128xf32>
    %363 = arith.addf %361, %362 : vector<2x128xf32>
    %364 = vector.broadcast %5 : vector<1x128xf32> to vector<2x128xf32>
    %365 = arith.addf %363, %364 : vector<2x128xf32>
    %366 = vector.extract_strided_slice %365 {offsets = [0, 0], sizes = [2, 32], strides = [1, 1]} : vector<2x128xf32> to vector<2x32xf32>
    %367 = arith.negf %366 : vector<2x32xf32>
    %368 = math.exp %367 : vector<2x32xf32>
    %cst_92 = arith.constant 1.000000e+00 : f32
    %369 = vector.broadcast %cst_92 : f32 to vector<2x32xf32>
    %370 = arith.addf %369, %368 : vector<2x32xf32>
    %371 = arith.divf %369, %370 : vector<2x32xf32>
    %372 = vector.extract_strided_slice %365 {offsets = [0, 32], sizes = [2, 32], strides = [1, 1]} : vector<2x128xf32> to vector<2x32xf32>
    %373 = arith.negf %372 : vector<2x32xf32>
    %374 = math.exp %373 : vector<2x32xf32>
    %cst_93 = arith.constant 1.000000e+00 : f32
    %375 = vector.broadcast %cst_93 : f32 to vector<2x32xf32>
    %376 = arith.addf %375, %374 : vector<2x32xf32>
    %377 = arith.divf %375, %376 : vector<2x32xf32>
    %378 = vector.extract_strided_slice %365 {offsets = [0, 64], sizes = [2, 32], strides = [1, 1]} : vector<2x128xf32> to vector<2x32xf32>
    %379 = math.tanh %378 : vector<2x32xf32>
    %380 = vector.extract_strided_slice %365 {offsets = [0, 96], sizes = [2, 32], strides = [1, 1]} : vector<2x128xf32> to vector<2x32xf32>
    %381 = arith.negf %380 : vector<2x32xf32>
    %382 = math.exp %381 : vector<2x32xf32>
    %cst_94 = arith.constant 1.000000e+00 : f32
    %383 = vector.broadcast %cst_94 : f32 to vector<2x32xf32>
    %384 = arith.addf %383, %382 : vector<2x32xf32>
    %385 = arith.divf %383, %384 : vector<2x32xf32>
    %386 = arith.mulf %377, %354 : vector<2x32xf32>
    %387 = arith.mulf %371, %379 : vector<2x32xf32>
    %388 = arith.addf %386, %387 : vector<2x32xf32>
    %389 = math.tanh %388 : vector<2x32xf32>
    %390 = arith.mulf %385, %389 : vector<2x32xf32>
    %cst_95 = arith.constant dense<0.000000e+00> : vector<2x16xf32>
    %391 = tpu.matmul %390, %6, %cst_95 {dimension_numbers = #tpu.dot_dimension_numbers<[1], [0], [0], [1], [0, 0, 1, 1], [], []>} : vector<2x32xf32>, vector<32x16xf32>, vector<2x16xf32> -> vector<2x16xf32>
    %392 = vector.broadcast %7 : vector<1x16xf32> to vector<2x16xf32>
    %393 = arith.addf %391, %392 : vector<2x16xf32>
    %c0_96 = arith.constant 0 : index
    %c64_97 = arith.constant 64 : index
    %394 = vector.load %arg9[%c0_96, %c64_97] : memref<2x128xf32, #tpu.memory_space<vmem>>, vector<2x16xf32>
    tpu.vector_store %arg9[%c0_96, %c64_97], %393 {strides = array<i32>} : memref<2x128xf32, #tpu.memory_space<vmem>>, vector<2x16xf32>,
    %cst_98 = arith.constant dense<0.000000e+00> : vector<2x128xf32>
    %395 = tpu.matmul %393, %3, %cst_98 {dimension_numbers = #tpu.dot_dimension_numbers<[1], [0], [0], [1], [0, 0, 1, 1], [], []>} : vector<2x16xf32>, vector<16x128xf32>, vector<2x128xf32> -> vector<2x128xf32>
    %cst_99 = arith.constant dense<0.000000e+00> : vector<2x128xf32>
    %396 = tpu.matmul %390, %4, %cst_99 {dimension_numbers = #tpu.dot_dimension_numbers<[1], [0], [0], [1], [0, 0, 1, 1], [], []>} : vector<2x32xf32>, vector<32x128xf32>, vector<2x128xf32> -> vector<2x128xf32>
    %397 = arith.addf %395, %396 : vector<2x128xf32>
    %398 = vector.broadcast %5 : vector<1x128xf32> to vector<2x128xf32>
    %399 = arith.addf %397, %398 : vector<2x128xf32>
    %400 = vector.extract_strided_slice %399 {offsets = [0, 0], sizes = [2, 32], strides = [1, 1]} : vector<2x128xf32> to vector<2x32xf32>
    %401 = arith.negf %400 : vector<2x32xf32>
    %402 = math.exp %401 : vector<2x32xf32>
    %cst_100 = arith.constant 1.000000e+00 : f32
    %403 = vector.broadcast %cst_100 : f32 to vector<2x32xf32>
    %404 = arith.addf %403, %402 : vector<2x32xf32>
    %405 = arith.divf %403, %404 : vector<2x32xf32>
    %406 = vector.extract_strided_slice %399 {offsets = [0, 32], sizes = [2, 32], strides = [1, 1]} : vector<2x128xf32> to vector<2x32xf32>
    %407 = arith.negf %406 : vector<2x32xf32>
    %408 = math.exp %407 : vector<2x32xf32>
    %cst_101 = arith.constant 1.000000e+00 : f32
    %409 = vector.broadcast %cst_101 : f32 to vector<2x32xf32>
    %410 = arith.addf %409, %408 : vector<2x32xf32>
    %411 = arith.divf %409, %410 : vector<2x32xf32>
    %412 = vector.extract_strided_slice %399 {offsets = [0, 64], sizes = [2, 32], strides = [1, 1]} : vector<2x128xf32> to vector<2x32xf32>
    %413 = math.tanh %412 : vector<2x32xf32>
    %414 = vector.extract_strided_slice %399 {offsets = [0, 96], sizes = [2, 32], strides = [1, 1]} : vector<2x128xf32> to vector<2x32xf32>
    %415 = arith.negf %414 : vector<2x32xf32>
    %416 = math.exp %415 : vector<2x32xf32>
    %cst_102 = arith.constant 1.000000e+00 : f32
    %417 = vector.broadcast %cst_102 : f32 to vector<2x32xf32>
    %418 = arith.addf %417, %416 : vector<2x32xf32>
    %419 = arith.divf %417, %418 : vector<2x32xf32>
    %420 = arith.mulf %411, %388 : vector<2x32xf32>
    %421 = arith.mulf %405, %413 : vector<2x32xf32>
    %422 = arith.addf %420, %421 : vector<2x32xf32>
    %423 = math.tanh %422 : vector<2x32xf32>
    %424 = arith.mulf %419, %423 : vector<2x32xf32>
    %cst_103 = arith.constant dense<0.000000e+00> : vector<2x16xf32>
    %425 = tpu.matmul %424, %6, %cst_103 {dimension_numbers = #tpu.dot_dimension_numbers<[1], [0], [0], [1], [0, 0, 1, 1], [], []>} : vector<2x32xf32>, vector<32x16xf32>, vector<2x16xf32> -> vector<2x16xf32>
    %426 = vector.broadcast %7 : vector<1x16xf32> to vector<2x16xf32>
    %427 = arith.addf %425, %426 : vector<2x16xf32>
    %c0_104 = arith.constant 0 : index
    %c48_105 = arith.constant 48 : index
    %428 = vector.load %arg9[%c0_104, %c48_105] : memref<2x128xf32, #tpu.memory_space<vmem>>, vector<2x16xf32>
    tpu.vector_store %arg9[%c0_104, %c48_105], %427 {strides = array<i32>} : memref<2x128xf32, #tpu.memory_space<vmem>>, vector<2x16xf32>,
    %cst_106 = arith.constant dense<0.000000e+00> : vector<2x128xf32>
    %429 = tpu.matmul %427, %3, %cst_106 {dimension_numbers = #tpu.dot_dimension_numbers<[1], [0], [0], [1], [0, 0, 1, 1], [], []>} : vector<2x16xf32>, vector<16x128xf32>, vector<2x128xf32> -> vector<2x128xf32>
    %cst_107 = arith.constant dense<0.000000e+00> : vector<2x128xf32>
    %430 = tpu.matmul %424, %4, %cst_107 {dimension_numbers = #tpu.dot_dimension_numbers<[1], [0], [0], [1], [0, 0, 1, 1], [], []>} : vector<2x32xf32>, vector<32x128xf32>, vector<2x128xf32> -> vector<2x128xf32>
    %431 = arith.addf %429, %430 : vector<2x128xf32>
    %432 = vector.broadcast %5 : vector<1x128xf32> to vector<2x128xf32>
    %433 = arith.addf %431, %432 : vector<2x128xf32>
    %434 = vector.extract_strided_slice %433 {offsets = [0, 0], sizes = [2, 32], strides = [1, 1]} : vector<2x128xf32> to vector<2x32xf32>
    %435 = arith.negf %434 : vector<2x32xf32>
    %436 = math.exp %435 : vector<2x32xf32>
    %cst_108 = arith.constant 1.000000e+00 : f32
    %437 = vector.broadcast %cst_108 : f32 to vector<2x32xf32>
    %438 = arith.addf %437, %436 : vector<2x32xf32>
    %439 = arith.divf %437, %438 : vector<2x32xf32>
    %440 = vector.extract_strided_slice %433 {offsets = [0, 32], sizes = [2, 32], strides = [1, 1]} : vector<2x128xf32> to vector<2x32xf32>
    %441 = arith.negf %440 : vector<2x32xf32>
    %442 = math.exp %441 : vector<2x32xf32>
    %cst_109 = arith.constant 1.000000e+00 : f32
    %443 = vector.broadcast %cst_109 : f32 to vector<2x32xf32>
    %444 = arith.addf %443, %442 : vector<2x32xf32>
    %445 = arith.divf %443, %444 : vector<2x32xf32>
    %446 = vector.extract_strided_slice %433 {offsets = [0, 64], sizes = [2, 32], strides = [1, 1]} : vector<2x128xf32> to vector<2x32xf32>
    %447 = math.tanh %446 : vector<2x32xf32>
    %448 = vector.extract_strided_slice %433 {offsets = [0, 96], sizes = [2, 32], strides = [1, 1]} : vector<2x128xf32> to vector<2x32xf32>
    %449 = arith.negf %448 : vector<2x32xf32>
    %450 = math.exp %449 : vector<2x32xf32>
    %cst_110 = arith.constant 1.000000e+00 : f32
    %451 = vector.broadcast %cst_110 : f32 to vector<2x32xf32>
    %452 = arith.addf %451, %450 : vector<2x32xf32>
    %453 = arith.divf %451, %452 : vector<2x32xf32>
    %454 = arith.mulf %445, %422 : vector<2x32xf32>
    %455 = arith.mulf %439, %447 : vector<2x32xf32>
    %456 = arith.addf %454, %455 : vector<2x32xf32>
    %457 = math.tanh %456 : vector<2x32xf32>
    %458 = arith.mulf %453, %457 : vector<2x32xf32>
    %cst_111 = arith.constant dense<0.000000e+00> : vector<2x16xf32>
    %459 = tpu.matmul %458, %6, %cst_111 {dimension_numbers = #tpu.dot_dimension_numbers<[1], [0], [0], [1], [0, 0, 1, 1], [], []>} : vector<2x32xf32>, vector<32x16xf32>, vector<2x16xf32> -> vector<2x16xf32>
    %460 = vector.broadcast %7 : vector<1x16xf32> to vector<2x16xf32>
    %461 = arith.addf %459, %460 : vector<2x16xf32>
    %c0_112 = arith.constant 0 : index
    %c32_113 = arith.constant 32 : index
    %462 = vector.load %arg9[%c0_112, %c32_113] : memref<2x128xf32, #tpu.memory_space<vmem>>, vector<2x16xf32>
    tpu.vector_store %arg9[%c0_112, %c32_113], %461 {strides = array<i32>} : memref<2x128xf32, #tpu.memory_space<vmem>>, vector<2x16xf32>,
    %cst_114 = arith.constant dense<0.000000e+00> : vector<2x128xf32>
    %463 = tpu.matmul %461, %3, %cst_114 {dimension_numbers = #tpu.dot_dimension_numbers<[1], [0], [0], [1], [0, 0, 1, 1], [], []>} : vector<2x16xf32>, vector<16x128xf32>, vector<2x128xf32> -> vector<2x128xf32>
    %cst_115 = arith.constant dense<0.000000e+00> : vector<2x128xf32>
    %464 = tpu.matmul %458, %4, %cst_115 {dimension_numbers = #tpu.dot_dimension_numbers<[1], [0], [0], [1], [0, 0, 1, 1], [], []>} : vector<2x32xf32>, vector<32x128xf32>, vector<2x128xf32> -> vector<2x128xf32>
    %465 = arith.addf %463, %464 : vector<2x128xf32>
    %466 = vector.broadcast %5 : vector<1x128xf32> to vector<2x128xf32>
    %467 = arith.addf %465, %466 : vector<2x128xf32>
    %468 = vector.extract_strided_slice %467 {offsets = [0, 0], sizes = [2, 32], strides = [1, 1]} : vector<2x128xf32> to vector<2x32xf32>
    %469 = arith.negf %468 : vector<2x32xf32>
    %470 = math.exp %469 : vector<2x32xf32>
    %cst_116 = arith.constant 1.000000e+00 : f32
    %471 = vector.broadcast %cst_116 : f32 to vector<2x32xf32>
    %472 = arith.addf %471, %470 : vector<2x32xf32>
    %473 = arith.divf %471, %472 : vector<2x32xf32>
    %474 = vector.extract_strided_slice %467 {offsets = [0, 32], sizes = [2, 32], strides = [1, 1]} : vector<2x128xf32> to vector<2x32xf32>
    %475 = arith.negf %474 : vector<2x32xf32>
    %476 = math.exp %475 : vector<2x32xf32>
    %cst_117 = arith.constant 1.000000e+00 : f32
    %477 = vector.broadcast %cst_117 : f32 to vector<2x32xf32>
    %478 = arith.addf %477, %476 : vector<2x32xf32>
    %479 = arith.divf %477, %478 : vector<2x32xf32>
    %480 = vector.extract_strided_slice %467 {offsets = [0, 64], sizes = [2, 32], strides = [1, 1]} : vector<2x128xf32> to vector<2x32xf32>
    %481 = math.tanh %480 : vector<2x32xf32>
    %482 = vector.extract_strided_slice %467 {offsets = [0, 96], sizes = [2, 32], strides = [1, 1]} : vector<2x128xf32> to vector<2x32xf32>
    %483 = arith.negf %482 : vector<2x32xf32>
    %484 = math.exp %483 : vector<2x32xf32>
    %cst_118 = arith.constant 1.000000e+00 : f32
    %485 = vector.broadcast %cst_118 : f32 to vector<2x32xf32>
    %486 = arith.addf %485, %484 : vector<2x32xf32>
    %487 = arith.divf %485, %486 : vector<2x32xf32>
    %488 = arith.mulf %479, %456 : vector<2x32xf32>
    %489 = arith.mulf %473, %481 : vector<2x32xf32>
    %490 = arith.addf %488, %489 : vector<2x32xf32>
    %491 = math.tanh %490 : vector<2x32xf32>
    %492 = arith.mulf %487, %491 : vector<2x32xf32>
    %cst_119 = arith.constant dense<0.000000e+00> : vector<2x16xf32>
    %493 = tpu.matmul %492, %6, %cst_119 {dimension_numbers = #tpu.dot_dimension_numbers<[1], [0], [0], [1], [0, 0, 1, 1], [], []>} : vector<2x32xf32>, vector<32x16xf32>, vector<2x16xf32> -> vector<2x16xf32>
    %494 = vector.broadcast %7 : vector<1x16xf32> to vector<2x16xf32>
    %495 = arith.addf %493, %494 : vector<2x16xf32>
    %c0_120 = arith.constant 0 : index
    %c16_121 = arith.constant 16 : index
    %496 = vector.load %arg9[%c0_120, %c16_121] : memref<2x128xf32, #tpu.memory_space<vmem>>, vector<2x16xf32>
    tpu.vector_store %arg9[%c0_120, %c16_121], %495 {strides = array<i32>} : memref<2x128xf32, #tpu.memory_space<vmem>>, vector<2x16xf32>,
    %cst_122 = arith.constant dense<0.000000e+00> : vector<2x128xf32>
    %497 = tpu.matmul %495, %3, %cst_122 {dimension_numbers = #tpu.dot_dimension_numbers<[1], [0], [0], [1], [0, 0, 1, 1], [], []>} : vector<2x16xf32>, vector<16x128xf32>, vector<2x128xf32> -> vector<2x128xf32>
    %cst_123 = arith.constant dense<0.000000e+00> : vector<2x128xf32>
    %498 = tpu.matmul %492, %4, %cst_123 {dimension_numbers = #tpu.dot_dimension_numbers<[1], [0], [0], [1], [0, 0, 1, 1], [], []>} : vector<2x32xf32>, vector<32x128xf32>, vector<2x128xf32> -> vector<2x128xf32>
    %499 = arith.addf %497, %498 : vector<2x128xf32>
    %500 = vector.broadcast %5 : vector<1x128xf32> to vector<2x128xf32>
    %501 = arith.addf %499, %500 : vector<2x128xf32>
    %502 = vector.extract_strided_slice %501 {offsets = [0, 0], sizes = [2, 32], strides = [1, 1]} : vector<2x128xf32> to vector<2x32xf32>
    %503 = arith.negf %502 : vector<2x32xf32>
    %504 = math.exp %503 : vector<2x32xf32>
    %cst_124 = arith.constant 1.000000e+00 : f32
    %505 = vector.broadcast %cst_124 : f32 to vector<2x32xf32>
    %506 = arith.addf %505, %504 : vector<2x32xf32>
    %507 = arith.divf %505, %506 : vector<2x32xf32>
    %508 = vector.extract_strided_slice %501 {offsets = [0, 32], sizes = [2, 32], strides = [1, 1]} : vector<2x128xf32> to vector<2x32xf32>
    %509 = arith.negf %508 : vector<2x32xf32>
    %510 = math.exp %509 : vector<2x32xf32>
    %cst_125 = arith.constant 1.000000e+00 : f32
    %511 = vector.broadcast %cst_125 : f32 to vector<2x32xf32>
    %512 = arith.addf %511, %510 : vector<2x32xf32>
    %513 = arith.divf %511, %512 : vector<2x32xf32>
    %514 = vector.extract_strided_slice %501 {offsets = [0, 64], sizes = [2, 32], strides = [1, 1]} : vector<2x128xf32> to vector<2x32xf32>
    %515 = math.tanh %514 : vector<2x32xf32>
    %516 = vector.extract_strided_slice %501 {offsets = [0, 96], sizes = [2, 32], strides = [1, 1]} : vector<2x128xf32> to vector<2x32xf32>
    %517 = arith.negf %516 : vector<2x32xf32>
    %518 = math.exp %517 : vector<2x32xf32>
    %cst_126 = arith.constant 1.000000e+00 : f32
    %519 = vector.broadcast %cst_126 : f32 to vector<2x32xf32>
    %520 = arith.addf %519, %518 : vector<2x32xf32>
    %521 = arith.divf %519, %520 : vector<2x32xf32>
    %522 = arith.mulf %513, %490 : vector<2x32xf32>
    %523 = arith.mulf %507, %515 : vector<2x32xf32>
    %524 = arith.addf %522, %523 : vector<2x32xf32>
    %525 = math.tanh %524 : vector<2x32xf32>
    %526 = arith.mulf %521, %525 : vector<2x32xf32>
    %cst_127 = arith.constant dense<0.000000e+00> : vector<2x16xf32>
    %527 = tpu.matmul %526, %6, %cst_127 {dimension_numbers = #tpu.dot_dimension_numbers<[1], [0], [0], [1], [0, 0, 1, 1], [], []>} : vector<2x32xf32>, vector<32x16xf32>, vector<2x16xf32> -> vector<2x16xf32>
    %528 = vector.broadcast %7 : vector<1x16xf32> to vector<2x16xf32>
    %529 = arith.addf %527, %528 : vector<2x16xf32>
    %c0_128 = arith.constant 0 : index
    %c0_129 = arith.constant 0 : index
    %530 = vector.load %arg9[%c0_128, %c0_129] : memref<2x128xf32, #tpu.memory_space<vmem>>, vector<2x16xf32>
    tpu.vector_store %arg9[%c0_128, %c0_129], %529 {strides = array<i32>} : memref<2x128xf32, #tpu.memory_space<vmem>>, vector<2x16xf32>,
    return
  }
}

</mosaic_0001>

<llo_original>
// kernel: tpu_custom_call.1
$region0: #{tpu_custom_call.1}
  #allocation0 [shape = 'u32[]', space=smem, size = 0x4, offset = 0x4, fixed_abs, tag = 'smem constant byte address 0x4 - core index']
  #allocation1 [shape = 'u32[144,128]{1,0:T(1,128)}', space=vmem, size = 0x12000, scoped, tag = 'internal scratch']
  %s0 = inlined_call_operand.vmem [shape: f32[2,128], index: 0, kind: input, shape index: {}]
  %s1 = inlined_call_operand.vmem [shape: f32[16,128], index: 1, kind: input, shape index: {}]
  %s2 = inlined_call_operand.vmem [shape: f32[32,128], index: 2, kind: input, shape index: {}]
  %s3 = inlined_call_operand.vmem [shape: f32[1,128], index: 3, kind: input, shape index: {}]
  %s4 = inlined_call_operand.hbm [shape: f32[16,128], index: 4, kind: input, shape index: {}]
  %s5 = inlined_call_operand.hbm [shape: f32[32,128], index: 5, kind: input, shape index: {}]
  %s6 = inlined_call_operand.vmem [shape: f32[1,128], index: 6, kind: input, shape index: {}]
  %s7 = inlined_call_operand.vmem [shape: f32[32,16], index: 7, kind: input, shape index: {}]
  %s8 = inlined_call_operand.vmem [shape: f32[1,16], index: 8, kind: input, shape index: {}]
  %s9 = inlined_call_operand.hbm [shape: f32[2,128], index: 9, kind: output, shape index: {}]
  %s10 = sld [smem:[#allocation0]]
  $region54: #{tpu_custom_call.1} parent=0
    _
  %s12 = ssub.s32 1, %s10
  %s13 = scalar_select 0, %s12, %s10
  $region1: #{tpu_custom_call.1} parent=0
    #allocation2 [shape = 'u8[8192]{0}', space=vmem, size = 0x2000, scoped, tag = 'input window, operand 4, single buffered']
    #allocation3 [shape = 's32[1]{0}', space=sflag, size = 0x4, scoped, tag = 'scoped memory for tpu_custom_call.1']
    #allocation4 [shape = 's32[1]{0}', space=sflag, size = 0x4, scoped, tag = 'scoped memory for tpu_custom_call.1']
    #allocation5 [shape = 'u8[16384]{0}', space=vmem, size = 0x4000, scoped, tag = 'input window, operand 5, single buffered']
    #allocation6 [shape = 's32[1]{0}', space=sflag, size = 0x4, scoped, tag = 'scoped memory for tpu_custom_call.1']
    #allocation7 [shape = 'u8[1024]{0}', space=vmem, size = 0x400, scoped, tag = 'output window, operand 0, single buffered']
    %14 = vsyncpa [#allocation3], 0
    %15 = vsyncpa [#allocation6], 0
    %16 = vsyncpa [#allocation4], 0
    // Predicated region
    $region2: #{tpu_custom_call.1} parent=1 // pred_check
      _
    $region3: #{tpu_custom_call.1} parent=1 // pred_check_branch
      %18 = sbr.rel (0) target = $region5
    $region4: #{tpu_custom_call.1} parent=1 // pred_region
      _
    $region5: #{tpu_custom_call.1} parent=1 // pred_fallthru
      _
    // Predicated region
    $region6: #{tpu_custom_call.1} parent=1 // pred_check
      _
    $region7: #{tpu_custom_call.1} parent=1 // pred_check_branch
      %20 = sbr.rel (0) target = $region9
    $region8: #{tpu_custom_call.1} parent=1 // pred_region
      _
    $region9: #{tpu_custom_call.1} parent=1 // pred_fallthru
      _
    // Predicated region
    $region10: #{tpu_custom_call.1} parent=1 // pred_check
      _
    $region11: #{tpu_custom_call.1} parent=1 // pred_check_branch
      %22 = sbr.rel (0) target = $region13
    $region12: #{tpu_custom_call.1} parent=1 // pred_region
      _
    $region13: #{tpu_custom_call.1} parent=1 // pred_fallthru
      _
    // Predicated region
    $region14: #{tpu_custom_call.1} parent=1 // pred_check
      _
    $region15: #{tpu_custom_call.1} parent=1 // pred_check_branch
      %24 = sbr.rel (0) target = $region17
    $region16: #{tpu_custom_call.1} parent=1 // pred_region
      _
    $region17: #{tpu_custom_call.1} parent=1 // pred_fallthru
      _
    // Predicated region
    $region18: #{tpu_custom_call.1} parent=1 // pred_check
      _
    $region19: #{tpu_custom_call.1} parent=1 // pred_check_branch
      %26 = sbr.rel (0) target = $region21
    $region20: #{tpu_custom_call.1} parent=1 // pred_region
      %s28 = ssub.s32 256, 256
      %29 = vsyncadd [#allocation3], %s28
      %s30 = sshll.u32 [#allocation2], 4
      %s31 = int_to_ptr.vmem [resolvable:$true] %s30
      %36 = dma.hbm_to_vmem [thread:$0]  %s4, 256, %s31, [#allocation3], 128, 128, 8
    $region21: #{tpu_custom_call.1} parent=1 // pred_fallthru
      _
    // Predicated region
    $region22: #{tpu_custom_call.1} parent=1 // pred_check
      _
    $region23: #{tpu_custom_call.1} parent=1 // pred_check_branch
      %38 = sbr.rel (0) target = $region25
    $region24: #{tpu_custom_call.1} parent=1 // pred_region
      %s40 = ssub.s32 512, 512
      %41 = vsyncadd [#allocation6], %s40
      %s42 = sshll.u32 [#allocation5], 4
      %s43 = int_to_ptr.vmem [resolvable:$true] %s42
      %48 = dma.hbm_to_vmem [thread:$0]  %s5, 512, %s43, [#allocation6], 128, 128, 8
    $region25: #{tpu_custom_call.1} parent=1 // pred_fallthru
      _
    // Predicated region
    $region26: #{tpu_custom_call.1} parent=1 // pred_check
      _
    $region27: #{tpu_custom_call.1} parent=1 // pred_check_branch
      %50 = sbr.rel (0) target = $region29
    $region28: #{tpu_custom_call.1} parent=1 // pred_region
      _
    $region29: #{tpu_custom_call.1} parent=1 // pred_fallthru
      _
    // Predicated region
    $region30: #{tpu_custom_call.1} parent=1 // pred_check
      _
    $region31: #{tpu_custom_call.1} parent=1 // pred_check_branch
      %52 = sbr.rel (0) target = $region33
    $region32: #{tpu_custom_call.1} parent=1 // pred_region
      _
    $region33: #{tpu_custom_call.1} parent=1 // pred_fallthru
      _
    // Predicated region
    $region34: #{tpu_custom_call.1} parent=1 // pred_check
      _
    $region35: #{tpu_custom_call.1} parent=1 // pred_check_branch
      %54 = sbr.rel (0) target = $region37
    $region36: #{tpu_custom_call.1} parent=1 // pred_region
      _
    $region37: #{tpu_custom_call.1} parent=1 // pred_fallthru
      _
    // Predicated region
    $region38: #{tpu_custom_call.1} parent=1 // pred_check
      _
    $region39: #{tpu_custom_call.1} parent=1 // pred_check_branch
      %56 = sbr.rel (0) target = $region41
    $region40: #{tpu_custom_call.1} parent=1 // pred_region
      %57 = dma.done [#allocation3], 256
    $region41: #{tpu_custom_call.1} parent=1 // pred_fallthru
      _
    // Predicated region
    $region42: #{tpu_custom_call.1} parent=1 // pred_check
      _
    $region43: #{tpu_custom_call.1} parent=1 // pred_check_branch
      %59 = sbr.rel (0) target = $region45
    $region44: #{tpu_custom_call.1} parent=1 // pred_region
      %60 = dma.done [#allocation6], 512
    $region45: #{tpu_custom_call.1} parent=1 // pred_fallthru
      _
    %v61 = vld [vmem:[%s1] sm:$0xff]
    %v62 = vld [vmem:[%s1 + $0x8] sm:$0xff]
    %v63 = vld [vmem:[%s2] sm:$0xff]
    %v64 = vld [vmem:[%s2 + $0x8] sm:$0xff]
    %v65 = vld [vmem:[%s2 + $0x10] sm:$0xff]
    %v66 = vld [vmem:[%s2 + $0x18] sm:$0xff]
    %v67 = vld [vmem:[%s3] sm:$0x1]
    %v68 = vld [vmem:[#allocation2] sm:$0xff]
    %v69 = vld [vmem:[#allocation2 + $0x8] sm:$0xff]
    %v70 = vld [vmem:[#allocation5] sm:$0xff]
    %v71 = vld [vmem:[#allocation5 + $0x8] sm:$0xff]
    %v72 = vld [vmem:[#allocation5 + $0x10] sm:$0xff]
    %v73 = vld [vmem:[#allocation5 + $0x18] sm:$0xff]
    %v74 = vld [vmem:[%s6] sm:$0x1]
    %v75 = vld [vmem:[%s7] sm:$0xff]
    %v76 = vld [vmem:[%s7 + $0x8] sm:$0xff]
    %v77 = vld [vmem:[%s7 + $0x10] sm:$0xff]
    %v78 = vld [vmem:[%s7 + $0x18] sm:$0xff]
    %v79 = vld [vmem:[%s8] sm:$0x1]
    %v80 = vld [vmem:[%s0] sm:$0x3]
    %vm81 = vcmask 261120
    %v83 = vsel %vm81, 0.0, 0
    %85 = vmatprep.subr.mxu0 0.0
    %86 = vmatpush1.msra.mxu0 0.0
    %87 = vmatprep.subr.mxu0 0.0
    %88 = vmatpush1.msra.mxu0 0.0
    %89 = vmatprep.subr.mxu0 0.0
    %90 = vmatpush1.msra.mxu0 0.0
    %91 = vmatprep.subr.mxu0 0.0
    %92 = vmatpush1.msra.mxu0 0.0
    %93 = vmatprep.subr.mxu0 0.0
    %94 = vmatpush1.msra.mxu0 0.0
    %95 = vmatprep.subr.mxu0 0.0
    %96 = vmatpush1.msra.mxu0 0.0
    %97 = vmatprep.subr.mxu0 0.0
    %98 = vmatpush1.msra.mxu0 0.0
    %99 = vmatprep.subr.mxu0 0.0
    %100 = vmatpush1.msra.mxu0 0.0
    %101 = vmatprep.subr.mxu0 0.0
    %102 = vmatpush1.msra.mxu0 0.0
    %103 = vmatprep.subr.mxu0 0.0
    %104 = vmatpush1.msra.mxu0 0.0
    %105 = vmatprep.subr.mxu0 0.0
    %106 = vmatpush1.msra.mxu0 0.0
    %107 = vmatprep.subr.mxu0 0.0
    %108 = vmatpush1.msra.mxu0 0.0
    %109 = vmatprep.subr.mxu0 0.0
    %110 = vmatpush1.msra.mxu0 %v66
    %111 = vmatprep.subr.mxu0 0.0
    %112 = vmatpush1.msra.mxu0 %v65
    %113 = vmatprep.subr.mxu0 0.0
    %114 = vmatpush1.msra.mxu0 %v64
    %115 = vmatprep.subr.mxu0 0.0
    %116 = vmatpush1.msra.mxu0 %v63
    %117 = vmatprep.subr.mxu0 0.0
    %118 = vmatpush2.msra.mxu0 0.0
    %119 = vmatprep.subr.mxu0 0.0
    %120 = vmatpush2.msra.mxu0 0.0
    %121 = vmatprep.subr.mxu0 0.0
    %122 = vmatpush2.msra.mxu0 0.0
    %123 = vmatprep.subr.mxu0 0.0
    %124 = vmatpush2.msra.mxu0 0.0
    %125 = vmatprep.subr.mxu0 0.0
    %126 = vmatpush2.msra.mxu0 0.0
    %127 = vmatprep.subr.mxu0 0.0
    %128 = vmatpush2.msra.mxu0 0.0
    %129 = vmatprep.subr.mxu0 0.0
    %130 = vmatpush2.msra.mxu0 0.0
    %131 = vmatprep.subr.mxu0 0.0
    %132 = vmatpush2.msra.mxu0 0.0
    %133 = vmatprep.subr.mxu0 0.0
    %134 = vmatpush2.msra.mxu0 0.0
    %135 = vmatprep.subr.mxu0 0.0
    %136 = vmatpush2.msra.mxu0 0.0
    %137 = vmatprep.subr.mxu0 0.0
    %138 = vmatpush2.msra.mxu0 0.0
    %139 = vmatprep.subr.mxu0 0.0
    %140 = vmatpush2.msra.mxu0 0.0
    %141 = vmatprep.subr.mxu0 0.0
    %142 = vmatpush2.msra.mxu0 0.0
    %143 = vmatprep.subr.mxu0 0.0
    %144 = vmatpush2.msra.mxu0 0.0
    %145 = vmatprep.subr.mxu0 0.0
    %146 = vmatpush2.msra.mxu0 0.0
    %147 = vmatprep.subr.mxu0 0.0
    %148 = vmatpush2.msra.mxu0 0.0
    %149 = vmatprep.mubr.f32.mxu0 0.0
    %150 = vmatmul.mubr.f32.gmra.mxu0 %v83
    %v151 = vpop.f32.mrf.mxu0
    %v152 = vadd.f32 0.0, %v151
    %v153 = vpop.f32.mrf.mxu0
    %154 = vdwg.mxu0
    %vm155 = vcmask 130048
    %v157 = vsel %vm155, %v80, 0
    %159 = vmatprep.subr.mxu0 0.0
    %160 = vmatpush1.msra.mxu0 0.0
    %161 = vmatprep.subr.mxu0 0.0
    %162 = vmatpush1.msra.mxu0 0.0
    %163 = vmatprep.subr.mxu0 0.0
    %164 = vmatpush1.msra.mxu0 0.0
    %165 = vmatprep.subr.mxu0 0.0
    %166 = vmatpush1.msra.mxu0 0.0
    %167 = vmatprep.subr.mxu0 0.0
    %168 = vmatpush1.msra.mxu0 0.0
    %169 = vmatprep.subr.mxu0 0.0
    %170 = vmatpush1.msra.mxu0 0.0
    %171 = vmatprep.subr.mxu0 0.0
    %172 = vmatpush1.msra.mxu0 0.0
    %173 = vmatprep.subr.mxu0 0.0
    %174 = vmatpush1.msra.mxu0 0.0
    %175 = vmatprep.subr.mxu0 0.0
    %176 = vmatpush1.msra.mxu0 0.0
    %177 = vmatprep.subr.mxu0 0.0
    %178 = vmatpush1.msra.mxu0 0.0
    %179 = vmatprep.subr.mxu0 0.0
    %180 = vmatpush1.msra.mxu0 0.0
    %181 = vmatprep.subr.mxu0 0.0
    %182 = vmatpush1.msra.mxu0 0.0
    %183 = vmatprep.subr.mxu0 0.0
    %184 = vmatpush1.msra.mxu0 0.0
    %185 = vmatprep.subr.mxu0 0.0
    %186 = vmatpush1.msra.mxu0 0.0
    %187 = vmatprep.subr.mxu0 0.0
    %188 = vmatpush1.msra.mxu0 %v62
    %189 = vmatprep.subr.mxu0 0.0
    %190 = vmatpush1.msra.mxu0 %v61
    %191 = vmatprep.subr.mxu0 0.0
    %192 = vmatpush2.msra.mxu0 0.0
    %193 = vmatprep.subr.mxu0 0.0
    %194 = vmatpush2.msra.mxu0 0.0
    %195 = vmatprep.subr.mxu0 0.0
    %196 = vmatpush2.msra.mxu0 0.0
    %197 = vmatprep.subr.mxu0 0.0
    %198 = vmatpush2.msra.mxu0 0.0
    %199 = vmatprep.subr.mxu0 0.0
    %200 = vmatpush2.msra.mxu0 0.0
    %201 = vmatprep.subr.mxu0 0.0
    %202 = vmatpush2.msra.mxu0 0.0
    %203 = vmatprep.subr.mxu0 0.0
    %204 = vmatpush2.msra.mxu0 0.0
    %205 = vmatprep.subr.mxu0 0.0
    %206 = vmatpush2.msra.mxu0 0.0
    %207 = vmatprep.subr.mxu0 0.0
    %208 = vmatpush2.msra.mxu0 0.0
    %209 = vmatprep.subr.mxu0 0.0
    %210 = vmatpush2.msra.mxu0 0.0
    %211 = vmatprep.subr.mxu0 0.0
    %212 = vmatpush2.msra.mxu0 0.0
    %213 = vmatprep.subr.mxu0 0.0
    %214 = vmatpush2.msra.mxu0 0.0
    %215 = vmatprep.subr.mxu0 0.0
    %216 = vmatpush2.msra.mxu0 0.0
    %217 = vmatprep.subr.mxu0 0.0
    %218 = vmatpush2.msra.mxu0 0.0
    %219 = vmatprep.subr.mxu0 0.0
    %220 = vmatpush2.msra.mxu0 0.0
    %221 = vmatprep.subr.mxu0 0.0
    %222 = vmatpush2.msra.mxu0 0.0
    %223 = vmatprep.mubr.f32.mxu0 0.0
    %224 = vmatmul.mubr.f32.gmra.mxu0 %v157
    %v225 = vpop.f32.mrf.mxu0
    %v226 = vadd.f32 %v152, %v225
    %v227 = vpop.f32.mrf.mxu0
    %228 = vdwg.mxu0
    %v230 = vlaneseq
    %v231 = vshrl.u32 %v230, 7
    %v232 = vsub.s32 0, %v231
    %v233 = vrot.slane %v67, %v232
    %v235 = vadd.f32 %v226, %v233
    %v236 = vxor.u32 %v235, 2147483648
    %v237 = vmul.f32 %v236, 1.442695
    %v238 = vpow.pop %v237
    %v239 = vadd.f32 %v238, 1.0
    %v240 = vrcp.pop %v239
    %v241 = vmul.f32 1.0, %v240
    %v242 = vtanh.pop %v235
    %v243 = vmul.f32 %v241, 0.0
    %245 = vrot.lane.b32.xlu0 %v242, 64
    %v246 = vpop.permute.xlu0 %245
    %v248 = vmul.f32 %v241, %v246
    %250 = vrot.lane.b32.xlu0 %v248, 32
    %v251 = vpop.permute.xlu0 %250
    %v253 = vadd.f32 %v243, %v251
    %v254 = vtanh.pop %v253
    %256 = vrot.lane.b32.xlu0 %v254, 64
    %v257 = vpop.permute.xlu0 %256
    %v259 = vmul.f32 %v241, %v257
    %261 = vrot.lane.b32.xlu0 %v259, 32
    %v262 = vpop.permute.xlu0 %261
    %v263 = vsel %vm81, %v262, 0
    %265 = vmatprep.subr.mxu0 0.0
    %266 = vmatpush1.msra.mxu0 0.0
    %267 = vmatprep.subr.mxu0 0.0
    %268 = vmatpush1.msra.mxu0 0.0
    %269 = vmatprep.subr.mxu0 0.0
    %270 = vmatpush1.msra.mxu0 0.0
    %271 = vmatprep.subr.mxu0 0.0
    %272 = vmatpush1.msra.mxu0 0.0
    %273 = vmatprep.subr.mxu0 0.0
    %274 = vmatpush1.msra.mxu0 0.0
    %275 = vmatprep.subr.mxu0 0.0
    %276 = vmatpush1.msra.mxu0 0.0
    %277 = vmatprep.subr.mxu0 0.0
    %278 = vmatpush1.msra.mxu0 0.0
    %279 = vmatprep.subr.mxu0 0.0
    %280 = vmatpush1.msra.mxu0 0.0
    %281 = vmatprep.subr.mxu0 0.0
    %282 = vmatpush1.msra.mxu0 0.0
    %283 = vmatprep.subr.mxu0 0.0
    %284 = vmatpush1.msra.mxu0 0.0
    %285 = vmatprep.subr.mxu0 0.0
    %286 = vmatpush1.msra.mxu0 0.0
    %287 = vmatprep.subr.mxu0 0.0
    %288 = vmatpush1.msra.mxu0 0.0
    %289 = vmatprep.subr.mxu0 0.0
    %290 = vmatpush1.msra.mxu0 %v66
    %291 = vmatprep.subr.mxu0 0.0
    %292 = vmatpush1.msra.mxu0 %v65
    %293 = vmatprep.subr.mxu0 0.0
    %294 = vmatpush1.msra.mxu0 %v64
    %295 = vmatprep.subr.mxu0 0.0
    %296 = vmatpush1.msra.mxu0 %v63
    %297 = vmatprep.subr.mxu0 0.0
    %298 = vmatpush2.msra.mxu0 0.0
    %299 = vmatprep.subr.mxu0 0.0
    %300 = vmatpush2.msra.mxu0 0.0
    %301 = vmatprep.subr.mxu0 0.0
    %302 = vmatpush2.msra.mxu0 0.0
    %303 = vmatprep.subr.mxu0 0.0
    %304 = vmatpush2.msra.mxu0 0.0
    %305 = vmatprep.subr.mxu0 0.0
    %306 = vmatpush2.msra.mxu0 0.0
    %307 = vmatprep.subr.mxu0 0.0
    %308 = vmatpush2.msra.mxu0 0.0
    %309 = vmatprep.subr.mxu0 0.0
    %310 = vmatpush2.msra.mxu0 0.0
    %311 = vmatprep.subr.mxu0 0.0
    %312 = vmatpush2.msra.mxu0 0.0
    %313 = vmatprep.subr.mxu0 0.0
    %314 = vmatpush2.msra.mxu0 0.0
    %315 = vmatprep.subr.mxu0 0.0
    %316 = vmatpush2.msra.mxu0 0.0
    %317 = vmatprep.subr.mxu0 0.0
    %318 = vmatpush2.msra.mxu0 0.0
    %319 = vmatprep.subr.mxu0 0.0
    %320 = vmatpush2.msra.mxu0 0.0
    %321 = vmatprep.subr.mxu0 0.0
    %322 = vmatpush2.msra.mxu0 0.0
    %323 = vmatprep.subr.mxu0 0.0
    %324 = vmatpush2.msra.mxu0 0.0
    %325 = vmatprep.subr.mxu0 0.0
    %326 = vmatpush2.msra.mxu0 0.0
    %327 = vmatprep.subr.mxu0 0.0
    %328 = vmatpush2.msra.mxu0 0.0
    %329 = vmatprep.mubr.f32.mxu0 0.0
    %330 = vmatmul.mubr.f32.gmra.mxu0 %v263
    %v331 = vpop.f32.mrf.mxu0
    %v332 = vadd.f32 0.0, %v331
    %v333 = vpop.f32.mrf.mxu0
    %334 = vdwg.mxu0
    %335 = vrot.lane.b32.xlu0 %v80, 112
    %v336 = vpop.permute.xlu0 %335
    %v337 = vsel %vm155, %v336, 0
    %339 = vmatprep.subr.mxu0 0.0
    %340 = vmatpush1.msra.mxu0 0.0
    %341 = vmatprep.subr.mxu0 0.0
    %342 = vmatpush1.msra.mxu0 0.0
    %343 = vmatprep.subr.mxu0 0.0
    %344 = vmatpush1.msra.mxu0 0.0
    %345 = vmatprep.subr.mxu0 0.0
    %346 = vmatpush1.msra.mxu0 0.0
    %347 = vmatprep.subr.mxu0 0.0
    %348 = vmatpush1.msra.mxu0 0.0
    %349 = vmatprep.subr.mxu0 0.0
    %350 = vmatpush1.msra.mxu0 0.0
    %351 = vmatprep.subr.mxu0 0.0
    %352 = vmatpush1.msra.mxu0 0.0
    %353 = vmatprep.subr.mxu0 0.0
    %354 = vmatpush1.msra.mxu0 0.0
    %355 = vmatprep.subr.mxu0 0.0
    %356 = vmatpush1.msra.mxu0 0.0
    %357 = vmatprep.subr.mxu0 0.0
    %358 = vmatpush1.msra.mxu0 0.0
    %359 = vmatprep.subr.mxu0 0.0
    %360 = vmatpush1.msra.mxu0 0.0
    %361 = vmatprep.subr.mxu0 0.0
    %362 = vmatpush1.msra.mxu0 0.0
    %363 = vmatprep.subr.mxu0 0.0
    %364 = vmatpush1.msra.mxu0 0.0
    %365 = vmatprep.subr.mxu0 0.0
    %366 = vmatpush1.msra.mxu0 0.0
    %367 = vmatprep.subr.mxu0 0.0
    %368 = vmatpush1.msra.mxu0 %v62
    %369 = vmatprep.subr.mxu0 0.0
    %370 = vmatpush1.msra.mxu0 %v61
    %371 = vmatprep.subr.mxu0 0.0
    %372 = vmatpush2.msra.mxu0 0.0
    %373 = vmatprep.subr.mxu0 0.0
    %374 = vmatpush2.msra.mxu0 0.0
    %375 = vmatprep.subr.mxu0 0.0
    %376 = vmatpush2.msra.mxu0 0.0
    %377 = vmatprep.subr.mxu0 0.0
    %378 = vmatpush2.msra.mxu0 0.0
    %379 = vmatprep.subr.mxu0 0.0
    %380 = vmatpush2.msra.mxu0 0.0
    %381 = vmatprep.subr.mxu0 0.0
    %382 = vmatpush2.msra.mxu0 0.0
    %383 = vmatprep.subr.mxu0 0.0
    %384 = vmatpush2.msra.mxu0 0.0
    %385 = vmatprep.subr.mxu0 0.0
    %386 = vmatpush2.msra.mxu0 0.0
    %387 = vmatprep.subr.mxu0 0.0
    %388 = vmatpush2.msra.mxu0 0.0
    %389 = vmatprep.subr.mxu0 0.0
    %390 = vmatpush2.msra.mxu0 0.0
    %391 = vmatprep.subr.mxu0 0.0
    %392 = vmatpush2.msra.mxu0 0.0
    %393 = vmatprep.subr.mxu0 0.0
    %394 = vmatpush2.msra.mxu0 0.0
    %395 = vmatprep.subr.mxu0 0.0
    %396 = vmatpush2.msra.mxu0 0.0
    %397 = vmatprep.subr.mxu0 0.0
    %398 = vmatpush2.msra.mxu0 0.0
    %399 = vmatprep.subr.mxu0 0.0
    %400 = vmatpush2.msra.mxu0 0.0
    %401 = vmatprep.subr.mxu0 0.0
    %402 = vmatpush2.msra.mxu0 0.0
    %403 = vmatprep.mubr.f32.mxu0 0.0
    %404 = vmatmul.mubr.f32.gmra.mxu0 %v337
    %v405 = vpop.f32.mrf.mxu0
    %v406 = vadd.f32 %v332, %v405
    %v407 = vpop.f32.mrf.mxu0
    %408 = vdwg.mxu0
    %v409 = vadd.f32 %v406, %v233
    %v410 = vxor.u32 %v409, 2147483648
    %v411 = vmul.f32 %v410, 1.442695
    %v412 = vpow.pop %v411
    %v413 = vadd.f32 %v412, 1.0
    %v414 = vrcp.pop %v413
    %v415 = vmul.f32 1.0, %v414
    %v416 = vtanh.pop %v409
    %v417 = vmul.f32 %v415, %v253
    %419 = vrot.lane.b32.xlu0 %v416, 64
    %v420 = vpop.permute.xlu0 %419
    %v422 = vmul.f32 %v415, %v420
    %424 = vrot.lane.b32.xlu0 %v422, 32
    %v425 = vpop.permute.xlu0 %424
    %v427 = vadd.f32 %v417, %v425
    %v428 = vtanh.pop %v427
    %430 = vrot.lane.b32.xlu0 %v428, 64
    %v431 = vpop.permute.xlu0 %430
    %v433 = vmul.f32 %v415, %v431
    %435 = vrot.lane.b32.xlu0 %v433, 32
    %v436 = vpop.permute.xlu0 %435
    %v437 = vsel %vm81, %v436, 0
    %439 = vmatprep.subr.mxu0 0.0
    %440 = vmatpush1.msra.mxu0 0.0
    %441 = vmatprep.subr.mxu0 0.0
    %442 = vmatpush1.msra.mxu0 0.0
    %443 = vmatprep.subr.mxu0 0.0
    %444 = vmatpush1.msra.mxu0 0.0
    %445 = vmatprep.subr.mxu0 0.0
    %446 = vmatpush1.msra.mxu0 0.0
    %447 = vmatprep.subr.mxu0 0.0
    %448 = vmatpush1.msra.mxu0 0.0
    %449 = vmatprep.subr.mxu0 0.0
    %450 = vmatpush1.msra.mxu0 0.0
    %451 = vmatprep.subr.mxu0 0.0
    %452 = vmatpush1.msra.mxu0 0.0
    %453 = vmatprep.subr.mxu0 0.0
    %454 = vmatpush1.msra.mxu0 0.0
    %455 = vmatprep.subr.mxu0 0.0
    %456 = vmatpush1.msra.mxu0 0.0
    %457 = vmatprep.subr.mxu0 0.0
    %458 = vmatpush1.msra.mxu0 0.0
    %459 = vmatprep.subr.mxu0 0.0
    %460 = vmatpush1.msra.mxu0 0.0
    %461 = vmatprep.subr.mxu0 0.0
    %462 = vmatpush1.msra.mxu0 0.0
    %463 = vmatprep.subr.mxu0 0.0
    %464 = vmatpush1.msra.mxu0 %v66
    %465 = vmatprep.subr.mxu0 0.0
    %466 = vmatpush1.msra.mxu0 %v65
    %467 = vmatprep.subr.mxu0 0.0
    %468 = vmatpush1.msra.mxu0 %v64
    %469 = vmatprep.subr.mxu0 0.0
    %470 = vmatpush1.msra.mxu0 %v63
    %471 = vmatprep.subr.mxu0 0.0
    %472 = vmatpush2.msra.mxu0 0.0
    %473 = vmatprep.subr.mxu0 0.0
    %474 = vmatpush2.msra.mxu0 0.0
    %475 = vmatprep.subr.mxu0 0.0
    %476 = vmatpush2.msra.mxu0 0.0
    %477 = vmatprep.subr.mxu0 0.0
    %478 = vmatpush2.msra.mxu0 0.0
    %479 = vmatprep.subr.mxu0 0.0
    %480 = vmatpush2.msra.mxu0 0.0
    %481 = vmatprep.subr.mxu0 0.0
    %482 = vmatpush2.msra.mxu0 0.0
    %483 = vmatprep.subr.mxu0 0.0
    %484 = vmatpush2.msra.mxu0 0.0
    %485 = vmatprep.subr.mxu0 0.0
    %486 = vmatpush2.msra.mxu0 0.0
    %487 = vmatprep.subr.mxu0 0.0
    %488 = vmatpush2.msra.mxu0 0.0
    %489 = vmatprep.subr.mxu0 0.0
    %490 = vmatpush2.msra.mxu0 0.0
    %491 = vmatprep.subr.mxu0 0.0
    %492 = vmatpush2.msra.mxu0 0.0
    %493 = vmatprep.subr.mxu0 0.0
    %494 = vmatpush2.msra.mxu0 0.0
    %495 = vmatprep.subr.mxu0 0.0
    %496 = vmatpush2.msra.mxu0 0.0
    %497 = vmatprep.subr.mxu0 0.0
    %498 = vmatpush2.msra.mxu0 0.0
    %499 = vmatprep.subr.mxu0 0.0
    %500 = vmatpush2.msra.mxu0 0.0
    %501 = vmatprep.subr.mxu0 0.0
    %502 = vmatpush2.msra.mxu0 0.0
    %503 = vmatprep.mubr.f32.mxu0 0.0
    %504 = vmatmul.mubr.f32.gmra.mxu0 %v437
    %v505 = vpop.f32.mrf.mxu0
    %v506 = vadd.f32 0.0, %v505
    %v507 = vpop.f32.mrf.mxu0
    %508 = vdwg.mxu0
    %509 = vrot.lane.b32.xlu0 %v80, 96
    %v510 = vpop.permute.xlu0 %509
    %v511 = vsel %vm155, %v510, 0
    %513 = vmatprep.subr.mxu0 0.0
    %514 = vmatpush1.msra.mxu0 0.0
    %515 = vmatprep.subr.mxu0 0.0
    %516 = vmatpush1.msra.mxu0 0.0
    %517 = vmatprep.subr.mxu0 0.0
    %518 = vmatpush1.msra.mxu0 0.0
    %519 = vmatprep.subr.mxu0 0.0
    %520 = vmatpush1.msra.mxu0 0.0
    %521 = vmatprep.subr.mxu0 0.0
    %522 = vmatpush1.msra.mxu0 0.0
    %523 = vmatprep.subr.mxu0 0.0
    %524 = vmatpush1.msra.mxu0 0.0
    %525 = vmatprep.subr.mxu0 0.0
    %526 = vmatpush1.msra.mxu0 0.0
    %527 = vmatprep.subr.mxu0 0.0
    %528 = vmatpush1.msra.mxu0 0.0
    %529 = vmatprep.subr.mxu0 0.0
    %530 = vmatpush1.msra.mxu0 0.0
    %531 = vmatprep.subr.mxu0 0.0
    %532 = vmatpush1.msra.mxu0 0.0
    %533 = vmatprep.subr.mxu0 0.0
    %534 = vmatpush1.msra.mxu0 0.0
    %535 = vmatprep.subr.mxu0 0.0
    %536 = vmatpush1.msra.mxu0 0.0
    %537 = vmatprep.subr.mxu0 0.0
    %538 = vmatpush1.msra.mxu0 0.0
    %539 = vmatprep.subr.mxu0 0.0
    %540 = vmatpush1.msra.mxu0 0.0
    %541 = vmatprep.subr.mxu0 0.0
    %542 = vmatpush1.msra.mxu0 %v62
    %543 = vmatprep.subr.mxu0 0.0
    %544 = vmatpush1.msra.mxu0 %v61
    %545 = vmatprep.subr.mxu0 0.0
    %546 = vmatpush2.msra.mxu0 0.0
    %547 = vmatprep.subr.mxu0 0.0
    %548 = vmatpush2.msra.mxu0 0.0
    %549 = vmatprep.subr.mxu0 0.0
    %550 = vmatpush2.msra.mxu0 0.0
    %551 = vmatprep.subr.mxu0 0.0
    %552 = vmatpush2.msra.mxu0 0.0
    %553 = vmatprep.subr.mxu0 0.0
    %554 = vmatpush2.msra.mxu0 0.0
    %555 = vmatprep.subr.mxu0 0.0
    %556 = vmatpush2.msra.mxu0 0.0
    %557 = vmatprep.subr.mxu0 0.0
    %558 = vmatpush2.msra.mxu0 0.0
    %559 = vmatprep.subr.mxu0 0.0
    %560 = vmatpush2.msra.mxu0 0.0
    %561 = vmatprep.subr.mxu0 0.0
    %562 = vmatpush2.msra.mxu0 0.0
    %563 = vmatprep.subr.mxu0 0.0
    %564 = vmatpush2.msra.mxu0 0.0
    %565 = vmatprep.subr.mxu0 0.0
    %566 = vmatpush2.msra.mxu0 0.0
    %567 = vmatprep.subr.mxu0 0.0
    %568 = vmatpush2.msra.mxu0 0.0
    %569 = vmatprep.subr.mxu0 0.0
    %570 = vmatpush2.msra.mxu0 0.0
    %571 = vmatprep.subr.mxu0 0.0
    %572 = vmatpush2.msra.mxu0 0.0
    %573 = vmatprep.subr.mxu0 0.0
    %574 = vmatpush2.msra.mxu0 0.0
    %575 = vmatprep.subr.mxu0 0.0
    %576 = vmatpush2.msra.mxu0 0.0
    %577 = vmatprep.mubr.f32.mxu0 0.0
    %578 = vmatmul.mubr.f32.gmra.mxu0 %v511
    %v579 = vpop.f32.mrf.mxu0
    %v580 = vadd.f32 %v506, %v579
    %v581 = vpop.f32.mrf.mxu0
    %582 = vdwg.mxu0
    %v583 = vadd.f32 %v580, %v233
    %v584 = vxor.u32 %v583, 2147483648
    %v585 = vmul.f32 %v584, 1.442695
    %v586 = vpow.pop %v585
    %v587 = vadd.f32 %v586, 1.0
    %v588 = vrcp.pop %v587
    %v589 = vmul.f32 1.0, %v588
    %v590 = vtanh.pop %v583
    %v591 = vmul.f32 %v589, %v427
    %593 = vrot.lane.b32.xlu0 %v590, 64
    %v594 = vpop.permute.xlu0 %593
    %v596 = vmul.f32 %v589, %v594
    %598 = vrot.lane.b32.xlu0 %v596, 32
    %v599 = vpop.permute.xlu0 %598
    %v601 = vadd.f32 %v591, %v599
    %v602 = vtanh.pop %v601
    %604 = vrot.lane.b32.xlu0 %v602, 64
    %v605 = vpop.permute.xlu0 %604
    %v607 = vmul.f32 %v589, %v605
    %609 = vrot.lane.b32.xlu0 %v607, 32
    %v610 = vpop.permute.xlu0 %609
    %v611 = vsel %vm81, %v610, 0
    %613 = vmatprep.subr.mxu0 0.0
    %614 = vmatpush1.msra.mxu0 0.0
    %615 = vmatprep.subr.mxu0 0.0
    %616 = vmatpush1.msra.mxu0 0.0
    %617 = vmatprep.subr.mxu0 0.0
    %618 = vmatpush1.msra.mxu0 0.0
    %619 = vmatprep.subr.mxu0 0.0
    %620 = vmatpush1.msra.mxu0 0.0
    %621 = vmatprep.subr.mxu0 0.0
    %622 = vmatpush1.msra.mxu0 0.0
    %623 = vmatprep.subr.mxu0 0.0
    %624 = vmatpush1.msra.mxu0 0.0
    %625 = vmatprep.subr.mxu0 0.0
    %626 = vmatpush1.msra.mxu0 0.0
    %627 = vmatprep.subr.mxu0 0.0
    %628 = vmatpush1.msra.mxu0 0.0
    %629 = vmatprep.subr.mxu0 0.0
    %630 = vmatpush1.msra.mxu0 0.0
    %631 = vmatprep.subr.mxu0 0.0
    %632 = vmatpush1.msra.mxu0 0.0
    %633 = vmatprep.subr.mxu0 0.0
    %634 = vmatpush1.msra.mxu0 0.0
    %635 = vmatprep.subr.mxu0 0.0
    %636 = vmatpush1.msra.mxu0 0.0
    %637 = vmatprep.subr.mxu0 0.0
    %638 = vmatpush1.msra.mxu0 %v66
    %639 = vmatprep.subr.mxu0 0.0
    %640 = vmatpush1.msra.mxu0 %v65
    %641 = vmatprep.subr.mxu0 0.0
    %642 = vmatpush1.msra.mxu0 %v64
    %643 = vmatprep.subr.mxu0 0.0
    %644 = vmatpush1.msra.mxu0 %v63
    %645 = vmatprep.subr.mxu0 0.0
    %646 = vmatpush2.msra.mxu0 0.0
    %647 = vmatprep.subr.mxu0 0.0
    %648 = vmatpush2.msra.mxu0 0.0
    %649 = vmatprep.subr.mxu0 0.0
    %650 = vmatpush2.msra.mxu0 0.0
    %651 = vmatprep.subr.mxu0 0.0
    %652 = vmatpush2.msra.mxu0 0.0
    %653 = vmatprep.subr.mxu0 0.0
    %654 = vmatpush2.msra.mxu0 0.0
    %655 = vmatprep.subr.mxu0 0.0
    %656 = vmatpush2.msra.mxu0 0.0
    %657 = vmatprep.subr.mxu0 0.0
    %658 = vmatpush2.msra.mxu0 0.0
    %659 = vmatprep.subr.mxu0 0.0
    %660 = vmatpush2.msra.mxu0 0.0
    %661 = vmatprep.subr.mxu0 0.0
    %662 = vmatpush2.msra.mxu0 0.0
    %663 = vmatprep.subr.mxu0 0.0
    %664 = vmatpush2.msra.mxu0 0.0
    %665 = vmatprep.subr.mxu0 0.0
    %666 = vmatpush2.msra.mxu0 0.0
    %667 = vmatprep.subr.mxu0 0.0
    %668 = vmatpush2.msra.mxu0 0.0
    %669 = vmatprep.subr.mxu0 0.0
    %670 = vmatpush2.msra.mxu0 0.0
    %671 = vmatprep.subr.mxu0 0.0
    %672 = vmatpush2.msra.mxu0 0.0
    %673 = vmatprep.subr.mxu0 0.0
    %674 = vmatpush2.msra.mxu0 0.0
    %675 = vmatprep.subr.mxu0 0.0
    %676 = vmatpush2.msra.mxu0 0.0
    %677 = vmatprep.mubr.f32.mxu0 0.0
    %678 = vmatmul.mubr.f32.gmra.mxu0 %v611
    %v679 = vpop.f32.mrf.mxu0
    %v680 = vadd.f32 0.0, %v679
    %v681 = vpop.f32.mrf.mxu0
    %682 = vdwg.mxu0
    %683 = vrot.lane.b32.xlu0 %v80, 80
    %v684 = vpop.permute.xlu0 %683
    %v685 = vsel %vm155, %v684, 0
    %687 = vmatprep.subr.mxu0 0.0
    %688 = vmatpush1.msra.mxu0 0.0
    %689 = vmatprep.subr.mxu0 0.0
    %690 = vmatpush1.msra.mxu0 0.0
    %691 = vmatprep.subr.mxu0 0.0
    %692 = vmatpush1.msra.mxu0 0.0
    %693 = vmatprep.subr.mxu0 0.0
    %694 = vmatpush1.msra.mxu0 0.0
    %695 = vmatprep.subr.mxu0 0.0
    %696 = vmatpush1.msra.mxu0 0.0
    %697 = vmatprep.subr.mxu0 0.0
    %698 = vmatpush1.msra.mxu0 0.0
    %699 = vmatprep.subr.mxu0 0.0
    %700 = vmatpush1.msra.mxu0 0.0
    %701 = vmatprep.subr.mxu0 0.0
    %702 = vmatpush1.msra.mxu0 0.0
    %703 = vmatprep.subr.mxu0 0.0
    %704 = vmatpush1.msra.mxu0 0.0
    %705 = vmatprep.subr.mxu0 0.0
    %706 = vmatpush1.msra.mxu0 0.0
    %707 = vmatprep.subr.mxu0 0.0
    %708 = vmatpush1.msra.mxu0 0.0
    %709 = vmatprep.subr.mxu0 0.0
    %710 = vmatpush1.msra.mxu0 0.0
    %711 = vmatprep.subr.mxu0 0.0
    %712 = vmatpush1.msra.mxu0 0.0
    %713 = vmatprep.subr.mxu0 0.0
    %714 = vmatpush1.msra.mxu0 0.0
    %715 = vmatprep.subr.mxu0 0.0
    %716 = vmatpush1.msra.mxu0 %v62
    %717 = vmatprep.subr.mxu0 0.0
    %718 = vmatpush1.msra.mxu0 %v61
    %719 = vmatprep.subr.mxu0 0.0
    %720 = vmatpush2.msra.mxu0 0.0
    %721 = vmatprep.subr.mxu0 0.0
    %722 = vmatpush2.msra.mxu0 0.0
    %723 = vmatprep.subr.mxu0 0.0
    %724 = vmatpush2.msra.mxu0 0.0
    %725 = vmatprep.subr.mxu0 0.0
    %726 = vmatpush2.msra.mxu0 0.0
    %727 = vmatprep.subr.mxu0 0.0
    %728 = vmatpush2.msra.mxu0 0.0
    %729 = vmatprep.subr.mxu0 0.0
    %730 = vmatpush2.msra.mxu0 0.0
    %731 = vmatprep.subr.mxu0 0.0
    %732 = vmatpush2.msra.mxu0 0.0
    %733 = vmatprep.subr.mxu0 0.0
    %734 = vmatpush2.msra.mxu0 0.0
    %735 = vmatprep.subr.mxu0 0.0
    %736 = vmatpush2.msra.mxu0 0.0
    %737 = vmatprep.subr.mxu0 0.0
    %738 = vmatpush2.msra.mxu0 0.0
    %739 = vmatprep.subr.mxu0 0.0
    %740 = vmatpush2.msra.mxu0 0.0
    %741 = vmatprep.subr.mxu0 0.0
    %742 = vmatpush2.msra.mxu0 0.0
    %743 = vmatprep.subr.mxu0 0.0
    %744 = vmatpush2.msra.mxu0 0.0
    %745 = vmatprep.subr.mxu0 0.0
    %746 = vmatpush2.msra.mxu0 0.0
    %747 = vmatprep.subr.mxu0 0.0
    %748 = vmatpush2.msra.mxu0 0.0
    %749 = vmatprep.subr.mxu0 0.0
    %750 = vmatpush2.msra.mxu0 0.0
    %751 = vmatprep.mubr.f32.mxu0 0.0
    %752 = vmatmul.mubr.f32.gmra.mxu0 %v685
    %v753 = vpop.f32.mrf.mxu0
    %v754 = vadd.f32 %v680, %v753
    %v755 = vpop.f32.mrf.mxu0
    %756 = vdwg.mxu0
    %v757 = vadd.f32 %v754, %v233
    %v758 = vxor.u32 %v757, 2147483648
    %v759 = vmul.f32 %v758, 1.442695
    %v760 = vpow.pop %v759
    %v761 = vadd.f32 %v760, 1.0
    %v762 = vrcp.pop %v761
    %v763 = vmul.f32 1.0, %v762
    %v764 = vtanh.pop %v757
    %v765 = vmul.f32 %v763, %v601
    %767 = vrot.lane.b32.xlu0 %v764, 64
    %v768 = vpop.permute.xlu0 %767
    %v770 = vmul.f32 %v763, %v768
    %772 = vrot.lane.b32.xlu0 %v770, 32
    %v773 = vpop.permute.xlu0 %772
    %v775 = vadd.f32 %v765, %v773
    %v776 = vtanh.pop %v775
    %778 = vrot.lane.b32.xlu0 %v776, 64
    %v779 = vpop.permute.xlu0 %778
    %v781 = vmul.f32 %v763, %v779
    %783 = vrot.lane.b32.xlu0 %v781, 32
    %v784 = vpop.permute.xlu0 %783
    %v785 = vsel %vm81, %v784, 0
    %787 = vmatprep.subr.mxu0 0.0
    %788 = vmatpush1.msra.mxu0 0.0
    %789 = vmatprep.subr.mxu0 0.0
    %790 = vmatpush1.msra.mxu0 0.0
    %791 = vmatprep.subr.mxu0 0.0
    %792 = vmatpush1.msra.mxu0 0.0
    %793 = vmatprep.subr.mxu0 0.0
    %794 = vmatpush1.msra.mxu0 0.0
    %795 = vmatprep.subr.mxu0 0.0
    %796 = vmatpush1.msra.mxu0 0.0
    %797 = vmatprep.subr.mxu0 0.0
    %798 = vmatpush1.msra.mxu0 0.0
    %799 = vmatprep.subr.mxu0 0.0
    %800 = vmatpush1.msra.mxu0 0.0
    %801 = vmatprep.subr.mxu0 0.0
    %802 = vmatpush1.msra.mxu0 0.0
    %803 = vmatprep.subr.mxu0 0.0
    %804 = vmatpush1.msra.mxu0 0.0
    %805 = vmatprep.subr.mxu0 0.0
    %806 = vmatpush1.msra.mxu0 0.0
    %807 = vmatprep.subr.mxu0 0.0
    %808 = vmatpush1.msra.mxu0 0.0
    %809 = vmatprep.subr.mxu0 0.0
    %810 = vmatpush1.msra.mxu0 0.0
    %811 = vmatprep.subr.mxu0 0.0
    %812 = vmatpush1.msra.mxu0 %v66
    %813 = vmatprep.subr.mxu0 0.0
    %814 = vmatpush1.msra.mxu0 %v65
    %815 = vmatprep.subr.mxu0 0.0
    %816 = vmatpush1.msra.mxu0 %v64
    %817 = vmatprep.subr.mxu0 0.0
    %818 = vmatpush1.msra.mxu0 %v63
    %819 = vmatprep.subr.mxu0 0.0
    %820 = vmatpush2.msra.mxu0 0.0
    %821 = vmatprep.subr.mxu0 0.0
    %822 = vmatpush2.msra.mxu0 0.0
    %823 = vmatprep.subr.mxu0 0.0
    %824 = vmatpush2.msra.mxu0 0.0
    %825 = vmatprep.subr.mxu0 0.0
    %826 = vmatpush2.msra.mxu0 0.0
    %827 = vmatprep.subr.mxu0 0.0
    %828 = vmatpush2.msra.mxu0 0.0
    %829 = vmatprep.subr.mxu0 0.0
    %830 = vmatpush2.msra.mxu0 0.0
    %831 = vmatprep.subr.mxu0 0.0
    %832 = vmatpush2.msra.mxu0 0.0
    %833 = vmatprep.subr.mxu0 0.0
    %834 = vmatpush2.msra.mxu0 0.0
    %835 = vmatprep.subr.mxu0 0.0
    %836 = vmatpush2.msra.mxu0 0.0
    %837 = vmatprep.subr.mxu0 0.0
    %838 = vmatpush2.msra.mxu0 0.0
    %839 = vmatprep.subr.mxu0 0.0
    %840 = vmatpush2.msra.mxu0 0.0
    %841 = vmatprep.subr.mxu0 0.0
    %842 = vmatpush2.msra.mxu0 0.0
    %843 = vmatprep.subr.mxu0 0.0
    %844 = vmatpush2.msra.mxu0 0.0
    %845 = vmatprep.subr.mxu0 0.0
    %846 = vmatpush2.msra.mxu0 0.0
    %847 = vmatprep.subr.mxu0 0.0
    %848 = vmatpush2.msra.mxu0 0.0
    %849 = vmatprep.subr.mxu0 0.0
    %850 = vmatpush2.msra.mxu0 0.0
    %851 = vmatprep.mubr.f32.mxu0 0.0
    %852 = vmatmul.mubr.f32.gmra.mxu0 %v785
    %v853 = vpop.f32.mrf.mxu0
    %v854 = vadd.f32 0.0, %v853
    %v855 = vpop.f32.mrf.mxu0
    %856 = vdwg.mxu0
    %857 = vrot.lane.b32.xlu0 %v80, 64
    %v858 = vpop.permute.xlu0 %857
    %v859 = vsel %vm155, %v858, 0
    %861 = vmatprep.subr.mxu0 0.0
    %862 = vmatpush1.msra.mxu0 0.0
    %863 = vmatprep.subr.mxu0 0.0
    %864 = vmatpush1.msra.mxu0 0.0
    %865 = vmatprep.subr.mxu0 0.0
    %866 = vmatpush1.msra.mxu0 0.0
    %867 = vmatprep.subr.mxu0 0.0
    %868 = vmatpush1.msra.mxu0 0.0
    %869 = vmatprep.subr.mxu0 0.0
    %870 = vmatpush1.msra.mxu0 0.0
    %871 = vmatprep.subr.mxu0 0.0
    %872 = vmatpush1.msra.mxu0 0.0
    %873 = vmatprep.subr.mxu0 0.0
    %874 = vmatpush1.msra.mxu0 0.0
    %875 = vmatprep.subr.mxu0 0.0
    %876 = vmatpush1.msra.mxu0 0.0
    %877 = vmatprep.subr.mxu0 0.0
    %878 = vmatpush1.msra.mxu0 0.0
    %879 = vmatprep.subr.mxu0 0.0
    %880 = vmatpush1.msra.mxu0 0.0
    %881 = vmatprep.subr.mxu0 0.0
    %882 = vmatpush1.msra.mxu0 0.0
    %883 = vmatprep.subr.mxu0 0.0
    %884 = vmatpush1.msra.mxu0 0.0
    %885 = vmatprep.subr.mxu0 0.0
    %886 = vmatpush1.msra.mxu0 0.0
    %887 = vmatprep.subr.mxu0 0.0
    %888 = vmatpush1.msra.mxu0 0.0
    %889 = vmatprep.subr.mxu0 0.0
    %890 = vmatpush1.msra.mxu0 %v62
    %891 = vmatprep.subr.mxu0 0.0
    %892 = vmatpush1.msra.mxu0 %v61
    %893 = vmatprep.subr.mxu0 0.0
    %894 = vmatpush2.msra.mxu0 0.0
    %895 = vmatprep.subr.mxu0 0.0
    %896 = vmatpush2.msra.mxu0 0.0
    %897 = vmatprep.subr.mxu0 0.0
    %898 = vmatpush2.msra.mxu0 0.0
    %899 = vmatprep.subr.mxu0 0.0
    %900 = vmatpush2.msra.mxu0 0.0
    %901 = vmatprep.subr.mxu0 0.0
    %902 = vmatpush2.msra.mxu0 0.0
    %903 = vmatprep.subr.mxu0 0.0
    %904 = vmatpush2.msra.mxu0 0.0
    %905 = vmatprep.subr.mxu0 0.0
    %906 = vmatpush2.msra.mxu0 0.0
    %907 = vmatprep.subr.mxu0 0.0
    %908 = vmatpush2.msra.mxu0 0.0
    %909 = vmatprep.subr.mxu0 0.0
    %910 = vmatpush2.msra.mxu0 0.0
    %911 = vmatprep.subr.mxu0 0.0
    %912 = vmatpush2.msra.mxu0 0.0
    %913 = vmatprep.subr.mxu0 0.0
    %914 = vmatpush2.msra.mxu0 0.0
    %915 = vmatprep.subr.mxu0 0.0
    %916 = vmatpush2.msra.mxu0 0.0
    %917 = vmatprep.subr.mxu0 0.0
    %918 = vmatpush2.msra.mxu0 0.0
    %919 = vmatprep.subr.mxu0 0.0
    %920 = vmatpush2.msra.mxu0 0.0
    %921 = vmatprep.subr.mxu0 0.0
    %922 = vmatpush2.msra.mxu0 0.0
    %923 = vmatprep.subr.mxu0 0.0
    %924 = vmatpush2.msra.mxu0 0.0
    %925 = vmatprep.mubr.f32.mxu0 0.0
    %926 = vmatmul.mubr.f32.gmra.mxu0 %v859
    %v927 = vpop.f32.mrf.mxu0
    %v928 = vadd.f32 %v854, %v927
    %v929 = vpop.f32.mrf.mxu0
    %930 = vdwg.mxu0
    %v931 = vadd.f32 %v928, %v233
    %v932 = vxor.u32 %v931, 2147483648
    %v933 = vmul.f32 %v932, 1.442695
    %v934 = vpow.pop %v933
    %v935 = vadd.f32 %v934, 1.0
    %v936 = vrcp.pop %v935
    %v937 = vmul.f32 1.0, %v936
    %v938 = vtanh.pop %v931
    %v939 = vmul.f32 %v937, %v775
    %941 = vrot.lane.b32.xlu0 %v938, 64
    %v942 = vpop.permute.xlu0 %941
    %v944 = vmul.f32 %v937, %v942
    %946 = vrot.lane.b32.xlu0 %v944, 32
    %v947 = vpop.permute.xlu0 %946
    %v949 = vadd.f32 %v939, %v947
    %v950 = vtanh.pop %v949
    %952 = vrot.lane.b32.xlu0 %v950, 64
    %v953 = vpop.permute.xlu0 %952
    %v955 = vmul.f32 %v937, %v953
    %957 = vrot.lane.b32.xlu0 %v955, 32
    %v958 = vpop.permute.xlu0 %957
    %v959 = vsel %vm81, %v958, 0
    %961 = vmatprep.subr.mxu0 0.0
    %962 = vmatpush1.msra.mxu0 0.0
    %963 = vmatprep.subr.mxu0 0.0
    %964 = vmatpush1.msra.mxu0 0.0
    %965 = vmatprep.subr.mxu0 0.0
    %966 = vmatpush1.msra.mxu0 0.0
    %967 = vmatprep.subr.mxu0 0.0
    %968 = vmatpush1.msra.mxu0 0.0
    %969 = vmatprep.subr.mxu0 0.0
    %970 = vmatpush1.msra.mxu0 0.0
    %971 = vmatprep.subr.mxu0 0.0
    %972 = vmatpush1.msra.mxu0 0.0
    %973 = vmatprep.subr.mxu0 0.0
    %974 = vmatpush1.msra.mxu0 0.0
    %975 = vmatprep.subr.mxu0 0.0
    %976 = vmatpush1.msra.mxu0 0.0
    %977 = vmatprep.subr.mxu0 0.0
    %978 = vmatpush1.msra.mxu0 0.0
    %979 = vmatprep.subr.mxu0 0.0
    %980 = vmatpush1.msra.mxu0 0.0
    %981 = vmatprep.subr.mxu0 0.0
    %982 = vmatpush1.msra.mxu0 0.0
    %983 = vmatprep.subr.mxu0 0.0
    %984 = vmatpush1.msra.mxu0 0.0
    %985 = vmatprep.subr.mxu0 0.0
    %986 = vmatpush1.msra.mxu0 %v66
    %987 = vmatprep.subr.mxu0 0.0
    %988 = vmatpush1.msra.mxu0 %v65
    %989 = vmatprep.subr.mxu0 0.0
    %990 = vmatpush1.msra.mxu0 %v64
    %991 = vmatprep.subr.mxu0 0.0
    %992 = vmatpush1.msra.mxu0 %v63
    %993 = vmatprep.subr.mxu0 0.0
    %994 = vmatpush2.msra.mxu0 0.0
    %995 = vmatprep.subr.mxu0 0.0
    %996 = vmatpush2.msra.mxu0 0.0
    %997 = vmatprep.subr.mxu0 0.0
    %998 = vmatpush2.msra.mxu0 0.0
    %999 = vmatprep.subr.mxu0 0.0
    %1000 = vmatpush2.msra.mxu0 0.0
    %1001 = vmatprep.subr.mxu0 0.0
    %1002 = vmatpush2.msra.mxu0 0.0
    %1003 = vmatprep.subr.mxu0 0.0
    %1004 = vmatpush2.msra.mxu0 0.0
    %1005 = vmatprep.subr.mxu0 0.0
    %1006 = vmatpush2.msra.mxu0 0.0
    %1007 = vmatprep.subr.mxu0 0.0
    %1008 = vmatpush2.msra.mxu0 0.0
    %1009 = vmatprep.subr.mxu0 0.0
    %1010 = vmatpush2.msra.mxu0 0.0
    %1011 = vmatprep.subr.mxu0 0.0
    %1012 = vmatpush2.msra.mxu0 0.0
    %1013 = vmatprep.subr.mxu0 0.0
    %1014 = vmatpush2.msra.mxu0 0.0
    %1015 = vmatprep.subr.mxu0 0.0
    %1016 = vmatpush2.msra.mxu0 0.0
    %1017 = vmatprep.subr.mxu0 0.0
    %1018 = vmatpush2.msra.mxu0 0.0
    %1019 = vmatprep.subr.mxu0 0.0
    %1020 = vmatpush2.msra.mxu0 0.0
    %1021 = vmatprep.subr.mxu0 0.0
    %1022 = vmatpush2.msra.mxu0 0.0
    %1023 = vmatprep.subr.mxu0 0.0
    %1024 = vmatpush2.msra.mxu0 0.0
    %1025 = vmatprep.mubr.f32.mxu0 0.0
    %1026 = vmatmul.mubr.f32.gmra.mxu0 %v959
    %v1027 = vpop.f32.mrf.mxu0
    %v1028 = vadd.f32 0.0, %v1027
    %v1029 = vpop.f32.mrf.mxu0
    %1030 = vdwg.mxu0
    %1031 = vrot.lane.b32.xlu0 %v80, 48
    %v1032 = vpop.permute.xlu0 %1031
    %v1033 = vsel %vm155, %v1032, 0
    %1035 = vmatprep.subr.mxu0 0.0
    %1036 = vmatpush1.msra.mxu0 0.0
    %1037 = vmatprep.subr.mxu0 0.0
    %1038 = vmatpush1.msra.mxu0 0.0
    %1039 = vmatprep.subr.mxu0 0.0
    %1040 = vmatpush1.msra.mxu0 0.0
    %1041 = vmatprep.subr.mxu0 0.0
    %1042 = vmatpush1.msra.mxu0 0.0
    %1043 = vmatprep.subr.mxu0 0.0
    %1044 = vmatpush1.msra.mxu0 0.0
    %1045 = vmatprep.subr.mxu0 0.0
    %1046 = vmatpush1.msra.mxu0 0.0
    %1047 = vmatprep.subr.mxu0 0.0
    %1048 = vmatpush1.msra.mxu0 0.0
    %1049 = vmatprep.subr.mxu0 0.0
    %1050 = vmatpush1.msra.mxu0 0.0
    %1051 = vmatprep.subr.mxu0 0.0
    %1052 = vmatpush1.msra.mxu0 0.0
    %1053 = vmatprep.subr.mxu0 0.0
    %1054 = vmatpush1.msra.mxu0 0.0
    %1055 = vmatprep.subr.mxu0 0.0
    %1056 = vmatpush1.msra.mxu0 0.0
    %1057 = vmatprep.subr.mxu0 0.0
    %1058 = vmatpush1.msra.mxu0 0.0
    %1059 = vmatprep.subr.mxu0 0.0
    %1060 = vmatpush1.msra.mxu0 0.0
    %1061 = vmatprep.subr.mxu0 0.0
    %1062 = vmatpush1.msra.mxu0 0.0
    %1063 = vmatprep.subr.mxu0 0.0
    %1064 = vmatpush1.msra.mxu0 %v62
    %1065 = vmatprep.subr.mxu0 0.0
    %1066 = vmatpush1.msra.mxu0 %v61
    %1067 = vmatprep.subr.mxu0 0.0
    %1068 = vmatpush2.msra.mxu0 0.0
    %1069 = vmatprep.subr.mxu0 0.0
    %1070 = vmatpush2.msra.mxu0 0.0
    %1071 = vmatprep.subr.mxu0 0.0
    %1072 = vmatpush2.msra.mxu0 0.0
    %1073 = vmatprep.subr.mxu0 0.0
    %1074 = vmatpush2.msra.mxu0 0.0
    %1075 = vmatprep.subr.mxu0 0.0
    %1076 = vmatpush2.msra.mxu0 0.0
    %1077 = vmatprep.subr.mxu0 0.0
    %1078 = vmatpush2.msra.mxu0 0.0
    %1079 = vmatprep.subr.mxu0 0.0
    %1080 = vmatpush2.msra.mxu0 0.0
    %1081 = vmatprep.subr.mxu0 0.0
    %1082 = vmatpush2.msra.mxu0 0.0
    %1083 = vmatprep.subr.mxu0 0.0
    %1084 = vmatpush2.msra.mxu0 0.0
    %1085 = vmatprep.subr.mxu0 0.0
    %1086 = vmatpush2.msra.mxu0 0.0
    %1087 = vmatprep.subr.mxu0 0.0
    %1088 = vmatpush2.msra.mxu0 0.0
    %1089 = vmatprep.subr.mxu0 0.0
    %1090 = vmatpush2.msra.mxu0 0.0
    %1091 = vmatprep.subr.mxu0 0.0
    %1092 = vmatpush2.msra.mxu0 0.0
    %1093 = vmatprep.subr.mxu0 0.0
    %1094 = vmatpush2.msra.mxu0 0.0
    %1095 = vmatprep.subr.mxu0 0.0
    %1096 = vmatpush2.msra.mxu0 0.0
    %1097 = vmatprep.subr.mxu0 0.0
    %1098 = vmatpush2.msra.mxu0 0.0
    %1099 = vmatprep.mubr.f32.mxu0 0.0
    %1100 = vmatmul.mubr.f32.gmra.mxu0 %v1033
    %v1101 = vpop.f32.mrf.mxu0
    %v1102 = vadd.f32 %v1028, %v1101
    %v1103 = vpop.f32.mrf.mxu0
    %1104 = vdwg.mxu0
    %v1105 = vadd.f32 %v1102, %v233
    %v1106 = vxor.u32 %v1105, 2147483648
    %v1107 = vmul.f32 %v1106, 1.442695
    %v1108 = vpow.pop %v1107
    %v1109 = vadd.f32 %v1108, 1.0
    %v1110 = vrcp.pop %v1109
    %v1111 = vmul.f32 1.0, %v1110
    %v1112 = vtanh.pop %v1105
    %v1113 = vmul.f32 %v1111, %v949
    %1115 = vrot.lane.b32.xlu0 %v1112, 64
    %v1116 = vpop.permute.xlu0 %1115
    %v1118 = vmul.f32 %v1111, %v1116
    %1120 = vrot.lane.b32.xlu0 %v1118, 32
    %v1121 = vpop.permute.xlu0 %1120
    %v1123 = vadd.f32 %v1113, %v1121
    %v1124 = vtanh.pop %v1123
    %1126 = vrot.lane.b32.xlu0 %v1124, 64
    %v1127 = vpop.permute.xlu0 %1126
    %v1129 = vmul.f32 %v1111, %v1127
    %1131 = vrot.lane.b32.xlu0 %v1129, 32
    %v1132 = vpop.permute.xlu0 %1131
    %v1133 = vsel %vm81, %v1132, 0
    %1135 = vmatprep.subr.mxu0 0.0
    %1136 = vmatpush1.msra.mxu0 0.0
    %1137 = vmatprep.subr.mxu0 0.0
    %1138 = vmatpush1.msra.mxu0 0.0
    %1139 = vmatprep.subr.mxu0 0.0
    %1140 = vmatpush1.msra.mxu0 0.0
    %1141 = vmatprep.subr.mxu0 0.0
    %1142 = vmatpush1.msra.mxu0 0.0
    %1143 = vmatprep.subr.mxu0 0.0
    %1144 = vmatpush1.msra.mxu0 0.0
    %1145 = vmatprep.subr.mxu0 0.0
    %1146 = vmatpush1.msra.mxu0 0.0
    %1147 = vmatprep.subr.mxu0 0.0
    %1148 = vmatpush1.msra.mxu0 0.0
    %1149 = vmatprep.subr.mxu0 0.0
    %1150 = vmatpush1.msra.mxu0 0.0
    %1151 = vmatprep.subr.mxu0 0.0
    %1152 = vmatpush1.msra.mxu0 0.0
    %1153 = vmatprep.subr.mxu0 0.0
    %1154 = vmatpush1.msra.mxu0 0.0
    %1155 = vmatprep.subr.mxu0 0.0
    %1156 = vmatpush1.msra.mxu0 0.0
    %1157 = vmatprep.subr.mxu0 0.0
    %1158 = vmatpush1.msra.mxu0 0.0
    %1159 = vmatprep.subr.mxu0 0.0
    %1160 = vmatpush1.msra.mxu0 %v66
    %1161 = vmatprep.subr.mxu0 0.0
    %1162 = vmatpush1.msra.mxu0 %v65
    %1163 = vmatprep.subr.mxu0 0.0
    %1164 = vmatpush1.msra.mxu0 %v64
    %1165 = vmatprep.subr.mxu0 0.0
    %1166 = vmatpush1.msra.mxu0 %v63
    %1167 = vmatprep.subr.mxu0 0.0
    %1168 = vmatpush2.msra.mxu0 0.0
    %1169 = vmatprep.subr.mxu0 0.0
    %1170 = vmatpush2.msra.mxu0 0.0
    %1171 = vmatprep.subr.mxu0 0.0
    %1172 = vmatpush2.msra.mxu0 0.0
    %1173 = vmatprep.subr.mxu0 0.0
    %1174 = vmatpush2.msra.mxu0 0.0
    %1175 = vmatprep.subr.mxu0 0.0
    %1176 = vmatpush2.msra.mxu0 0.0
    %1177 = vmatprep.subr.mxu0 0.0
    %1178 = vmatpush2.msra.mxu0 0.0
    %1179 = vmatprep.subr.mxu0 0.0
    %1180 = vmatpush2.msra.mxu0 0.0
    %1181 = vmatprep.subr.mxu0 0.0
    %1182 = vmatpush2.msra.mxu0 0.0
    %1183 = vmatprep.subr.mxu0 0.0
    %1184 = vmatpush2.msra.mxu0 0.0
    %1185 = vmatprep.subr.mxu0 0.0
    %1186 = vmatpush2.msra.mxu0 0.0
    %1187 = vmatprep.subr.mxu0 0.0
    %1188 = vmatpush2.msra.mxu0 0.0
    %1189 = vmatprep.subr.mxu0 0.0
    %1190 = vmatpush2.msra.mxu0 0.0
    %1191 = vmatprep.subr.mxu0 0.0
    %1192 = vmatpush2.msra.mxu0 0.0
    %1193 = vmatprep.subr.mxu0 0.0
    %1194 = vmatpush2.msra.mxu0 0.0
    %1195 = vmatprep.subr.mxu0 0.0
    %1196 = vmatpush2.msra.mxu0 0.0
    %1197 = vmatprep.subr.mxu0 0.0
    %1198 = vmatpush2.msra.mxu0 0.0
    %1199 = vmatprep.mubr.f32.mxu0 0.0
    %1200 = vmatmul.mubr.f32.gmra.mxu0 %v1133
    %v1201 = vpop.f32.mrf.mxu0
    %v1202 = vadd.f32 0.0, %v1201
    %v1203 = vpop.f32.mrf.mxu0
    %1204 = vdwg.mxu0
    %1205 = vrot.lane.b32.xlu0 %v80, 32
    %v1206 = vpop.permute.xlu0 %1205
    %v1207 = vsel %vm155, %v1206, 0
    %1209 = vmatprep.subr.mxu0 0.0
    %1210 = vmatpush1.msra.mxu0 0.0
    %1211 = vmatprep.subr.mxu0 0.0
    %1212 = vmatpush1.msra.mxu0 0.0
    %1213 = vmatprep.subr.mxu0 0.0
    %1214 = vmatpush1.msra.mxu0 0.0
    %1215 = vmatprep.subr.mxu0 0.0
    %1216 = vmatpush1.msra.mxu0 0.0
    %1217 = vmatprep.subr.mxu0 0.0
    %1218 = vmatpush1.msra.mxu0 0.0
    %1219 = vmatprep.subr.mxu0 0.0
    %1220 = vmatpush1.msra.mxu0 0.0
    %1221 = vmatprep.subr.mxu0 0.0
    %1222 = vmatpush1.msra.mxu0 0.0
    %1223 = vmatprep.subr.mxu0 0.0
    %1224 = vmatpush1.msra.mxu0 0.0
    %1225 = vmatprep.subr.mxu0 0.0
    %1226 = vmatpush1.msra.mxu0 0.0
    %1227 = vmatprep.subr.mxu0 0.0
    %1228 = vmatpush1.msra.mxu0 0.0
    %1229 = vmatprep.subr.mxu0 0.0
    %1230 = vmatpush1.msra.mxu0 0.0
    %1231 = vmatprep.subr.mxu0 0.0
    %1232 = vmatpush1.msra.mxu0 0.0
    %1233 = vmatprep.subr.mxu0 0.0
    %1234 = vmatpush1.msra.mxu0 0.0
    %1235 = vmatprep.subr.mxu0 0.0
    %1236 = vmatpush1.msra.mxu0 0.0
    %1237 = vmatprep.subr.mxu0 0.0
    %1238 = vmatpush1.msra.mxu0 %v62
    %1239 = vmatprep.subr.mxu0 0.0
    %1240 = vmatpush1.msra.mxu0 %v61
    %1241 = vmatprep.subr.mxu0 0.0
    %1242 = vmatpush2.msra.mxu0 0.0
    %1243 = vmatprep.subr.mxu0 0.0
    %1244 = vmatpush2.msra.mxu0 0.0
    %1245 = vmatprep.subr.mxu0 0.0
    %1246 = vmatpush2.msra.mxu0 0.0
    %1247 = vmatprep.subr.mxu0 0.0
    %1248 = vmatpush2.msra.mxu0 0.0
    %1249 = vmatprep.subr.mxu0 0.0
    %1250 = vmatpush2.msra.mxu0 0.0
    %1251 = vmatprep.subr.mxu0 0.0
    %1252 = vmatpush2.msra.mxu0 0.0
    %1253 = vmatprep.subr.mxu0 0.0
    %1254 = vmatpush2.msra.mxu0 0.0
    %1255 = vmatprep.subr.mxu0 0.0
    %1256 = vmatpush2.msra.mxu0 0.0
    %1257 = vmatprep.subr.mxu0 0.0
    %1258 = vmatpush2.msra.mxu0 0.0
    %1259 = vmatprep.subr.mxu0 0.0
    %1260 = vmatpush2.msra.mxu0 0.0
    %1261 = vmatprep.subr.mxu0 0.0
    %1262 = vmatpush2.msra.mxu0 0.0
    %1263 = vmatprep.subr.mxu0 0.0
    %1264 = vmatpush2.msra.mxu0 0.0
    %1265 = vmatprep.subr.mxu0 0.0
    %1266 = vmatpush2.msra.mxu0 0.0
    %1267 = vmatprep.subr.mxu0 0.0
    %1268 = vmatpush2.msra.mxu0 0.0
    %1269 = vmatprep.subr.mxu0 0.0
    %1270 = vmatpush2.msra.mxu0 0.0
    %1271 = vmatprep.subr.mxu0 0.0
    %1272 = vmatpush2.msra.mxu0 0.0
    %1273 = vmatprep.mubr.f32.mxu0 0.0
    %1274 = vmatmul.mubr.f32.gmra.mxu0 %v1207
    %v1275 = vpop.f32.mrf.mxu0
    %v1276 = vadd.f32 %v1202, %v1275
    %v1277 = vpop.f32.mrf.mxu0
    %1278 = vdwg.mxu0
    %v1279 = vadd.f32 %v1276, %v233
    %v1280 = vxor.u32 %v1279, 2147483648
    %v1281 = vmul.f32 %v1280, 1.442695
    %v1282 = vpow.pop %v1281
    %v1283 = vadd.f32 %v1282, 1.0
    %v1284 = vrcp.pop %v1283
    %v1285 = vmul.f32 1.0, %v1284
    %v1286 = vtanh.pop %v1279
    %v1287 = vmul.f32 %v1285, %v1123
    %1289 = vrot.lane.b32.xlu0 %v1286, 64
    %v1290 = vpop.permute.xlu0 %1289
    %v1292 = vmul.f32 %v1285, %v1290
    %1294 = vrot.lane.b32.xlu0 %v1292, 32
    %v1295 = vpop.permute.xlu0 %1294
    %v1297 = vadd.f32 %v1287, %v1295
    %v1298 = vtanh.pop %v1297
    %1300 = vrot.lane.b32.xlu0 %v1298, 64
    %v1301 = vpop.permute.xlu0 %1300
    %v1303 = vmul.f32 %v1285, %v1301
    %1305 = vrot.lane.b32.xlu0 %v1303, 32
    %v1306 = vpop.permute.xlu0 %1305
    %v1307 = vsel %vm81, %v1306, 0
    %1309 = vmatprep.subr.mxu0 0.0
    %1310 = vmatpush1.msra.mxu0 0.0
    %1311 = vmatprep.subr.mxu0 0.0
    %1312 = vmatpush1.msra.mxu0 0.0
    %1313 = vmatprep.subr.mxu0 0.0
    %1314 = vmatpush1.msra.mxu0 0.0
    %1315 = vmatprep.subr.mxu0 0.0
    %1316 = vmatpush1.msra.mxu0 0.0
    %1317 = vmatprep.subr.mxu0 0.0
    %1318 = vmatpush1.msra.mxu0 0.0
    %1319 = vmatprep.subr.mxu0 0.0
    %1320 = vmatpush1.msra.mxu0 0.0
    %1321 = vmatprep.subr.mxu0 0.0
    %1322 = vmatpush1.msra.mxu0 0.0
    %1323 = vmatprep.subr.mxu0 0.0
    %1324 = vmatpush1.msra.mxu0 0.0
    %1325 = vmatprep.subr.mxu0 0.0
    %1326 = vmatpush1.msra.mxu0 0.0
    %1327 = vmatprep.subr.mxu0 0.0
    %1328 = vmatpush1.msra.mxu0 0.0
    %1329 = vmatprep.subr.mxu0 0.0
    %1330 = vmatpush1.msra.mxu0 0.0
    %1331 = vmatprep.subr.mxu0 0.0
    %1332 = vmatpush1.msra.mxu0 0.0
    %1333 = vmatprep.subr.mxu0 0.0
    %1334 = vmatpush1.msra.mxu0 %v66
    %1335 = vmatprep.subr.mxu0 0.0
    %1336 = vmatpush1.msra.mxu0 %v65
    %1337 = vmatprep.subr.mxu0 0.0
    %1338 = vmatpush1.msra.mxu0 %v64
    %1339 = vmatprep.subr.mxu0 0.0
    %1340 = vmatpush1.msra.mxu0 %v63
    %1341 = vmatprep.subr.mxu0 0.0
    %1342 = vmatpush2.msra.mxu0 0.0
    %1343 = vmatprep.subr.mxu0 0.0
    %1344 = vmatpush2.msra.mxu0 0.0
    %1345 = vmatprep.subr.mxu0 0.0
    %1346 = vmatpush2.msra.mxu0 0.0
    %1347 = vmatprep.subr.mxu0 0.0
    %1348 = vmatpush2.msra.mxu0 0.0
    %1349 = vmatprep.subr.mxu0 0.0
    %1350 = vmatpush2.msra.mxu0 0.0
    %1351 = vmatprep.subr.mxu0 0.0
    %1352 = vmatpush2.msra.mxu0 0.0
    %1353 = vmatprep.subr.mxu0 0.0
    %1354 = vmatpush2.msra.mxu0 0.0
    %1355 = vmatprep.subr.mxu0 0.0
    %1356 = vmatpush2.msra.mxu0 0.0
    %1357 = vmatprep.subr.mxu0 0.0
    %1358 = vmatpush2.msra.mxu0 0.0
    %1359 = vmatprep.subr.mxu0 0.0
    %1360 = vmatpush2.msra.mxu0 0.0
    %1361 = vmatprep.subr.mxu0 0.0
    %1362 = vmatpush2.msra.mxu0 0.0
    %1363 = vmatprep.subr.mxu0 0.0
    %1364 = vmatpush2.msra.mxu0 0.0
    %1365 = vmatprep.subr.mxu0 0.0
    %1366 = vmatpush2.msra.mxu0 0.0
    %1367 = vmatprep.subr.mxu0 0.0
    %1368 = vmatpush2.msra.mxu0 0.0
    %1369 = vmatprep.subr.mxu0 0.0
    %1370 = vmatpush2.msra.mxu0 0.0
    %1371 = vmatprep.subr.mxu0 0.0
    %1372 = vmatpush2.msra.mxu0 0.0
    %1373 = vmatprep.mubr.f32.mxu0 0.0
    %1374 = vmatmul.mubr.f32.gmra.mxu0 %v1307
    %v1375 = vpop.f32.mrf.mxu0
    %v1376 = vadd.f32 0.0, %v1375
    %v1377 = vpop.f32.mrf.mxu0
    %1378 = vdwg.mxu0
    %1379 = vrot.lane.b32.xlu0 %v80, 16
    %v1380 = vpop.permute.xlu0 %1379
    %v1381 = vsel %vm155, %v1380, 0
    %1383 = vmatprep.subr.mxu0 0.0
    %1384 = vmatpush1.msra.mxu0 0.0
    %1385 = vmatprep.subr.mxu0 0.0
    %1386 = vmatpush1.msra.mxu0 0.0
    %1387 = vmatprep.subr.mxu0 0.0
    %1388 = vmatpush1.msra.mxu0 0.0
    %1389 = vmatprep.subr.mxu0 0.0
    %1390 = vmatpush1.msra.mxu0 0.0
    %1391 = vmatprep.subr.mxu0 0.0
    %1392 = vmatpush1.msra.mxu0 0.0
    %1393 = vmatprep.subr.mxu0 0.0
    %1394 = vmatpush1.msra.mxu0 0.0
    %1395 = vmatprep.subr.mxu0 0.0
    %1396 = vmatpush1.msra.mxu0 0.0
    %1397 = vmatprep.subr.mxu0 0.0
    %1398 = vmatpush1.msra.mxu0 0.0
    %1399 = vmatprep.subr.mxu0 0.0
    %1400 = vmatpush1.msra.mxu0 0.0
    %1401 = vmatprep.subr.mxu0 0.0
    %1402 = vmatpush1.msra.mxu0 0.0
    %1403 = vmatprep.subr.mxu0 0.0
    %1404 = vmatpush1.msra.mxu0 0.0
    %1405 = vmatprep.subr.mxu0 0.0
    %1406 = vmatpush1.msra.mxu0 0.0
    %1407 = vmatprep.subr.mxu0 0.0
    %1408 = vmatpush1.msra.mxu0 0.0
    %1409 = vmatprep.subr.mxu0 0.0
    %1410 = vmatpush1.msra.mxu0 0.0
    %1411 = vmatprep.subr.mxu0 0.0
    %1412 = vmatpush1.msra.mxu0 %v62
    %1413 = vmatprep.subr.mxu0 0.0
    %1414 = vmatpush1.msra.mxu0 %v61
    %1415 = vmatprep.subr.mxu0 0.0
    %1416 = vmatpush2.msra.mxu0 0.0
    %1417 = vmatprep.subr.mxu0 0.0
    %1418 = vmatpush2.msra.mxu0 0.0
    %1419 = vmatprep.subr.mxu0 0.0
    %1420 = vmatpush2.msra.mxu0 0.0
    %1421 = vmatprep.subr.mxu0 0.0
    %1422 = vmatpush2.msra.mxu0 0.0
    %1423 = vmatprep.subr.mxu0 0.0
    %1424 = vmatpush2.msra.mxu0 0.0
    %1425 = vmatprep.subr.mxu0 0.0
    %1426 = vmatpush2.msra.mxu0 0.0
    %1427 = vmatprep.subr.mxu0 0.0
    %1428 = vmatpush2.msra.mxu0 0.0
    %1429 = vmatprep.subr.mxu0 0.0
    %1430 = vmatpush2.msra.mxu0 0.0
    %1431 = vmatprep.subr.mxu0 0.0
    %1432 = vmatpush2.msra.mxu0 0.0
    %1433 = vmatprep.subr.mxu0 0.0
    %1434 = vmatpush2.msra.mxu0 0.0
    %1435 = vmatprep.subr.mxu0 0.0
    %1436 = vmatpush2.msra.mxu0 0.0
    %1437 = vmatprep.subr.mxu0 0.0
    %1438 = vmatpush2.msra.mxu0 0.0
    %1439 = vmatprep.subr.mxu0 0.0
    %1440 = vmatpush2.msra.mxu0 0.0
    %1441 = vmatprep.subr.mxu0 0.0
    %1442 = vmatpush2.msra.mxu0 0.0
    %1443 = vmatprep.subr.mxu0 0.0
    %1444 = vmatpush2.msra.mxu0 0.0
    %1445 = vmatprep.subr.mxu0 0.0
    %1446 = vmatpush2.msra.mxu0 0.0
    %1447 = vmatprep.mubr.f32.mxu0 0.0
    %1448 = vmatmul.mubr.f32.gmra.mxu0 %v1381
    %v1449 = vpop.f32.mrf.mxu0
    %v1450 = vadd.f32 %v1376, %v1449
    %v1451 = vpop.f32.mrf.mxu0
    %1452 = vdwg.mxu0
    %v1453 = vadd.f32 %v1450, %v233
    %v1454 = vxor.u32 %v1453, 2147483648
    %v1455 = vmul.f32 %v1454, 1.442695
    %v1456 = vpow.pop %v1455
    %v1457 = vadd.f32 %v1456, 1.0
    %v1458 = vrcp.pop %v1457
    %v1459 = vmul.f32 1.0, %v1458
    %v1460 = vtanh.pop %v1453
    %v1461 = vmul.f32 %v1459, %v1297
    %1463 = vrot.lane.b32.xlu0 %v1460, 64
    %v1464 = vpop.permute.xlu0 %1463
    %v1466 = vmul.f32 %v1459, %v1464
    %1468 = vrot.lane.b32.xlu0 %v1466, 32
    %v1469 = vpop.permute.xlu0 %1468
    %v1471 = vadd.f32 %v1461, %v1469
    %v1472 = vtanh.pop %v1471
    %1474 = vrot.lane.b32.xlu0 %v1472, 64
    %v1475 = vpop.permute.xlu0 %1474
    %v1477 = vmul.f32 %v1459, %v1475
    %1479 = vrot.lane.b32.xlu0 %v1477, 32
    %v1480 = vpop.permute.xlu0 %1479
    %v1481 = vsel %vm81, %v1480, 0
    %1483 = vmatprep.subr.mxu0 0.0
    %1484 = vmatpush1.msra.mxu0 0.0
    %1485 = vmatprep.subr.mxu0 0.0
    %1486 = vmatpush1.msra.mxu0 0.0
    %1487 = vmatprep.subr.mxu0 0.0
    %1488 = vmatpush1.msra.mxu0 0.0
    %1489 = vmatprep.subr.mxu0 0.0
    %1490 = vmatpush1.msra.mxu0 0.0
    %1491 = vmatprep.subr.mxu0 0.0
    %1492 = vmatpush1.msra.mxu0 0.0
    %1493 = vmatprep.subr.mxu0 0.0
    %1494 = vmatpush1.msra.mxu0 0.0
    %1495 = vmatprep.subr.mxu0 0.0
    %1496 = vmatpush1.msra.mxu0 0.0
    %1497 = vmatprep.subr.mxu0 0.0
    %1498 = vmatpush1.msra.mxu0 0.0
    %1499 = vmatprep.subr.mxu0 0.0
    %1500 = vmatpush1.msra.mxu0 0.0
    %1501 = vmatprep.subr.mxu0 0.0
    %1502 = vmatpush1.msra.mxu0 0.0
    %1503 = vmatprep.subr.mxu0 0.0
    %1504 = vmatpush1.msra.mxu0 0.0
    %1505 = vmatprep.subr.mxu0 0.0
    %1506 = vmatpush1.msra.mxu0 0.0
    %1507 = vmatprep.subr.mxu0 0.0
    %1508 = vmatpush1.msra.mxu0 %v73
    %1509 = vmatprep.subr.mxu0 0.0
    %1510 = vmatpush1.msra.mxu0 %v72
    %1511 = vmatprep.subr.mxu0 0.0
    %1512 = vmatpush1.msra.mxu0 %v71
    %1513 = vmatprep.subr.mxu0 0.0
    %1514 = vmatpush1.msra.mxu0 %v70
    %1515 = vmatprep.subr.mxu0 0.0
    %1516 = vmatpush2.msra.mxu0 0.0
    %1517 = vmatprep.subr.mxu0 0.0
    %1518 = vmatpush2.msra.mxu0 0.0
    %1519 = vmatprep.subr.mxu0 0.0
    %1520 = vmatpush2.msra.mxu0 0.0
    %1521 = vmatprep.subr.mxu0 0.0
    %1522 = vmatpush2.msra.mxu0 0.0
    %1523 = vmatprep.subr.mxu0 0.0
    %1524 = vmatpush2.msra.mxu0 0.0
    %1525 = vmatprep.subr.mxu0 0.0
    %1526 = vmatpush2.msra.mxu0 0.0
    %1527 = vmatprep.subr.mxu0 0.0
    %1528 = vmatpush2.msra.mxu0 0.0
    %1529 = vmatprep.subr.mxu0 0.0
    %1530 = vmatpush2.msra.mxu0 0.0
    %1531 = vmatprep.subr.mxu0 0.0
    %1532 = vmatpush2.msra.mxu0 0.0
    %1533 = vmatprep.subr.mxu0 0.0
    %1534 = vmatpush2.msra.mxu0 0.0
    %1535 = vmatprep.subr.mxu0 0.0
    %1536 = vmatpush2.msra.mxu0 0.0
    %1537 = vmatprep.subr.mxu0 0.0
    %1538 = vmatpush2.msra.mxu0 0.0
    %1539 = vmatprep.subr.mxu0 0.0
    %1540 = vmatpush2.msra.mxu0 0.0
    %1541 = vmatprep.subr.mxu0 0.0
    %1542 = vmatpush2.msra.mxu0 0.0
    %1543 = vmatprep.subr.mxu0 0.0
    %1544 = vmatpush2.msra.mxu0 0.0
    %1545 = vmatprep.subr.mxu0 0.0
    %1546 = vmatpush2.msra.mxu0 0.0
    %1547 = vmatprep.mubr.f32.mxu0 0.0
    %1548 = vmatmul.mubr.f32.gmra.mxu0 %v1481
    %v1549 = vpop.f32.mrf.mxu0
    %v1550 = vadd.f32 0.0, %v1549
    %v1551 = vpop.f32.mrf.mxu0
    %1552 = vdwg.mxu0
    %v1553 = vsel %vm155, 0.0, 0
    %1555 = vmatprep.subr.mxu0 0.0
    %1556 = vmatpush1.msra.mxu0 0.0
    %1557 = vmatprep.subr.mxu0 0.0
    %1558 = vmatpush1.msra.mxu0 0.0
    %1559 = vmatprep.subr.mxu0 0.0
    %1560 = vmatpush1.msra.mxu0 0.0
    %1561 = vmatprep.subr.mxu0 0.0
    %1562 = vmatpush1.msra.mxu0 0.0
    %1563 = vmatprep.subr.mxu0 0.0
    %1564 = vmatpush1.msra.mxu0 0.0
    %1565 = vmatprep.subr.mxu0 0.0
    %1566 = vmatpush1.msra.mxu0 0.0
    %1567 = vmatprep.subr.mxu0 0.0
    %1568 = vmatpush1.msra.mxu0 0.0
    %1569 = vmatprep.subr.mxu0 0.0
    %1570 = vmatpush1.msra.mxu0 0.0
    %1571 = vmatprep.subr.mxu0 0.0
    %1572 = vmatpush1.msra.mxu0 0.0
    %1573 = vmatprep.subr.mxu0 0.0
    %1574 = vmatpush1.msra.mxu0 0.0
    %1575 = vmatprep.subr.mxu0 0.0
    %1576 = vmatpush1.msra.mxu0 0.0
    %1577 = vmatprep.subr.mxu0 0.0
    %1578 = vmatpush1.msra.mxu0 0.0
    %1579 = vmatprep.subr.mxu0 0.0
    %1580 = vmatpush1.msra.mxu0 0.0
    %1581 = vmatprep.subr.mxu0 0.0
    %1582 = vmatpush1.msra.mxu0 0.0
    %1583 = vmatprep.subr.mxu0 0.0
    %1584 = vmatpush1.msra.mxu0 %v69
    %1585 = vmatprep.subr.mxu0 0.0
    %1586 = vmatpush1.msra.mxu0 %v68
    %1587 = vmatprep.subr.mxu0 0.0
    %1588 = vmatpush2.msra.mxu0 0.0
    %1589 = vmatprep.subr.mxu0 0.0
    %1590 = vmatpush2.msra.mxu0 0.0
    %1591 = vmatprep.subr.mxu0 0.0
    %1592 = vmatpush2.msra.mxu0 0.0
    %1593 = vmatprep.subr.mxu0 0.0
    %1594 = vmatpush2.msra.mxu0 0.0
    %1595 = vmatprep.subr.mxu0 0.0
    %1596 = vmatpush2.msra.mxu0 0.0
    %1597 = vmatprep.subr.mxu0 0.0
    %1598 = vmatpush2.msra.mxu0 0.0
    %1599 = vmatprep.subr.mxu0 0.0
    %1600 = vmatpush2.msra.mxu0 0.0
    %1601 = vmatprep.subr.mxu0 0.0
    %1602 = vmatpush2.msra.mxu0 0.0
    %1603 = vmatprep.subr.mxu0 0.0
    %1604 = vmatpush2.msra.mxu0 0.0
    %1605 = vmatprep.subr.mxu0 0.0
    %1606 = vmatpush2.msra.mxu0 0.0
    %1607 = vmatprep.subr.mxu0 0.0
    %1608 = vmatpush2.msra.mxu0 0.0
    %1609 = vmatprep.subr.mxu0 0.0
    %1610 = vmatpush2.msra.mxu0 0.0
    %1611 = vmatprep.subr.mxu0 0.0
    %1612 = vmatpush2.msra.mxu0 0.0
    %1613 = vmatprep.subr.mxu0 0.0
    %1614 = vmatpush2.msra.mxu0 0.0
    %1615 = vmatprep.subr.mxu0 0.0
    %1616 = vmatpush2.msra.mxu0 0.0
    %1617 = vmatprep.subr.mxu0 0.0
    %1618 = vmatpush2.msra.mxu0 0.0
    %1619 = vmatprep.mubr.f32.mxu0 0.0
    %1620 = vmatmul.mubr.f32.gmra.mxu0 %v1553
    %v1621 = vpop.f32.mrf.mxu0
    %v1622 = vadd.f32 %v1550, %v1621
    %v1623 = vpop.f32.mrf.mxu0
    %1624 = vdwg.mxu0
    %v1626 = vlaneseq
    %v1627 = vshrl.u32 %v1626, 7
    %v1628 = vsub.s32 0, %v1627
    %v1629 = vrot.slane %v74, %v1628
    %v1631 = vadd.f32 %v1622, %v1629
    %v1632 = vxor.u32 %v1631, 2147483648
    %v1633 = vmul.f32 %v1632, 1.442695
    %v1634 = vpow.pop %v1633
    %v1635 = vadd.f32 %v1634, 1.0
    %v1636 = vrcp.pop %v1635
    %v1637 = vmul.f32 1.0, %v1636
    %v1638 = vtanh.pop %v1631
    %v1639 = vmul.f32 %v1637, %v1471
    %1641 = vrot.lane.b32.xlu0 %v1638, 64
    %v1642 = vpop.permute.xlu0 %1641
    %v1644 = vmul.f32 %v1637, %v1642
    %1646 = vrot.lane.b32.xlu0 %v1644, 32
    %v1647 = vpop.permute.xlu0 %1646
    %v1649 = vadd.f32 %v1639, %v1647
    %v1650 = vtanh.pop %v1649
    %1652 = vrot.lane.b32.xlu0 %v1650, 64
    %v1653 = vpop.permute.xlu0 %1652
    %v1655 = vmul.f32 %v1637, %v1653
    %v1657 = vlaneseq
    %v1658 = vshrl.u32 %v1657, 7
    %v1659 = vsub.s32 0, %v1658
    %v1660 = vrot.slane %v79, %v1659
    %1663 = vrot.lane.b32.xlu0 %v1655, 32
    %v1664 = vpop.permute.xlu0 %1663
    %v1665 = vsel %vm81, %v1664, 0
    %1667 = vmatprep.subr.mxu0 0.0
    %1668 = vmatpush1.msra.mxu0 0.0
    %1669 = vmatprep.subr.mxu0 0.0
    %1670 = vmatpush1.msra.mxu0 0.0
    %1671 = vmatprep.subr.mxu0 0.0
    %1672 = vmatpush1.msra.mxu0 0.0
    %1673 = vmatprep.subr.mxu0 0.0
    %1674 = vmatpush1.msra.mxu0 0.0
    %1675 = vmatprep.subr.mxu0 0.0
    %1676 = vmatpush1.msra.mxu0 0.0
    %1677 = vmatprep.subr.mxu0 0.0
    %1678 = vmatpush1.msra.mxu0 0.0
    %1679 = vmatprep.subr.mxu0 0.0
    %1680 = vmatpush1.msra.mxu0 0.0
    %1681 = vmatprep.subr.mxu0 0.0
    %1682 = vmatpush1.msra.mxu0 0.0
    %1683 = vmatprep.subr.mxu0 0.0
    %1684 = vmatpush1.msra.mxu0 0.0
    %1685 = vmatprep.subr.mxu0 0.0
    %1686 = vmatpush1.msra.mxu0 0.0
    %1687 = vmatprep.subr.mxu0 0.0
    %1688 = vmatpush1.msra.mxu0 0.0
    %1689 = vmatprep.subr.mxu0 0.0
    %1690 = vmatpush1.msra.mxu0 0.0
    %1691 = vmatprep.subr.mxu0 0.0
    %1692 = vmatpush1.msra.mxu0 %v78
    %1693 = vmatprep.subr.mxu0 0.0
    %1694 = vmatpush1.msra.mxu0 %v77
    %1695 = vmatprep.subr.mxu0 0.0
    %1696 = vmatpush1.msra.mxu0 %v76
    %1697 = vmatprep.subr.mxu0 0.0
    %1698 = vmatpush1.msra.mxu0 %v75
    %1699 = vmatprep.subr.mxu0 0.0
    %1700 = vmatpush2.msra.mxu0 0.0
    %1701 = vmatprep.subr.mxu0 0.0
    %1702 = vmatpush2.msra.mxu0 0.0
    %1703 = vmatprep.subr.mxu0 0.0
    %1704 = vmatpush2.msra.mxu0 0.0
    %1705 = vmatprep.subr.mxu0 0.0
    %1706 = vmatpush2.msra.mxu0 0.0
    %1707 = vmatprep.subr.mxu0 0.0
    %1708 = vmatpush2.msra.mxu0 0.0
    %1709 = vmatprep.subr.mxu0 0.0
    %1710 = vmatpush2.msra.mxu0 0.0
    %1711 = vmatprep.subr.mxu0 0.0
    %1712 = vmatpush2.msra.mxu0 0.0
    %1713 = vmatprep.subr.mxu0 0.0
    %1714 = vmatpush2.msra.mxu0 0.0
    %1715 = vmatprep.subr.mxu0 0.0
    %1716 = vmatpush2.msra.mxu0 0.0
    %1717 = vmatprep.subr.mxu0 0.0
    %1718 = vmatpush2.msra.mxu0 0.0
    %1719 = vmatprep.subr.mxu0 0.0
    %1720 = vmatpush2.msra.mxu0 0.0
    %1721 = vmatprep.subr.mxu0 0.0
    %1722 = vmatpush2.msra.mxu0 0.0
    %1723 = vmatprep.subr.mxu0 0.0
    %1724 = vmatpush2.msra.mxu0 0.0
    %1725 = vmatprep.subr.mxu0 0.0
    %1726 = vmatpush2.msra.mxu0 0.0
    %1727 = vmatprep.subr.mxu0 0.0
    %1728 = vmatpush2.msra.mxu0 0.0
    %1729 = vmatprep.subr.mxu0 0.0
    %1730 = vmatpush2.msra.mxu0 0.0
    %1731 = vmatprep.mubr.f32.mxu0 0.0
    %1732 = vmatmul.mubr.f32.gmra.mxu0 %v1665
    %v1733 = vpop.f32.mrf.mxu0
    %v1734 = vadd.f32 %v1660, %v1733
    %v1735 = vpop.f32.mrf.mxu0
    %1736 = vdwg.mxu0
    %1738 = vrot.lane.b32.xlu0 %v1734, 112
    %v1739 = vpop.permute.xlu0 %1738
    %vm1741 = vcmask 1042304
    %1742 = vst.msk [vmem:[#allocation7] sm:$0x3] %vm1741, %v1739
    %1743 = vmatprep.subr.mxu0 0.0
    %1744 = vmatpush1.msra.mxu0 0.0
    %1745 = vmatprep.subr.mxu0 0.0
    %1746 = vmatpush1.msra.mxu0 0.0
    %1747 = vmatprep.subr.mxu0 0.0
    %1748 = vmatpush1.msra.mxu0 0.0
    %1749 = vmatprep.subr.mxu0 0.0
    %1750 = vmatpush1.msra.mxu0 0.0
    %1751 = vmatprep.subr.mxu0 0.0
    %1752 = vmatpush1.msra.mxu0 0.0
    %1753 = vmatprep.subr.mxu0 0.0
    %1754 = vmatpush1.msra.mxu0 0.0
    %1755 = vmatprep.subr.mxu0 0.0
    %1756 = vmatpush1.msra.mxu0 0.0
    %1757 = vmatprep.subr.mxu0 0.0
    %1758 = vmatpush1.msra.mxu0 0.0
    %1759 = vmatprep.subr.mxu0 0.0
    %1760 = vmatpush1.msra.mxu0 0.0
    %1761 = vmatprep.subr.mxu0 0.0
    %1762 = vmatpush1.msra.mxu0 0.0
    %1763 = vmatprep.subr.mxu0 0.0
    %1764 = vmatpush1.msra.mxu0 0.0
    %1765 = vmatprep.subr.mxu0 0.0
    %1766 = vmatpush1.msra.mxu0 0.0
    %1767 = vmatprep.subr.mxu0 0.0
    %1768 = vmatpush1.msra.mxu0 %v73
    %1769 = vmatprep.subr.mxu0 0.0
    %1770 = vmatpush1.msra.mxu0 %v72
    %1771 = vmatprep.subr.mxu0 0.0
    %1772 = vmatpush1.msra.mxu0 %v71
    %1773 = vmatprep.subr.mxu0 0.0
    %1774 = vmatpush1.msra.mxu0 %v70
    %1775 = vmatprep.subr.mxu0 0.0
    %1776 = vmatpush2.msra.mxu0 0.0
    %1777 = vmatprep.subr.mxu0 0.0
    %1778 = vmatpush2.msra.mxu0 0.0
    %1779 = vmatprep.subr.mxu0 0.0
    %1780 = vmatpush2.msra.mxu0 0.0
    %1781 = vmatprep.subr.mxu0 0.0
    %1782 = vmatpush2.msra.mxu0 0.0
    %1783 = vmatprep.subr.mxu0 0.0
    %1784 = vmatpush2.msra.mxu0 0.0
    %1785 = vmatprep.subr.mxu0 0.0
    %1786 = vmatpush2.msra.mxu0 0.0
    %1787 = vmatprep.subr.mxu0 0.0
    %1788 = vmatpush2.msra.mxu0 0.0
    %1789 = vmatprep.subr.mxu0 0.0
    %1790 = vmatpush2.msra.mxu0 0.0
    %1791 = vmatprep.subr.mxu0 0.0
    %1792 = vmatpush2.msra.mxu0 0.0
    %1793 = vmatprep.subr.mxu0 0.0
    %1794 = vmatpush2.msra.mxu0 0.0
    %1795 = vmatprep.subr.mxu0 0.0
    %1796 = vmatpush2.msra.mxu0 0.0
    %1797 = vmatprep.subr.mxu0 0.0
    %1798 = vmatpush2.msra.mxu0 0.0
    %1799 = vmatprep.subr.mxu0 0.0
    %1800 = vmatpush2.msra.mxu0 0.0
    %1801 = vmatprep.subr.mxu0 0.0
    %1802 = vmatpush2.msra.mxu0 0.0
    %1803 = vmatprep.subr.mxu0 0.0
    %1804 = vmatpush2.msra.mxu0 0.0
    %1805 = vmatprep.subr.mxu0 0.0
    %1806 = vmatpush2.msra.mxu0 0.0
    %1807 = vmatprep.mubr.f32.mxu0 0.0
    %1808 = vmatmul.mubr.f32.gmra.mxu0 %v1665
    %v1809 = vpop.f32.mrf.mxu0
    %v1810 = vadd.f32 0.0, %v1809
    %v1811 = vpop.f32.mrf.mxu0
    %1812 = vdwg.mxu0
    %v1813 = vsel %vm155, %v1734, 0
    %1815 = vmatprep.subr.mxu0 0.0
    %1816 = vmatpush1.msra.mxu0 0.0
    %1817 = vmatprep.subr.mxu0 0.0
    %1818 = vmatpush1.msra.mxu0 0.0
    %1819 = vmatprep.subr.mxu0 0.0
    %1820 = vmatpush1.msra.mxu0 0.0
    %1821 = vmatprep.subr.mxu0 0.0
    %1822 = vmatpush1.msra.mxu0 0.0
    %1823 = vmatprep.subr.mxu0 0.0
    %1824 = vmatpush1.msra.mxu0 0.0
    %1825 = vmatprep.subr.mxu0 0.0
    %1826 = vmatpush1.msra.mxu0 0.0
    %1827 = vmatprep.subr.mxu0 0.0
    %1828 = vmatpush1.msra.mxu0 0.0
    %1829 = vmatprep.subr.mxu0 0.0
    %1830 = vmatpush1.msra.mxu0 0.0
    %1831 = vmatprep.subr.mxu0 0.0
    %1832 = vmatpush1.msra.mxu0 0.0
    %1833 = vmatprep.subr.mxu0 0.0
    %1834 = vmatpush1.msra.mxu0 0.0
    %1835 = vmatprep.subr.mxu0 0.0
    %1836 = vmatpush1.msra.mxu0 0.0
    %1837 = vmatprep.subr.mxu0 0.0
    %1838 = vmatpush1.msra.mxu0 0.0
    %1839 = vmatprep.subr.mxu0 0.0
    %1840 = vmatpush1.msra.mxu0 0.0
    %1841 = vmatprep.subr.mxu0 0.0
    %1842 = vmatpush1.msra.mxu0 0.0
    %1843 = vmatprep.subr.mxu0 0.0
    %1844 = vmatpush1.msra.mxu0 %v69
    %1845 = vmatprep.subr.mxu0 0.0
    %1846 = vmatpush1.msra.mxu0 %v68
    %1847 = vmatprep.subr.mxu0 0.0
    %1848 = vmatpush2.msra.mxu0 0.0
    %1849 = vmatprep.subr.mxu0 0.0
    %1850 = vmatpush2.msra.mxu0 0.0
    %1851 = vmatprep.subr.mxu0 0.0
    %1852 = vmatpush2.msra.mxu0 0.0
    %1853 = vmatprep.subr.mxu0 0.0
    %1854 = vmatpush2.msra.mxu0 0.0
    %1855 = vmatprep.subr.mxu0 0.0
    %1856 = vmatpush2.msra.mxu0 0.0
    %1857 = vmatprep.subr.mxu0 0.0
    %1858 = vmatpush2.msra.mxu0 0.0
    %1859 = vmatprep.subr.mxu0 0.0
    %1860 = vmatpush2.msra.mxu0 0.0
    %1861 = vmatprep.subr.mxu0 0.0
    %1862 = vmatpush2.msra.mxu0 0.0
    %1863 = vmatprep.subr.mxu0 0.0
    %1864 = vmatpush2.msra.mxu0 0.0
    %1865 = vmatprep.subr.mxu0 0.0
    %1866 = vmatpush2.msra.mxu0 0.0
    %1867 = vmatprep.subr.mxu0 0.0
    %1868 = vmatpush2.msra.mxu0 0.0
    %1869 = vmatprep.subr.mxu0 0.0
    %1870 = vmatpush2.msra.mxu0 0.0
    %1871 = vmatprep.subr.mxu0 0.0
    %1872 = vmatpush2.msra.mxu0 0.0
    %1873 = vmatprep.subr.mxu0 0.0
    %1874 = vmatpush2.msra.mxu0 0.0
    %1875 = vmatprep.subr.mxu0 0.0
    %1876 = vmatpush2.msra.mxu0 0.0
    %1877 = vmatprep.subr.mxu0 0.0
    %1878 = vmatpush2.msra.mxu0 0.0
    %1879 = vmatprep.mubr.f32.mxu0 0.0
    %1880 = vmatmul.mubr.f32.gmra.mxu0 %v1813
    %v1881 = vpop.f32.mrf.mxu0
    %v1882 = vadd.f32 %v1810, %v1881
    %v1883 = vpop.f32.mrf.mxu0
    %1884 = vdwg.mxu0
    %v1885 = vadd.f32 %v1882, %v1629
    %v1886 = vxor.u32 %v1885, 2147483648
    %v1887 = vmul.f32 %v1886, 1.442695
    %v1888 = vpow.pop %v1887
    %v1889 = vadd.f32 %v1888, 1.0
    %v1890 = vrcp.pop %v1889
    %v1891 = vmul.f32 1.0, %v1890
    %v1892 = vtanh.pop %v1885
    %v1893 = vmul.f32 %v1891, %v1649
    %1895 = vrot.lane.b32.xlu0 %v1892, 64
    %v1896 = vpop.permute.xlu0 %1895
    %v1898 = vmul.f32 %v1891, %v1896
    %1900 = vrot.lane.b32.xlu0 %v1898, 32
    %v1901 = vpop.permute.xlu0 %1900
    %v1903 = vadd.f32 %v1893, %v1901
    %v1904 = vtanh.pop %v1903
    %1906 = vrot.lane.b32.xlu0 %v1904, 64
    %v1907 = vpop.permute.xlu0 %1906
    %v1909 = vmul.f32 %v1891, %v1907
    %1911 = vrot.lane.b32.xlu0 %v1909, 32
    %v1912 = vpop.permute.xlu0 %1911
    %v1913 = vsel %vm81, %v1912, 0
    %1915 = vmatprep.subr.mxu0 0.0
    %1916 = vmatpush1.msra.mxu0 0.0
    %1917 = vmatprep.subr.mxu0 0.0
    %1918 = vmatpush1.msra.mxu0 0.0
    %1919 = vmatprep.subr.mxu0 0.0
    %1920 = vmatpush1.msra.mxu0 0.0
    %1921 = vmatprep.subr.mxu0 0.0
    %1922 = vmatpush1.msra.mxu0 0.0
    %1923 = vmatprep.subr.mxu0 0.0
    %1924 = vmatpush1.msra.mxu0 0.0
    %1925 = vmatprep.subr.mxu0 0.0
    %1926 = vmatpush1.msra.mxu0 0.0
    %1927 = vmatprep.subr.mxu0 0.0
    %1928 = vmatpush1.msra.mxu0 0.0
    %1929 = vmatprep.subr.mxu0 0.0
    %1930 = vmatpush1.msra.mxu0 0.0
    %1931 = vmatprep.subr.mxu0 0.0
    %1932 = vmatpush1.msra.mxu0 0.0
    %1933 = vmatprep.subr.mxu0 0.0
    %1934 = vmatpush1.msra.mxu0 0.0
    %1935 = vmatprep.subr.mxu0 0.0
    %1936 = vmatpush1.msra.mxu0 0.0
    %1937 = vmatprep.subr.mxu0 0.0
    %1938 = vmatpush1.msra.mxu0 0.0
    %1939 = vmatprep.subr.mxu0 0.0
    %1940 = vmatpush1.msra.mxu0 %v78
    %1941 = vmatprep.subr.mxu0 0.0
    %1942 = vmatpush1.msra.mxu0 %v77
    %1943 = vmatprep.subr.mxu0 0.0
    %1944 = vmatpush1.msra.mxu0 %v76
    %1945 = vmatprep.subr.mxu0 0.0
    %1946 = vmatpush1.msra.mxu0 %v75
    %1947 = vmatprep.subr.mxu0 0.0
    %1948 = vmatpush2.msra.mxu0 0.0
    %1949 = vmatprep.subr.mxu0 0.0
    %1950 = vmatpush2.msra.mxu0 0.0
    %1951 = vmatprep.subr.mxu0 0.0
    %1952 = vmatpush2.msra.mxu0 0.0
    %1953 = vmatprep.subr.mxu0 0.0
    %1954 = vmatpush2.msra.mxu0 0.0
    %1955 = vmatprep.subr.mxu0 0.0
    %1956 = vmatpush2.msra.mxu0 0.0
    %1957 = vmatprep.subr.mxu0 0.0
    %1958 = vmatpush2.msra.mxu0 0.0
    %1959 = vmatprep.subr.mxu0 0.0
    %1960 = vmatpush2.msra.mxu0 0.0
    %1961 = vmatprep.subr.mxu0 0.0
    %1962 = vmatpush2.msra.mxu0 0.0
    %1963 = vmatprep.subr.mxu0 0.0
    %1964 = vmatpush2.msra.mxu0 0.0
    %1965 = vmatprep.subr.mxu0 0.0
    %1966 = vmatpush2.msra.mxu0 0.0
    %1967 = vmatprep.subr.mxu0 0.0
    %1968 = vmatpush2.msra.mxu0 0.0
    %1969 = vmatprep.subr.mxu0 0.0
    %1970 = vmatpush2.msra.mxu0 0.0
    %1971 = vmatprep.subr.mxu0 0.0
    %1972 = vmatpush2.msra.mxu0 0.0
    %1973 = vmatprep.subr.mxu0 0.0
    %1974 = vmatpush2.msra.mxu0 0.0
    %1975 = vmatprep.subr.mxu0 0.0
    %1976 = vmatpush2.msra.mxu0 0.0
    %1977 = vmatprep.subr.mxu0 0.0
    %1978 = vmatpush2.msra.mxu0 0.0
    %1979 = vmatprep.mubr.f32.mxu0 0.0
    %1980 = vmatmul.mubr.f32.gmra.mxu0 %v1913
    %v1981 = vpop.f32.mrf.mxu0
    %v1982 = vadd.f32 %v1660, %v1981
    %v1983 = vpop.f32.mrf.mxu0
    %1984 = vdwg.mxu0
    %1986 = vrot.lane.b32.xlu0 %v1982, 96
    %v1987 = vpop.permute.xlu0 %1986
    %vm1989 = vcmask 911104
    %1990 = vst.msk [vmem:[#allocation7] sm:$0x3] %vm1989, %v1987
    %1991 = vmatprep.subr.mxu0 0.0
    %1992 = vmatpush1.msra.mxu0 0.0
    %1993 = vmatprep.subr.mxu0 0.0
    %1994 = vmatpush1.msra.mxu0 0.0
    %1995 = vmatprep.subr.mxu0 0.0
    %1996 = vmatpush1.msra.mxu0 0.0
    %1997 = vmatprep.subr.mxu0 0.0
    %1998 = vmatpush1.msra.mxu0 0.0
    %1999 = vmatprep.subr.mxu0 0.0
    %2000 = vmatpush1.msra.mxu0 0.0
    %2001 = vmatprep.subr.mxu0 0.0
    %2002 = vmatpush1.msra.mxu0 0.0
    %2003 = vmatprep.subr.mxu0 0.0
    %2004 = vmatpush1.msra.mxu0 0.0
    %2005 = vmatprep.subr.mxu0 0.0
    %2006 = vmatpush1.msra.mxu0 0.0
    %2007 = vmatprep.subr.mxu0 0.0
    %2008 = vmatpush1.msra.mxu0 0.0
    %2009 = vmatprep.subr.mxu0 0.0
    %2010 = vmatpush1.msra.mxu0 0.0
    %2011 = vmatprep.subr.mxu0 0.0
    %2012 = vmatpush1.msra.mxu0 0.0
    %2013 = vmatprep.subr.mxu0 0.0
    %2014 = vmatpush1.msra.mxu0 0.0
    %2015 = vmatprep.subr.mxu0 0.0
    %2016 = vmatpush1.msra.mxu0 %v73
    %2017 = vmatprep.subr.mxu0 0.0
    %2018 = vmatpush1.msra.mxu0 %v72
    %2019 = vmatprep.subr.mxu0 0.0
    %2020 = vmatpush1.msra.mxu0 %v71
    %2021 = vmatprep.subr.mxu0 0.0
    %2022 = vmatpush1.msra.mxu0 %v70
    %2023 = vmatprep.subr.mxu0 0.0
    %2024 = vmatpush2.msra.mxu0 0.0
    %2025 = vmatprep.subr.mxu0 0.0
    %2026 = vmatpush2.msra.mxu0 0.0
    %2027 = vmatprep.subr.mxu0 0.0
    %2028 = vmatpush2.msra.mxu0 0.0
    %2029 = vmatprep.subr.mxu0 0.0
    %2030 = vmatpush2.msra.mxu0 0.0
    %2031 = vmatprep.subr.mxu0 0.0
    %2032 = vmatpush2.msra.mxu0 0.0
    %2033 = vmatprep.subr.mxu0 0.0
    %2034 = vmatpush2.msra.mxu0 0.0
    %2035 = vmatprep.subr.mxu0 0.0
    %2036 = vmatpush2.msra.mxu0 0.0
    %2037 = vmatprep.subr.mxu0 0.0
    %2038 = vmatpush2.msra.mxu0 0.0
    %2039 = vmatprep.subr.mxu0 0.0
    %2040 = vmatpush2.msra.mxu0 0.0
    %2041 = vmatprep.subr.mxu0 0.0
    %2042 = vmatpush2.msra.mxu0 0.0
    %2043 = vmatprep.subr.mxu0 0.0
    %2044 = vmatpush2.msra.mxu0 0.0
    %2045 = vmatprep.subr.mxu0 0.0
    %2046 = vmatpush2.msra.mxu0 0.0
    %2047 = vmatprep.subr.mxu0 0.0
    %2048 = vmatpush2.msra.mxu0 0.0
    %2049 = vmatprep.subr.mxu0 0.0
    %2050 = vmatpush2.msra.mxu0 0.0
    %2051 = vmatprep.subr.mxu0 0.0
    %2052 = vmatpush2.msra.mxu0 0.0
    %2053 = vmatprep.subr.mxu0 0.0
    %2054 = vmatpush2.msra.mxu0 0.0
    %2055 = vmatprep.mubr.f32.mxu0 0.0
    %2056 = vmatmul.mubr.f32.gmra.mxu0 %v1913
    %v2057 = vpop.f32.mrf.mxu0
    %v2058 = vadd.f32 0.0, %v2057
    %v2059 = vpop.f32.mrf.mxu0
    %2060 = vdwg.mxu0
    %v2061 = vsel %vm155, %v1982, 0
    %2063 = vmatprep.subr.mxu0 0.0
    %2064 = vmatpush1.msra.mxu0 0.0
    %2065 = vmatprep.subr.mxu0 0.0
    %2066 = vmatpush1.msra.mxu0 0.0
    %2067 = vmatprep.subr.mxu0 0.0
    %2068 = vmatpush1.msra.mxu0 0.0
    %2069 = vmatprep.subr.mxu0 0.0
    %2070 = vmatpush1.msra.mxu0 0.0
    %2071 = vmatprep.subr.mxu0 0.0
    %2072 = vmatpush1.msra.mxu0 0.0
    %2073 = vmatprep.subr.mxu0 0.0
    %2074 = vmatpush1.msra.mxu0 0.0
    %2075 = vmatprep.subr.mxu0 0.0
    %2076 = vmatpush1.msra.mxu0 0.0
    %2077 = vmatprep.subr.mxu0 0.0
    %2078 = vmatpush1.msra.mxu0 0.0
    %2079 = vmatprep.subr.mxu0 0.0
    %2080 = vmatpush1.msra.mxu0 0.0
    %2081 = vmatprep.subr.mxu0 0.0
    %2082 = vmatpush1.msra.mxu0 0.0
    %2083 = vmatprep.subr.mxu0 0.0
    %2084 = vmatpush1.msra.mxu0 0.0
    %2085 = vmatprep.subr.mxu0 0.0
    %2086 = vmatpush1.msra.mxu0 0.0
    %2087 = vmatprep.subr.mxu0 0.0
    %2088 = vmatpush1.msra.mxu0 0.0
    %2089 = vmatprep.subr.mxu0 0.0
    %2090 = vmatpush1.msra.mxu0 0.0
    %2091 = vmatprep.subr.mxu0 0.0
    %2092 = vmatpush1.msra.mxu0 %v69
    %2093 = vmatprep.subr.mxu0 0.0
    %2094 = vmatpush1.msra.mxu0 %v68
    %2095 = vmatprep.subr.mxu0 0.0
    %2096 = vmatpush2.msra.mxu0 0.0
    %2097 = vmatprep.subr.mxu0 0.0
    %2098 = vmatpush2.msra.mxu0 0.0
    %2099 = vmatprep.subr.mxu0 0.0
    %2100 = vmatpush2.msra.mxu0 0.0
    %2101 = vmatprep.subr.mxu0 0.0
    %2102 = vmatpush2.msra.mxu0 0.0
    %2103 = vmatprep.subr.mxu0 0.0
    %2104 = vmatpush2.msra.mxu0 0.0
    %2105 = vmatprep.subr.mxu0 0.0
    %2106 = vmatpush2.msra.mxu0 0.0
    %2107 = vmatprep.subr.mxu0 0.0
    %2108 = vmatpush2.msra.mxu0 0.0
    %2109 = vmatprep.subr.mxu0 0.0
    %2110 = vmatpush2.msra.mxu0 0.0
    %2111 = vmatprep.subr.mxu0 0.0
    %2112 = vmatpush2.msra.mxu0 0.0
    %2113 = vmatprep.subr.mxu0 0.0
    %2114 = vmatpush2.msra.mxu0 0.0
    %2115 = vmatprep.subr.mxu0 0.0
    %2116 = vmatpush2.msra.mxu0 0.0
    %2117 = vmatprep.subr.mxu0 0.0
    %2118 = vmatpush2.msra.mxu0 0.0
    %2119 = vmatprep.subr.mxu0 0.0
    %2120 = vmatpush2.msra.mxu0 0.0
    %2121 = vmatprep.subr.mxu0 0.0
    %2122 = vmatpush2.msra.mxu0 0.0
    %2123 = vmatprep.subr.mxu0 0.0
    %2124 = vmatpush2.msra.mxu0 0.0
    %2125 = vmatprep.subr.mxu0 0.0
    %2126 = vmatpush2.msra.mxu0 0.0
    %2127 = vmatprep.mubr.f32.mxu0 0.0
    %2128 = vmatmul.mubr.f32.gmra.mxu0 %v2061
    %v2129 = vpop.f32.mrf.mxu0
    %v2130 = vadd.f32 %v2058, %v2129
    %v2131 = vpop.f32.mrf.mxu0
    %2132 = vdwg.mxu0
    %v2133 = vadd.f32 %v2130, %v1629
    %v2134 = vxor.u32 %v2133, 2147483648
    %v2135 = vmul.f32 %v2134, 1.442695
    %v2136 = vpow.pop %v2135
    %v2137 = vadd.f32 %v2136, 1.0
    %v2138 = vrcp.pop %v2137
    %v2139 = vmul.f32 1.0, %v2138
    %v2140 = vtanh.pop %v2133
    %v2141 = vmul.f32 %v2139, %v1903
    %2143 = vrot.lane.b32.xlu0 %v2140, 64
    %v2144 = vpop.permute.xlu0 %2143
    %v2146 = vmul.f32 %v2139, %v2144
    %2148 = vrot.lane.b32.xlu0 %v2146, 32
    %v2149 = vpop.permute.xlu0 %2148
    %v2151 = vadd.f32 %v2141, %v2149
    %v2152 = vtanh.pop %v2151
    %2154 = vrot.lane.b32.xlu0 %v2152, 64
    %v2155 = vpop.permute.xlu0 %2154
    %v2157 = vmul.f32 %v2139, %v2155
    %2159 = vrot.lane.b32.xlu0 %v2157, 32
    %v2160 = vpop.permute.xlu0 %2159
    %v2161 = vsel %vm81, %v2160, 0
    %2163 = vmatprep.subr.mxu0 0.0
    %2164 = vmatpush1.msra.mxu0 0.0
    %2165 = vmatprep.subr.mxu0 0.0
    %2166 = vmatpush1.msra.mxu0 0.0
    %2167 = vmatprep.subr.mxu0 0.0
    %2168 = vmatpush1.msra.mxu0 0.0
    %2169 = vmatprep.subr.mxu0 0.0
    %2170 = vmatpush1.msra.mxu0 0.0
    %2171 = vmatprep.subr.mxu0 0.0
    %2172 = vmatpush1.msra.mxu0 0.0
    %2173 = vmatprep.subr.mxu0 0.0
    %2174 = vmatpush1.msra.mxu0 0.0
    %2175 = vmatprep.subr.mxu0 0.0
    %2176 = vmatpush1.msra.mxu0 0.0
    %2177 = vmatprep.subr.mxu0 0.0
    %2178 = vmatpush1.msra.mxu0 0.0
    %2179 = vmatprep.subr.mxu0 0.0
    %2180 = vmatpush1.msra.mxu0 0.0
    %2181 = vmatprep.subr.mxu0 0.0
    %2182 = vmatpush1.msra.mxu0 0.0
    %2183 = vmatprep.subr.mxu0 0.0
    %2184 = vmatpush1.msra.mxu0 0.0
    %2185 = vmatprep.subr.mxu0 0.0
    %2186 = vmatpush1.msra.mxu0 0.0
    %2187 = vmatprep.subr.mxu0 0.0
    %2188 = vmatpush1.msra.mxu0 %v78
    %2189 = vmatprep.subr.mxu0 0.0
    %2190 = vmatpush1.msra.mxu0 %v77
    %2191 = vmatprep.subr.mxu0 0.0
    %2192 = vmatpush1.msra.mxu0 %v76
    %2193 = vmatprep.subr.mxu0 0.0
    %2194 = vmatpush1.msra.mxu0 %v75
    %2195 = vmatprep.subr.mxu0 0.0
    %2196 = vmatpush2.msra.mxu0 0.0
    %2197 = vmatprep.subr.mxu0 0.0
    %2198 = vmatpush2.msra.mxu0 0.0
    %2199 = vmatprep.subr.mxu0 0.0
    %2200 = vmatpush2.msra.mxu0 0.0
    %2201 = vmatprep.subr.mxu0 0.0
    %2202 = vmatpush2.msra.mxu0 0.0
    %2203 = vmatprep.subr.mxu0 0.0
    %2204 = vmatpush2.msra.mxu0 0.0
    %2205 = vmatprep.subr.mxu0 0.0
    %2206 = vmatpush2.msra.mxu0 0.0
    %2207 = vmatprep.subr.mxu0 0.0
    %2208 = vmatpush2.msra.mxu0 0.0
    %2209 = vmatprep.subr.mxu0 0.0
    %2210 = vmatpush2.msra.mxu0 0.0
    %2211 = vmatprep.subr.mxu0 0.0
    %2212 = vmatpush2.msra.mxu0 0.0
    %2213 = vmatprep.subr.mxu0 0.0
    %2214 = vmatpush2.msra.mxu0 0.0
    %2215 = vmatprep.subr.mxu0 0.0
    %2216 = vmatpush2.msra.mxu0 0.0
    %2217 = vmatprep.subr.mxu0 0.0
    %2218 = vmatpush2.msra.mxu0 0.0
    %2219 = vmatprep.subr.mxu0 0.0
    %2220 = vmatpush2.msra.mxu0 0.0
    %2221 = vmatprep.subr.mxu0 0.0
    %2222 = vmatpush2.msra.mxu0 0.0
    %2223 = vmatprep.subr.mxu0 0.0
    %2224 = vmatpush2.msra.mxu0 0.0
    %2225 = vmatprep.subr.mxu0 0.0
    %2226 = vmatpush2.msra.mxu0 0.0
    %2227 = vmatprep.mubr.f32.mxu0 0.0
    %2228 = vmatmul.mubr.f32.gmra.mxu0 %v2161
    %v2229 = vpop.f32.mrf.mxu0
    %v2230 = vadd.f32 %v1660, %v2229
    %v2231 = vpop.f32.mrf.mxu0
    %2232 = vdwg.mxu0
    %2234 = vrot.lane.b32.xlu0 %v2230, 80
    %v2235 = vpop.permute.xlu0 %2234
    %vm2237 = vcmask 779904
    %2238 = vst.msk [vmem:[#allocation7] sm:$0x3] %vm2237, %v2235
    %2239 = vmatprep.subr.mxu0 0.0
    %2240 = vmatpush1.msra.mxu0 0.0
    %2241 = vmatprep.subr.mxu0 0.0
    %2242 = vmatpush1.msra.mxu0 0.0
    %2243 = vmatprep.subr.mxu0 0.0
    %2244 = vmatpush1.msra.mxu0 0.0
    %2245 = vmatprep.subr.mxu0 0.0
    %2246 = vmatpush1.msra.mxu0 0.0
    %2247 = vmatprep.subr.mxu0 0.0
    %2248 = vmatpush1.msra.mxu0 0.0
    %2249 = vmatprep.subr.mxu0 0.0
    %2250 = vmatpush1.msra.mxu0 0.0
    %2251 = vmatprep.subr.mxu0 0.0
    %2252 = vmatpush1.msra.mxu0 0.0
    %2253 = vmatprep.subr.mxu0 0.0
    %2254 = vmatpush1.msra.mxu0 0.0
    %2255 = vmatprep.subr.mxu0 0.0
    %2256 = vmatpush1.msra.mxu0 0.0
    %2257 = vmatprep.subr.mxu0 0.0
    %2258 = vmatpush1.msra.mxu0 0.0
    %2259 = vmatprep.subr.mxu0 0.0
    %2260 = vmatpush1.msra.mxu0 0.0
    %2261 = vmatprep.subr.mxu0 0.0
    %2262 = vmatpush1.msra.mxu0 0.0
    %2263 = vmatprep.subr.mxu0 0.0
    %2264 = vmatpush1.msra.mxu0 %v73
    %2265 = vmatprep.subr.mxu0 0.0
    %2266 = vmatpush1.msra.mxu0 %v72
    %2267 = vmatprep.subr.mxu0 0.0
    %2268 = vmatpush1.msra.mxu0 %v71
    %2269 = vmatprep.subr.mxu0 0.0
    %2270 = vmatpush1.msra.mxu0 %v70
    %2271 = vmatprep.subr.mxu0 0.0
    %2272 = vmatpush2.msra.mxu0 0.0
    %2273 = vmatprep.subr.mxu0 0.0
    %2274 = vmatpush2.msra.mxu0 0.0
    %2275 = vmatprep.subr.mxu0 0.0
    %2276 = vmatpush2.msra.mxu0 0.0
    %2277 = vmatprep.subr.mxu0 0.0
    %2278 = vmatpush2.msra.mxu0 0.0
    %2279 = vmatprep.subr.mxu0 0.0
    %2280 = vmatpush2.msra.mxu0 0.0
    %2281 = vmatprep.subr.mxu0 0.0
    %2282 = vmatpush2.msra.mxu0 0.0
    %2283 = vmatprep.subr.mxu0 0.0
    %2284 = vmatpush2.msra.mxu0 0.0
    %2285 = vmatprep.subr.mxu0 0.0
    %2286 = vmatpush2.msra.mxu0 0.0
    %2287 = vmatprep.subr.mxu0 0.0
    %2288 = vmatpush2.msra.mxu0 0.0
    %2289 = vmatprep.subr.mxu0 0.0
    %2290 = vmatpush2.msra.mxu0 0.0
    %2291 = vmatprep.subr.mxu0 0.0
    %2292 = vmatpush2.msra.mxu0 0.0
    %2293 = vmatprep.subr.mxu0 0.0
    %2294 = vmatpush2.msra.mxu0 0.0
    %2295 = vmatprep.subr.mxu0 0.0
    %2296 = vmatpush2.msra.mxu0 0.0
    %2297 = vmatprep.subr.mxu0 0.0
    %2298 = vmatpush2.msra.mxu0 0.0
    %2299 = vmatprep.subr.mxu0 0.0
    %2300 = vmatpush2.msra.mxu0 0.0
    %2301 = vmatprep.subr.mxu0 0.0
    %2302 = vmatpush2.msra.mxu0 0.0
    %2303 = vmatprep.mubr.f32.mxu0 0.0
    %2304 = vmatmul.mubr.f32.gmra.mxu0 %v2161
    %v2305 = vpop.f32.mrf.mxu0
    %v2306 = vadd.f32 0.0, %v2305
    %v2307 = vpop.f32.mrf.mxu0
    %2308 = vdwg.mxu0
    %v2309 = vsel %vm155, %v2230, 0
    %2311 = vmatprep.subr.mxu0 0.0
    %2312 = vmatpush1.msra.mxu0 0.0
    %2313 = vmatprep.subr.mxu0 0.0
    %2314 = vmatpush1.msra.mxu0 0.0
    %2315 = vmatprep.subr.mxu0 0.0
    %2316 = vmatpush1.msra.mxu0 0.0
    %2317 = vmatprep.subr.mxu0 0.0
    %2318 = vmatpush1.msra.mxu0 0.0
    %2319 = vmatprep.subr.mxu0 0.0
    %2320 = vmatpush1.msra.mxu0 0.0
    %2321 = vmatprep.subr.mxu0 0.0
    %2322 = vmatpush1.msra.mxu0 0.0
    %2323 = vmatprep.subr.mxu0 0.0
    %2324 = vmatpush1.msra.mxu0 0.0
    %2325 = vmatprep.subr.mxu0 0.0
    %2326 = vmatpush1.msra.mxu0 0.0
    %2327 = vmatprep.subr.mxu0 0.0
    %2328 = vmatpush1.msra.mxu0 0.0
    %2329 = vmatprep.subr.mxu0 0.0
    %2330 = vmatpush1.msra.mxu0 0.0
    %2331 = vmatprep.subr.mxu0 0.0
    %2332 = vmatpush1.msra.mxu0 0.0
    %2333 = vmatprep.subr.mxu0 0.0
    %2334 = vmatpush1.msra.mxu0 0.0
    %2335 = vmatprep.subr.mxu0 0.0
    %2336 = vmatpush1.msra.mxu0 0.0
    %2337 = vmatprep.subr.mxu0 0.0
    %2338 = vmatpush1.msra.mxu0 0.0
    %2339 = vmatprep.subr.mxu0 0.0
    %2340 = vmatpush1.msra.mxu0 %v69
    %2341 = vmatprep.subr.mxu0 0.0
    %2342 = vmatpush1.msra.mxu0 %v68
    %2343 = vmatprep.subr.mxu0 0.0
    %2344 = vmatpush2.msra.mxu0 0.0
    %2345 = vmatprep.subr.mxu0 0.0
    %2346 = vmatpush2.msra.mxu0 0.0
    %2347 = vmatprep.subr.mxu0 0.0
    %2348 = vmatpush2.msra.mxu0 0.0
    %2349 = vmatprep.subr.mxu0 0.0
    %2350 = vmatpush2.msra.mxu0 0.0
    %2351 = vmatprep.subr.mxu0 0.0
    %2352 = vmatpush2.msra.mxu0 0.0
    %2353 = vmatprep.subr.mxu0 0.0
    %2354 = vmatpush2.msra.mxu0 0.0
    %2355 = vmatprep.subr.mxu0 0.0
    %2356 = vmatpush2.msra.mxu0 0.0
    %2357 = vmatprep.subr.mxu0 0.0
    %2358 = vmatpush2.msra.mxu0 0.0
    %2359 = vmatprep.subr.mxu0 0.0
    %2360 = vmatpush2.msra.mxu0 0.0
    %2361 = vmatprep.subr.mxu0 0.0
    %2362 = vmatpush2.msra.mxu0 0.0
    %2363 = vmatprep.subr.mxu0 0.0
    %2364 = vmatpush2.msra.mxu0 0.0
    %2365 = vmatprep.subr.mxu0 0.0
    %2366 = vmatpush2.msra.mxu0 0.0
    %2367 = vmatprep.subr.mxu0 0.0
    %2368 = vmatpush2.msra.mxu0 0.0
    %2369 = vmatprep.subr.mxu0 0.0
    %2370 = vmatpush2.msra.mxu0 0.0
    %2371 = vmatprep.subr.mxu0 0.0
    %2372 = vmatpush2.msra.mxu0 0.0
    %2373 = vmatprep.subr.mxu0 0.0
    %2374 = vmatpush2.msra.mxu0 0.0
    %2375 = vmatprep.mubr.f32.mxu0 0.0
    %2376 = vmatmul.mubr.f32.gmra.mxu0 %v2309
    %v2377 = vpop.f32.mrf.mxu0
    %v2378 = vadd.f32 %v2306, %v2377
    %v2379 = vpop.f32.mrf.mxu0
    %2380 = vdwg.mxu0
    %v2381 = vadd.f32 %v2378, %v1629
    %v2382 = vxor.u32 %v2381, 2147483648
    %v2383 = vmul.f32 %v2382, 1.442695
    %v2384 = vpow.pop %v2383
    %v2385 = vadd.f32 %v2384, 1.0
    %v2386 = vrcp.pop %v2385
    %v2387 = vmul.f32 1.0, %v2386
    %v2388 = vtanh.pop %v2381
    %v2389 = vmul.f32 %v2387, %v2151
    %2391 = vrot.lane.b32.xlu0 %v2388, 64
    %v2392 = vpop.permute.xlu0 %2391
    %v2394 = vmul.f32 %v2387, %v2392
    %2396 = vrot.lane.b32.xlu0 %v2394, 32
    %v2397 = vpop.permute.xlu0 %2396
    %v2399 = vadd.f32 %v2389, %v2397
    %v2400 = vtanh.pop %v2399
    %2402 = vrot.lane.b32.xlu0 %v2400, 64
    %v2403 = vpop.permute.xlu0 %2402
    %v2405 = vmul.f32 %v2387, %v2403
    %2407 = vrot.lane.b32.xlu0 %v2405, 32
    %v2408 = vpop.permute.xlu0 %2407
    %v2409 = vsel %vm81, %v2408, 0
    %2411 = vmatprep.subr.mxu0 0.0
    %2412 = vmatpush1.msra.mxu0 0.0
    %2413 = vmatprep.subr.mxu0 0.0
    %2414 = vmatpush1.msra.mxu0 0.0
    %2415 = vmatprep.subr.mxu0 0.0
    %2416 = vmatpush1.msra.mxu0 0.0
    %2417 = vmatprep.subr.mxu0 0.0
    %2418 = vmatpush1.msra.mxu0 0.0
    %2419 = vmatprep.subr.mxu0 0.0
    %2420 = vmatpush1.msra.mxu0 0.0
    %2421 = vmatprep.subr.mxu0 0.0
    %2422 = vmatpush1.msra.mxu0 0.0
    %2423 = vmatprep.subr.mxu0 0.0
    %2424 = vmatpush1.msra.mxu0 0.0
    %2425 = vmatprep.subr.mxu0 0.0
    %2426 = vmatpush1.msra.mxu0 0.0
    %2427 = vmatprep.subr.mxu0 0.0
    %2428 = vmatpush1.msra.mxu0 0.0
    %2429 = vmatprep.subr.mxu0 0.0
    %2430 = vmatpush1.msra.mxu0 0.0
    %2431 = vmatprep.subr.mxu0 0.0
    %2432 = vmatpush1.msra.mxu0 0.0
    %2433 = vmatprep.subr.mxu0 0.0
    %2434 = vmatpush1.msra.mxu0 0.0
    %2435 = vmatprep.subr.mxu0 0.0
    %2436 = vmatpush1.msra.mxu0 %v78
    %2437 = vmatprep.subr.mxu0 0.0
    %2438 = vmatpush1.msra.mxu0 %v77
    %2439 = vmatprep.subr.mxu0 0.0
    %2440 = vmatpush1.msra.mxu0 %v76
    %2441 = vmatprep.subr.mxu0 0.0
    %2442 = vmatpush1.msra.mxu0 %v75
    %2443 = vmatprep.subr.mxu0 0.0
    %2444 = vmatpush2.msra.mxu0 0.0
    %2445 = vmatprep.subr.mxu0 0.0
    %2446 = vmatpush2.msra.mxu0 0.0
    %2447 = vmatprep.subr.mxu0 0.0
    %2448 = vmatpush2.msra.mxu0 0.0
    %2449 = vmatprep.subr.mxu0 0.0
    %2450 = vmatpush2.msra.mxu0 0.0
    %2451 = vmatprep.subr.mxu0 0.0
    %2452 = vmatpush2.msra.mxu0 0.0
    %2453 = vmatprep.subr.mxu0 0.0
    %2454 = vmatpush2.msra.mxu0 0.0
    %2455 = vmatprep.subr.mxu0 0.0
    %2456 = vmatpush2.msra.mxu0 0.0
    %2457 = vmatprep.subr.mxu0 0.0
    %2458 = vmatpush2.msra.mxu0 0.0
    %2459 = vmatprep.subr.mxu0 0.0
    %2460 = vmatpush2.msra.mxu0 0.0
    %2461 = vmatprep.subr.mxu0 0.0
    %2462 = vmatpush2.msra.mxu0 0.0
    %2463 = vmatprep.subr.mxu0 0.0
    %2464 = vmatpush2.msra.mxu0 0.0
    %2465 = vmatprep.subr.mxu0 0.0
    %2466 = vmatpush2.msra.mxu0 0.0
    %2467 = vmatprep.subr.mxu0 0.0
    %2468 = vmatpush2.msra.mxu0 0.0
    %2469 = vmatprep.subr.mxu0 0.0
    %2470 = vmatpush2.msra.mxu0 0.0
    %2471 = vmatprep.subr.mxu0 0.0
    %2472 = vmatpush2.msra.mxu0 0.0
    %2473 = vmatprep.subr.mxu0 0.0
    %2474 = vmatpush2.msra.mxu0 0.0
    %2475 = vmatprep.mubr.f32.mxu0 0.0
    %2476 = vmatmul.mubr.f32.gmra.mxu0 %v2409
    %v2477 = vpop.f32.mrf.mxu0
    %v2478 = vadd.f32 %v1660, %v2477
    %v2479 = vpop.f32.mrf.mxu0
    %2480 = vdwg.mxu0
    %2482 = vrot.lane.b32.xlu0 %v2478, 64
    %v2483 = vpop.permute.xlu0 %2482
    %vm2485 = vcmask 648704
    %2486 = vst.msk [vmem:[#allocation7] sm:$0x3] %vm2485, %v2483
    %2487 = vmatprep.subr.mxu0 0.0
    %2488 = vmatpush1.msra.mxu0 0.0
    %2489 = vmatprep.subr.mxu0 0.0
    %2490 = vmatpush1.msra.mxu0 0.0
    %2491 = vmatprep.subr.mxu0 0.0
    %2492 = vmatpush1.msra.mxu0 0.0
    %2493 = vmatprep.subr.mxu0 0.0
    %2494 = vmatpush1.msra.mxu0 0.0
    %2495 = vmatprep.subr.mxu0 0.0
    %2496 = vmatpush1.msra.mxu0 0.0
    %2497 = vmatprep.subr.mxu0 0.0
    %2498 = vmatpush1.msra.mxu0 0.0
    %2499 = vmatprep.subr.mxu0 0.0
    %2500 = vmatpush1.msra.mxu0 0.0
    %2501 = vmatprep.subr.mxu0 0.0
    %2502 = vmatpush1.msra.mxu0 0.0
    %2503 = vmatprep.subr.mxu0 0.0
    %2504 = vmatpush1.msra.mxu0 0.0
    %2505 = vmatprep.subr.mxu0 0.0
    %2506 = vmatpush1.msra.mxu0 0.0
    %2507 = vmatprep.subr.mxu0 0.0
    %2508 = vmatpush1.msra.mxu0 0.0
    %2509 = vmatprep.subr.mxu0 0.0
    %2510 = vmatpush1.msra.mxu0 0.0
    %2511 = vmatprep.subr.mxu0 0.0
    %2512 = vmatpush1.msra.mxu0 %v73
    %2513 = vmatprep.subr.mxu0 0.0
    %2514 = vmatpush1.msra.mxu0 %v72
    %2515 = vmatprep.subr.mxu0 0.0
    %2516 = vmatpush1.msra.mxu0 %v71
    %2517 = vmatprep.subr.mxu0 0.0
    %2518 = vmatpush1.msra.mxu0 %v70
    %2519 = vmatprep.subr.mxu0 0.0
    %2520 = vmatpush2.msra.mxu0 0.0
    %2521 = vmatprep.subr.mxu0 0.0
    %2522 = vmatpush2.msra.mxu0 0.0
    %2523 = vmatprep.subr.mxu0 0.0
    %2524 = vmatpush2.msra.mxu0 0.0
    %2525 = vmatprep.subr.mxu0 0.0
    %2526 = vmatpush2.msra.mxu0 0.0
    %2527 = vmatprep.subr.mxu0 0.0
    %2528 = vmatpush2.msra.mxu0 0.0
    %2529 = vmatprep.subr.mxu0 0.0
    %2530 = vmatpush2.msra.mxu0 0.0
    %2531 = vmatprep.subr.mxu0 0.0
    %2532 = vmatpush2.msra.mxu0 0.0
    %2533 = vmatprep.subr.mxu0 0.0
    %2534 = vmatpush2.msra.mxu0 0.0
    %2535 = vmatprep.subr.mxu0 0.0
    %2536 = vmatpush2.msra.mxu0 0.0
    %2537 = vmatprep.subr.mxu0 0.0
    %2538 = vmatpush2.msra.mxu0 0.0
    %2539 = vmatprep.subr.mxu0 0.0
    %2540 = vmatpush2.msra.mxu0 0.0
    %2541 = vmatprep.subr.mxu0 0.0
    %2542 = vmatpush2.msra.mxu0 0.0
    %2543 = vmatprep.subr.mxu0 0.0
    %2544 = vmatpush2.msra.mxu0 0.0
    %2545 = vmatprep.subr.mxu0 0.0
    %2546 = vmatpush2.msra.mxu0 0.0
    %2547 = vmatprep.subr.mxu0 0.0
    %2548 = vmatpush2.msra.mxu0 0.0
    %2549 = vmatprep.subr.mxu0 0.0
    %2550 = vmatpush2.msra.mxu0 0.0
    %2551 = vmatprep.mubr.f32.mxu0 0.0
    %2552 = vmatmul.mubr.f32.gmra.mxu0 %v2409
    %v2553 = vpop.f32.mrf.mxu0
    %v2554 = vadd.f32 0.0, %v2553
    %v2555 = vpop.f32.mrf.mxu0
    %2556 = vdwg.mxu0
    %v2557 = vsel %vm155, %v2478, 0
    %2559 = vmatprep.subr.mxu0 0.0
    %2560 = vmatpush1.msra.mxu0 0.0
    %2561 = vmatprep.subr.mxu0 0.0
    %2562 = vmatpush1.msra.mxu0 0.0
    %2563 = vmatprep.subr.mxu0 0.0
    %2564 = vmatpush1.msra.mxu0 0.0
    %2565 = vmatprep.subr.mxu0 0.0
    %2566 = vmatpush1.msra.mxu0 0.0
    %2567 = vmatprep.subr.mxu0 0.0
    %2568 = vmatpush1.msra.mxu0 0.0
    %2569 = vmatprep.subr.mxu0 0.0
    %2570 = vmatpush1.msra.mxu0 0.0
    %2571 = vmatprep.subr.mxu0 0.0
    %2572 = vmatpush1.msra.mxu0 0.0
    %2573 = vmatprep.subr.mxu0 0.0
    %2574 = vmatpush1.msra.mxu0 0.0
    %2575 = vmatprep.subr.mxu0 0.0
    %2576 = vmatpush1.msra.mxu0 0.0
    %2577 = vmatprep.subr.mxu0 0.0
    %2578 = vmatpush1.msra.mxu0 0.0
    %2579 = vmatprep.subr.mxu0 0.0
    %2580 = vmatpush1.msra.mxu0 0.0
    %2581 = vmatprep.subr.mxu0 0.0
    %2582 = vmatpush1.msra.mxu0 0.0
    %2583 = vmatprep.subr.mxu0 0.0
    %2584 = vmatpush1.msra.mxu0 0.0
    %2585 = vmatprep.subr.mxu0 0.0
    %2586 = vmatpush1.msra.mxu0 0.0
    %2587 = vmatprep.subr.mxu0 0.0
    %2588 = vmatpush1.msra.mxu0 %v69
    %2589 = vmatprep.subr.mxu0 0.0
    %2590 = vmatpush1.msra.mxu0 %v68
    %2591 = vmatprep.subr.mxu0 0.0
    %2592 = vmatpush2.msra.mxu0 0.0
    %2593 = vmatprep.subr.mxu0 0.0
    %2594 = vmatpush2.msra.mxu0 0.0
    %2595 = vmatprep.subr.mxu0 0.0
    %2596 = vmatpush2.msra.mxu0 0.0
    %2597 = vmatprep.subr.mxu0 0.0
    %2598 = vmatpush2.msra.mxu0 0.0
    %2599 = vmatprep.subr.mxu0 0.0
    %2600 = vmatpush2.msra.mxu0 0.0
    %2601 = vmatprep.subr.mxu0 0.0
    %2602 = vmatpush2.msra.mxu0 0.0
    %2603 = vmatprep.subr.mxu0 0.0
    %2604 = vmatpush2.msra.mxu0 0.0
    %2605 = vmatprep.subr.mxu0 0.0
    %2606 = vmatpush2.msra.mxu0 0.0
    %2607 = vmatprep.subr.mxu0 0.0
    %2608 = vmatpush2.msra.mxu0 0.0
    %2609 = vmatprep.subr.mxu0 0.0
    %2610 = vmatpush2.msra.mxu0 0.0
    %2611 = vmatprep.subr.mxu0 0.0
    %2612 = vmatpush2.msra.mxu0 0.0
    %2613 = vmatprep.subr.mxu0 0.0
    %2614 = vmatpush2.msra.mxu0 0.0
    %2615 = vmatprep.subr.mxu0 0.0
    %2616 = vmatpush2.msra.mxu0 0.0
    %2617 = vmatprep.subr.mxu0 0.0
    %2618 = vmatpush2.msra.mxu0 0.0
    %2619 = vmatprep.subr.mxu0 0.0
    %2620 = vmatpush2.msra.mxu0 0.0
    %2621 = vmatprep.subr.mxu0 0.0
    %2622 = vmatpush2.msra.mxu0 0.0
    %2623 = vmatprep.mubr.f32.mxu0 0.0
    %2624 = vmatmul.mubr.f32.gmra.mxu0 %v2557
    %v2625 = vpop.f32.mrf.mxu0
    %v2626 = vadd.f32 %v2554, %v2625
    %v2627 = vpop.f32.mrf.mxu0
    %2628 = vdwg.mxu0
    %v2629 = vadd.f32 %v2626, %v1629
    %v2630 = vxor.u32 %v2629, 2147483648
    %v2631 = vmul.f32 %v2630, 1.442695
    %v2632 = vpow.pop %v2631
    %v2633 = vadd.f32 %v2632, 1.0
    %v2634 = vrcp.pop %v2633
    %v2635 = vmul.f32 1.0, %v2634
    %v2636 = vtanh.pop %v2629
    %v2637 = vmul.f32 %v2635, %v2399
    %2639 = vrot.lane.b32.xlu0 %v2636, 64
    %v2640 = vpop.permute.xlu0 %2639
    %v2642 = vmul.f32 %v2635, %v2640
    %2644 = vrot.lane.b32.xlu0 %v2642, 32
    %v2645 = vpop.permute.xlu0 %2644
    %v2647 = vadd.f32 %v2637, %v2645
    %v2648 = vtanh.pop %v2647
    %2650 = vrot.lane.b32.xlu0 %v2648, 64
    %v2651 = vpop.permute.xlu0 %2650
    %v2653 = vmul.f32 %v2635, %v2651
    %2655 = vrot.lane.b32.xlu0 %v2653, 32
    %v2656 = vpop.permute.xlu0 %2655
    %v2657 = vsel %vm81, %v2656, 0
    %2659 = vmatprep.subr.mxu0 0.0
    %2660 = vmatpush1.msra.mxu0 0.0
    %2661 = vmatprep.subr.mxu0 0.0
    %2662 = vmatpush1.msra.mxu0 0.0
    %2663 = vmatprep.subr.mxu0 0.0
    %2664 = vmatpush1.msra.mxu0 0.0
    %2665 = vmatprep.subr.mxu0 0.0
    %2666 = vmatpush1.msra.mxu0 0.0
    %2667 = vmatprep.subr.mxu0 0.0
    %2668 = vmatpush1.msra.mxu0 0.0
    %2669 = vmatprep.subr.mxu0 0.0
    %2670 = vmatpush1.msra.mxu0 0.0
    %2671 = vmatprep.subr.mxu0 0.0
    %2672 = vmatpush1.msra.mxu0 0.0
    %2673 = vmatprep.subr.mxu0 0.0
    %2674 = vmatpush1.msra.mxu0 0.0
    %2675 = vmatprep.subr.mxu0 0.0
    %2676 = vmatpush1.msra.mxu0 0.0
    %2677 = vmatprep.subr.mxu0 0.0
    %2678 = vmatpush1.msra.mxu0 0.0
    %2679 = vmatprep.subr.mxu0 0.0
    %2680 = vmatpush1.msra.mxu0 0.0
    %2681 = vmatprep.subr.mxu0 0.0
    %2682 = vmatpush1.msra.mxu0 0.0
    %2683 = vmatprep.subr.mxu0 0.0
    %2684 = vmatpush1.msra.mxu0 %v78
    %2685 = vmatprep.subr.mxu0 0.0
    %2686 = vmatpush1.msra.mxu0 %v77
    %2687 = vmatprep.subr.mxu0 0.0
    %2688 = vmatpush1.msra.mxu0 %v76
    %2689 = vmatprep.subr.mxu0 0.0
    %2690 = vmatpush1.msra.mxu0 %v75
    %2691 = vmatprep.subr.mxu0 0.0
    %2692 = vmatpush2.msra.mxu0 0.0
    %2693 = vmatprep.subr.mxu0 0.0
    %2694 = vmatpush2.msra.mxu0 0.0
    %2695 = vmatprep.subr.mxu0 0.0
    %2696 = vmatpush2.msra.mxu0 0.0
    %2697 = vmatprep.subr.mxu0 0.0
    %2698 = vmatpush2.msra.mxu0 0.0
    %2699 = vmatprep.subr.mxu0 0.0
    %2700 = vmatpush2.msra.mxu0 0.0
    %2701 = vmatprep.subr.mxu0 0.0
    %2702 = vmatpush2.msra.mxu0 0.0
    %2703 = vmatprep.subr.mxu0 0.0
    %2704 = vmatpush2.msra.mxu0 0.0
    %2705 = vmatprep.subr.mxu0 0.0
    %2706 = vmatpush2.msra.mxu0 0.0
    %2707 = vmatprep.subr.mxu0 0.0
    %2708 = vmatpush2.msra.mxu0 0.0
    %2709 = vmatprep.subr.mxu0 0.0
    %2710 = vmatpush2.msra.mxu0 0.0
    %2711 = vmatprep.subr.mxu0 0.0
    %2712 = vmatpush2.msra.mxu0 0.0
    %2713 = vmatprep.subr.mxu0 0.0
    %2714 = vmatpush2.msra.mxu0 0.0
    %2715 = vmatprep.subr.mxu0 0.0
    %2716 = vmatpush2.msra.mxu0 0.0
    %2717 = vmatprep.subr.mxu0 0.0
    %2718 = vmatpush2.msra.mxu0 0.0
    %2719 = vmatprep.subr.mxu0 0.0
    %2720 = vmatpush2.msra.mxu0 0.0
    %2721 = vmatprep.subr.mxu0 0.0
    %2722 = vmatpush2.msra.mxu0 0.0
    %2723 = vmatprep.mubr.f32.mxu0 0.0
    %2724 = vmatmul.mubr.f32.gmra.mxu0 %v2657
    %v2725 = vpop.f32.mrf.mxu0
    %v2726 = vadd.f32 %v1660, %v2725
    %v2727 = vpop.f32.mrf.mxu0
    %2728 = vdwg.mxu0
    %2730 = vrot.lane.b32.xlu0 %v2726, 48
    %v2731 = vpop.permute.xlu0 %2730
    %vm2733 = vcmask 517504
    %2734 = vst.msk [vmem:[#allocation7] sm:$0x3] %vm2733, %v2731
    %2735 = vmatprep.subr.mxu0 0.0
    %2736 = vmatpush1.msra.mxu0 0.0
    %2737 = vmatprep.subr.mxu0 0.0
    %2738 = vmatpush1.msra.mxu0 0.0
    %2739 = vmatprep.subr.mxu0 0.0
    %2740 = vmatpush1.msra.mxu0 0.0
    %2741 = vmatprep.subr.mxu0 0.0
    %2742 = vmatpush1.msra.mxu0 0.0
    %2743 = vmatprep.subr.mxu0 0.0
    %2744 = vmatpush1.msra.mxu0 0.0
    %2745 = vmatprep.subr.mxu0 0.0
    %2746 = vmatpush1.msra.mxu0 0.0
    %2747 = vmatprep.subr.mxu0 0.0
    %2748 = vmatpush1.msra.mxu0 0.0
    %2749 = vmatprep.subr.mxu0 0.0
    %2750 = vmatpush1.msra.mxu0 0.0
    %2751 = vmatprep.subr.mxu0 0.0
    %2752 = vmatpush1.msra.mxu0 0.0
    %2753 = vmatprep.subr.mxu0 0.0
    %2754 = vmatpush1.msra.mxu0 0.0
    %2755 = vmatprep.subr.mxu0 0.0
    %2756 = vmatpush1.msra.mxu0 0.0
    %2757 = vmatprep.subr.mxu0 0.0
    %2758 = vmatpush1.msra.mxu0 0.0
    %2759 = vmatprep.subr.mxu0 0.0
    %2760 = vmatpush1.msra.mxu0 %v73
    %2761 = vmatprep.subr.mxu0 0.0
    %2762 = vmatpush1.msra.mxu0 %v72
    %2763 = vmatprep.subr.mxu0 0.0
    %2764 = vmatpush1.msra.mxu0 %v71
    %2765 = vmatprep.subr.mxu0 0.0
    %2766 = vmatpush1.msra.mxu0 %v70
    %2767 = vmatprep.subr.mxu0 0.0
    %2768 = vmatpush2.msra.mxu0 0.0
    %2769 = vmatprep.subr.mxu0 0.0
    %2770 = vmatpush2.msra.mxu0 0.0
    %2771 = vmatprep.subr.mxu0 0.0
    %2772 = vmatpush2.msra.mxu0 0.0
    %2773 = vmatprep.subr.mxu0 0.0
    %2774 = vmatpush2.msra.mxu0 0.0
    %2775 = vmatprep.subr.mxu0 0.0
    %2776 = vmatpush2.msra.mxu0 0.0
    %2777 = vmatprep.subr.mxu0 0.0
    %2778 = vmatpush2.msra.mxu0 0.0
    %2779 = vmatprep.subr.mxu0 0.0
    %2780 = vmatpush2.msra.mxu0 0.0
    %2781 = vmatprep.subr.mxu0 0.0
    %2782 = vmatpush2.msra.mxu0 0.0
    %2783 = vmatprep.subr.mxu0 0.0
    %2784 = vmatpush2.msra.mxu0 0.0
    %2785 = vmatprep.subr.mxu0 0.0
    %2786 = vmatpush2.msra.mxu0 0.0
    %2787 = vmatprep.subr.mxu0 0.0
    %2788 = vmatpush2.msra.mxu0 0.0
    %2789 = vmatprep.subr.mxu0 0.0
    %2790 = vmatpush2.msra.mxu0 0.0
    %2791 = vmatprep.subr.mxu0 0.0
    %2792 = vmatpush2.msra.mxu0 0.0
    %2793 = vmatprep.subr.mxu0 0.0
    %2794 = vmatpush2.msra.mxu0 0.0
    %2795 = vmatprep.subr.mxu0 0.0
    %2796 = vmatpush2.msra.mxu0 0.0
    %2797 = vmatprep.subr.mxu0 0.0
    %2798 = vmatpush2.msra.mxu0 0.0
    %2799 = vmatprep.mubr.f32.mxu0 0.0
    %2800 = vmatmul.mubr.f32.gmra.mxu0 %v2657
    %v2801 = vpop.f32.mrf.mxu0
    %v2802 = vadd.f32 0.0, %v2801
    %v2803 = vpop.f32.mrf.mxu0
    %2804 = vdwg.mxu0
    %v2805 = vsel %vm155, %v2726, 0
    %2807 = vmatprep.subr.mxu0 0.0
    %2808 = vmatpush1.msra.mxu0 0.0
    %2809 = vmatprep.subr.mxu0 0.0
    %2810 = vmatpush1.msra.mxu0 0.0
    %2811 = vmatprep.subr.mxu0 0.0
    %2812 = vmatpush1.msra.mxu0 0.0
    %2813 = vmatprep.subr.mxu0 0.0
    %2814 = vmatpush1.msra.mxu0 0.0
    %2815 = vmatprep.subr.mxu0 0.0
    %2816 = vmatpush1.msra.mxu0 0.0
    %2817 = vmatprep.subr.mxu0 0.0
    %2818 = vmatpush1.msra.mxu0 0.0
    %2819 = vmatprep.subr.mxu0 0.0
    %2820 = vmatpush1.msra.mxu0 0.0
    %2821 = vmatprep.subr.mxu0 0.0
    %2822 = vmatpush1.msra.mxu0 0.0
    %2823 = vmatprep.subr.mxu0 0.0
    %2824 = vmatpush1.msra.mxu0 0.0
    %2825 = vmatprep.subr.mxu0 0.0
    %2826 = vmatpush1.msra.mxu0 0.0
    %2827 = vmatprep.subr.mxu0 0.0
    %2828 = vmatpush1.msra.mxu0 0.0
    %2829 = vmatprep.subr.mxu0 0.0
    %2830 = vmatpush1.msra.mxu0 0.0
    %2831 = vmatprep.subr.mxu0 0.0
    %2832 = vmatpush1.msra.mxu0 0.0
    %2833 = vmatprep.subr.mxu0 0.0
    %2834 = vmatpush1.msra.mxu0 0.0
    %2835 = vmatprep.subr.mxu0 0.0
    %2836 = vmatpush1.msra.mxu0 %v69
    %2837 = vmatprep.subr.mxu0 0.0
    %2838 = vmatpush1.msra.mxu0 %v68
    %2839 = vmatprep.subr.mxu0 0.0
    %2840 = vmatpush2.msra.mxu0 0.0
    %2841 = vmatprep.subr.mxu0 0.0
    %2842 = vmatpush2.msra.mxu0 0.0
    %2843 = vmatprep.subr.mxu0 0.0
    %2844 = vmatpush2.msra.mxu0 0.0
    %2845 = vmatprep.subr.mxu0 0.0
    %2846 = vmatpush2.msra.mxu0 0.0
    %2847 = vmatprep.subr.mxu0 0.0
    %2848 = vmatpush2.msra.mxu0 0.0
    %2849 = vmatprep.subr.mxu0 0.0
    %2850 = vmatpush2.msra.mxu0 0.0
    %2851 = vmatprep.subr.mxu0 0.0
    %2852 = vmatpush2.msra.mxu0 0.0
    %2853 = vmatprep.subr.mxu0 0.0
    %2854 = vmatpush2.msra.mxu0 0.0
    %2855 = vmatprep.subr.mxu0 0.0
    %2856 = vmatpush2.msra.mxu0 0.0
    %2857 = vmatprep.subr.mxu0 0.0
    %2858 = vmatpush2.msra.mxu0 0.0
    %2859 = vmatprep.subr.mxu0 0.0
    %2860 = vmatpush2.msra.mxu0 0.0
    %2861 = vmatprep.subr.mxu0 0.0
    %2862 = vmatpush2.msra.mxu0 0.0
    %2863 = vmatprep.subr.mxu0 0.0
    %2864 = vmatpush2.msra.mxu0 0.0
    %2865 = vmatprep.subr.mxu0 0.0
    %2866 = vmatpush2.msra.mxu0 0.0
    %2867 = vmatprep.subr.mxu0 0.0
    %2868 = vmatpush2.msra.mxu0 0.0
    %2869 = vmatprep.subr.mxu0 0.0
    %2870 = vmatpush2.msra.mxu0 0.0
    %2871 = vmatprep.mubr.f32.mxu0 0.0
    %2872 = vmatmul.mubr.f32.gmra.mxu0 %v2805
    %v2873 = vpop.f32.mrf.mxu0
    %v2874 = vadd.f32 %v2802, %v2873
    %v2875 = vpop.f32.mrf.mxu0
    %2876 = vdwg.mxu0
    %v2877 = vadd.f32 %v2874, %v1629
    %v2878 = vxor.u32 %v2877, 2147483648
    %v2879 = vmul.f32 %v2878, 1.442695
    %v2880 = vpow.pop %v2879
    %v2881 = vadd.f32 %v2880, 1.0
    %v2882 = vrcp.pop %v2881
    %v2883 = vmul.f32 1.0, %v2882
    %v2884 = vtanh.pop %v2877
    %v2885 = vmul.f32 %v2883, %v2647
    %2887 = vrot.lane.b32.xlu0 %v2884, 64
    %v2888 = vpop.permute.xlu0 %2887
    %v2890 = vmul.f32 %v2883, %v2888
    %2892 = vrot.lane.b32.xlu0 %v2890, 32
    %v2893 = vpop.permute.xlu0 %2892
    %v2895 = vadd.f32 %v2885, %v2893
    %v2896 = vtanh.pop %v2895
    %2898 = vrot.lane.b32.xlu0 %v2896, 64
    %v2899 = vpop.permute.xlu0 %2898
    %v2901 = vmul.f32 %v2883, %v2899
    %2903 = vrot.lane.b32.xlu0 %v2901, 32
    %v2904 = vpop.permute.xlu0 %2903
    %v2905 = vsel %vm81, %v2904, 0
    %2907 = vmatprep.subr.mxu0 0.0
    %2908 = vmatpush1.msra.mxu0 0.0
    %2909 = vmatprep.subr.mxu0 0.0
    %2910 = vmatpush1.msra.mxu0 0.0
    %2911 = vmatprep.subr.mxu0 0.0
    %2912 = vmatpush1.msra.mxu0 0.0
    %2913 = vmatprep.subr.mxu0 0.0
    %2914 = vmatpush1.msra.mxu0 0.0
    %2915 = vmatprep.subr.mxu0 0.0
    %2916 = vmatpush1.msra.mxu0 0.0
    %2917 = vmatprep.subr.mxu0 0.0
    %2918 = vmatpush1.msra.mxu0 0.0
    %2919 = vmatprep.subr.mxu0 0.0
    %2920 = vmatpush1.msra.mxu0 0.0
    %2921 = vmatprep.subr.mxu0 0.0
    %2922 = vmatpush1.msra.mxu0 0.0
    %2923 = vmatprep.subr.mxu0 0.0
    %2924 = vmatpush1.msra.mxu0 0.0
    %2925 = vmatprep.subr.mxu0 0.0
    %2926 = vmatpush1.msra.mxu0 0.0
    %2927 = vmatprep.subr.mxu0 0.0
    %2928 = vmatpush1.msra.mxu0 0.0
    %2929 = vmatprep.subr.mxu0 0.0
    %2930 = vmatpush1.msra.mxu0 0.0
    %2931 = vmatprep.subr.mxu0 0.0
    %2932 = vmatpush1.msra.mxu0 %v78
    %2933 = vmatprep.subr.mxu0 0.0
    %2934 = vmatpush1.msra.mxu0 %v77
    %2935 = vmatprep.subr.mxu0 0.0
    %2936 = vmatpush1.msra.mxu0 %v76
    %2937 = vmatprep.subr.mxu0 0.0
    %2938 = vmatpush1.msra.mxu0 %v75
    %2939 = vmatprep.subr.mxu0 0.0
    %2940 = vmatpush2.msra.mxu0 0.0
    %2941 = vmatprep.subr.mxu0 0.0
    %2942 = vmatpush2.msra.mxu0 0.0
    %2943 = vmatprep.subr.mxu0 0.0
    %2944 = vmatpush2.msra.mxu0 0.0
    %2945 = vmatprep.subr.mxu0 0.0
    %2946 = vmatpush2.msra.mxu0 0.0
    %2947 = vmatprep.subr.mxu0 0.0
    %2948 = vmatpush2.msra.mxu0 0.0
    %2949 = vmatprep.subr.mxu0 0.0
    %2950 = vmatpush2.msra.mxu0 0.0
    %2951 = vmatprep.subr.mxu0 0.0
    %2952 = vmatpush2.msra.mxu0 0.0
    %2953 = vmatprep.subr.mxu0 0.0
    %2954 = vmatpush2.msra.mxu0 0.0
    %2955 = vmatprep.subr.mxu0 0.0
    %2956 = vmatpush2.msra.mxu0 0.0
    %2957 = vmatprep.subr.mxu0 0.0
    %2958 = vmatpush2.msra.mxu0 0.0
    %2959 = vmatprep.subr.mxu0 0.0
    %2960 = vmatpush2.msra.mxu0 0.0
    %2961 = vmatprep.subr.mxu0 0.0
    %2962 = vmatpush2.msra.mxu0 0.0
    %2963 = vmatprep.subr.mxu0 0.0
    %2964 = vmatpush2.msra.mxu0 0.0
    %2965 = vmatprep.subr.mxu0 0.0
    %2966 = vmatpush2.msra.mxu0 0.0
    %2967 = vmatprep.subr.mxu0 0.0
    %2968 = vmatpush2.msra.mxu0 0.0
    %2969 = vmatprep.subr.mxu0 0.0
    %2970 = vmatpush2.msra.mxu0 0.0
    %2971 = vmatprep.mubr.f32.mxu0 0.0
    %2972 = vmatmul.mubr.f32.gmra.mxu0 %v2905
    %v2973 = vpop.f32.mrf.mxu0
    %v2974 = vadd.f32 %v1660, %v2973
    %v2975 = vpop.f32.mrf.mxu0
    %2976 = vdwg.mxu0
    %2978 = vrot.lane.b32.xlu0 %v2974, 32
    %v2979 = vpop.permute.xlu0 %2978
    %vm2981 = vcmask 386304
    %2982 = vst.msk [vmem:[#allocation7] sm:$0x3] %vm2981, %v2979
    %2983 = vmatprep.subr.mxu0 0.0
    %2984 = vmatpush1.msra.mxu0 0.0
    %2985 = vmatprep.subr.mxu0 0.0
    %2986 = vmatpush1.msra.mxu0 0.0
    %2987 = vmatprep.subr.mxu0 0.0
    %2988 = vmatpush1.msra.mxu0 0.0
    %2989 = vmatprep.subr.mxu0 0.0
    %2990 = vmatpush1.msra.mxu0 0.0
    %2991 = vmatprep.subr.mxu0 0.0
    %2992 = vmatpush1.msra.mxu0 0.0
    %2993 = vmatprep.subr.mxu0 0.0
    %2994 = vmatpush1.msra.mxu0 0.0
    %2995 = vmatprep.subr.mxu0 0.0
    %2996 = vmatpush1.msra.mxu0 0.0
    %2997 = vmatprep.subr.mxu0 0.0
    %2998 = vmatpush1.msra.mxu0 0.0
    %2999 = vmatprep.subr.mxu0 0.0
    %3000 = vmatpush1.msra.mxu0 0.0
    %3001 = vmatprep.subr.mxu0 0.0
    %3002 = vmatpush1.msra.mxu0 0.0
    %3003 = vmatprep.subr.mxu0 0.0
    %3004 = vmatpush1.msra.mxu0 0.0
    %3005 = vmatprep.subr.mxu0 0.0
    %3006 = vmatpush1.msra.mxu0 0.0
    %3007 = vmatprep.subr.mxu0 0.0
    %3008 = vmatpush1.msra.mxu0 %v73
    %3009 = vmatprep.subr.mxu0 0.0
    %3010 = vmatpush1.msra.mxu0 %v72
    %3011 = vmatprep.subr.mxu0 0.0
    %3012 = vmatpush1.msra.mxu0 %v71
    %3013 = vmatprep.subr.mxu0 0.0
    %3014 = vmatpush1.msra.mxu0 %v70
    %3015 = vmatprep.subr.mxu0 0.0
    %3016 = vmatpush2.msra.mxu0 0.0
    %3017 = vmatprep.subr.mxu0 0.0
    %3018 = vmatpush2.msra.mxu0 0.0
    %3019 = vmatprep.subr.mxu0 0.0
    %3020 = vmatpush2.msra.mxu0 0.0
    %3021 = vmatprep.subr.mxu0 0.0
    %3022 = vmatpush2.msra.mxu0 0.0
    %3023 = vmatprep.subr.mxu0 0.0
    %3024 = vmatpush2.msra.mxu0 0.0
    %3025 = vmatprep.subr.mxu0 0.0
    %3026 = vmatpush2.msra.mxu0 0.0
    %3027 = vmatprep.subr.mxu0 0.0
    %3028 = vmatpush2.msra.mxu0 0.0
    %3029 = vmatprep.subr.mxu0 0.0
    %3030 = vmatpush2.msra.mxu0 0.0
    %3031 = vmatprep.subr.mxu0 0.0
    %3032 = vmatpush2.msra.mxu0 0.0
    %3033 = vmatprep.subr.mxu0 0.0
    %3034 = vmatpush2.msra.mxu0 0.0
    %3035 = vmatprep.subr.mxu0 0.0
    %3036 = vmatpush2.msra.mxu0 0.0
    %3037 = vmatprep.subr.mxu0 0.0
    %3038 = vmatpush2.msra.mxu0 0.0
    %3039 = vmatprep.subr.mxu0 0.0
    %3040 = vmatpush2.msra.mxu0 0.0
    %3041 = vmatprep.subr.mxu0 0.0
    %3042 = vmatpush2.msra.mxu0 0.0
    %3043 = vmatprep.subr.mxu0 0.0
    %3044 = vmatpush2.msra.mxu0 0.0
    %3045 = vmatprep.subr.mxu0 0.0
    %3046 = vmatpush2.msra.mxu0 0.0
    %3047 = vmatprep.mubr.f32.mxu0 0.0
    %3048 = vmatmul.mubr.f32.gmra.mxu0 %v2905
    %v3049 = vpop.f32.mrf.mxu0
    %v3050 = vadd.f32 0.0, %v3049
    %v3051 = vpop.f32.mrf.mxu0
    %3052 = vdwg.mxu0
    %v3053 = vsel %vm155, %v2974, 0
    %3055 = vmatprep.subr.mxu0 0.0
    %3056 = vmatpush1.msra.mxu0 0.0
    %3057 = vmatprep.subr.mxu0 0.0
    %3058 = vmatpush1.msra.mxu0 0.0
    %3059 = vmatprep.subr.mxu0 0.0
    %3060 = vmatpush1.msra.mxu0 0.0
    %3061 = vmatprep.subr.mxu0 0.0
    %3062 = vmatpush1.msra.mxu0 0.0
    %3063 = vmatprep.subr.mxu0 0.0
    %3064 = vmatpush1.msra.mxu0 0.0
    %3065 = vmatprep.subr.mxu0 0.0
    %3066 = vmatpush1.msra.mxu0 0.0
    %3067 = vmatprep.subr.mxu0 0.0
    %3068 = vmatpush1.msra.mxu0 0.0
    %3069 = vmatprep.subr.mxu0 0.0
    %3070 = vmatpush1.msra.mxu0 0.0
    %3071 = vmatprep.subr.mxu0 0.0
    %3072 = vmatpush1.msra.mxu0 0.0
    %3073 = vmatprep.subr.mxu0 0.0
    %3074 = vmatpush1.msra.mxu0 0.0
    %3075 = vmatprep.subr.mxu0 0.0
    %3076 = vmatpush1.msra.mxu0 0.0
    %3077 = vmatprep.subr.mxu0 0.0
    %3078 = vmatpush1.msra.mxu0 0.0
    %3079 = vmatprep.subr.mxu0 0.0
    %3080 = vmatpush1.msra.mxu0 0.0
    %3081 = vmatprep.subr.mxu0 0.0
    %3082 = vmatpush1.msra.mxu0 0.0
    %3083 = vmatprep.subr.mxu0 0.0
    %3084 = vmatpush1.msra.mxu0 %v69
    %3085 = vmatprep.subr.mxu0 0.0
    %3086 = vmatpush1.msra.mxu0 %v68
    %3087 = vmatprep.subr.mxu0 0.0
    %3088 = vmatpush2.msra.mxu0 0.0
    %3089 = vmatprep.subr.mxu0 0.0
    %3090 = vmatpush2.msra.mxu0 0.0
    %3091 = vmatprep.subr.mxu0 0.0
    %3092 = vmatpush2.msra.mxu0 0.0
    %3093 = vmatprep.subr.mxu0 0.0
    %3094 = vmatpush2.msra.mxu0 0.0
    %3095 = vmatprep.subr.mxu0 0.0
    %3096 = vmatpush2.msra.mxu0 0.0
    %3097 = vmatprep.subr.mxu0 0.0
    %3098 = vmatpush2.msra.mxu0 0.0
    %3099 = vmatprep.subr.mxu0 0.0
    %3100 = vmatpush2.msra.mxu0 0.0
    %3101 = vmatprep.subr.mxu0 0.0
    %3102 = vmatpush2.msra.mxu0 0.0
    %3103 = vmatprep.subr.mxu0 0.0
    %3104 = vmatpush2.msra.mxu0 0.0
    %3105 = vmatprep.subr.mxu0 0.0
    %3106 = vmatpush2.msra.mxu0 0.0
    %3107 = vmatprep.subr.mxu0 0.0
    %3108 = vmatpush2.msra.mxu0 0.0
    %3109 = vmatprep.subr.mxu0 0.0
    %3110 = vmatpush2.msra.mxu0 0.0
    %3111 = vmatprep.subr.mxu0 0.0
    %3112 = vmatpush2.msra.mxu0 0.0
    %3113 = vmatprep.subr.mxu0 0.0
    %3114 = vmatpush2.msra.mxu0 0.0
    %3115 = vmatprep.subr.mxu0 0.0
    %3116 = vmatpush2.msra.mxu0 0.0
    %3117 = vmatprep.subr.mxu0 0.0
    %3118 = vmatpush2.msra.mxu0 0.0
    %3119 = vmatprep.mubr.f32.mxu0 0.0
    %3120 = vmatmul.mubr.f32.gmra.mxu0 %v3053
    %v3121 = vpop.f32.mrf.mxu0
    %v3122 = vadd.f32 %v3050, %v3121
    %v3123 = vpop.f32.mrf.mxu0
    %3124 = vdwg.mxu0
    %v3125 = vadd.f32 %v3122, %v1629
    %v3126 = vxor.u32 %v3125, 2147483648
    %v3127 = vmul.f32 %v3126, 1.442695
    %v3128 = vpow.pop %v3127
    %v3129 = vadd.f32 %v3128, 1.0
    %v3130 = vrcp.pop %v3129
    %v3131 = vmul.f32 1.0, %v3130
    %v3132 = vtanh.pop %v3125
    %v3133 = vmul.f32 %v3131, %v2895
    %3135 = vrot.lane.b32.xlu0 %v3132, 64
    %v3136 = vpop.permute.xlu0 %3135
    %v3138 = vmul.f32 %v3131, %v3136
    %3140 = vrot.lane.b32.xlu0 %v3138, 32
    %v3141 = vpop.permute.xlu0 %3140
    %v3143 = vadd.f32 %v3133, %v3141
    %v3144 = vtanh.pop %v3143
    %3146 = vrot.lane.b32.xlu0 %v3144, 64
    %v3147 = vpop.permute.xlu0 %3146
    %v3149 = vmul.f32 %v3131, %v3147
    %3151 = vrot.lane.b32.xlu0 %v3149, 32
    %v3152 = vpop.permute.xlu0 %3151
    %v3153 = vsel %vm81, %v3152, 0
    %3155 = vmatprep.subr.mxu0 0.0
    %3156 = vmatpush1.msra.mxu0 0.0
    %3157 = vmatprep.subr.mxu0 0.0
    %3158 = vmatpush1.msra.mxu0 0.0
    %3159 = vmatprep.subr.mxu0 0.0
    %3160 = vmatpush1.msra.mxu0 0.0
    %3161 = vmatprep.subr.mxu0 0.0
    %3162 = vmatpush1.msra.mxu0 0.0
    %3163 = vmatprep.subr.mxu0 0.0
    %3164 = vmatpush1.msra.mxu0 0.0
    %3165 = vmatprep.subr.mxu0 0.0
    %3166 = vmatpush1.msra.mxu0 0.0
    %3167 = vmatprep.subr.mxu0 0.0
    %3168 = vmatpush1.msra.mxu0 0.0
    %3169 = vmatprep.subr.mxu0 0.0
    %3170 = vmatpush1.msra.mxu0 0.0
    %3171 = vmatprep.subr.mxu0 0.0
    %3172 = vmatpush1.msra.mxu0 0.0
    %3173 = vmatprep.subr.mxu0 0.0
    %3174 = vmatpush1.msra.mxu0 0.0
    %3175 = vmatprep.subr.mxu0 0.0
    %3176 = vmatpush1.msra.mxu0 0.0
    %3177 = vmatprep.subr.mxu0 0.0
    %3178 = vmatpush1.msra.mxu0 0.0
    %3179 = vmatprep.subr.mxu0 0.0
    %3180 = vmatpush1.msra.mxu0 %v78
    %3181 = vmatprep.subr.mxu0 0.0
    %3182 = vmatpush1.msra.mxu0 %v77
    %3183 = vmatprep.subr.mxu0 0.0
    %3184 = vmatpush1.msra.mxu0 %v76
    %3185 = vmatprep.subr.mxu0 0.0
    %3186 = vmatpush1.msra.mxu0 %v75
    %3187 = vmatprep.subr.mxu0 0.0
    %3188 = vmatpush2.msra.mxu0 0.0
    %3189 = vmatprep.subr.mxu0 0.0
    %3190 = vmatpush2.msra.mxu0 0.0
    %3191 = vmatprep.subr.mxu0 0.0
    %3192 = vmatpush2.msra.mxu0 0.0
    %3193 = vmatprep.subr.mxu0 0.0
    %3194 = vmatpush2.msra.mxu0 0.0
    %3195 = vmatprep.subr.mxu0 0.0
    %3196 = vmatpush2.msra.mxu0 0.0
    %3197 = vmatprep.subr.mxu0 0.0
    %3198 = vmatpush2.msra.mxu0 0.0
    %3199 = vmatprep.subr.mxu0 0.0
    %3200 = vmatpush2.msra.mxu0 0.0
    %3201 = vmatprep.subr.mxu0 0.0
    %3202 = vmatpush2.msra.mxu0 0.0
    %3203 = vmatprep.subr.mxu0 0.0
    %3204 = vmatpush2.msra.mxu0 0.0
    %3205 = vmatprep.subr.mxu0 0.0
    %3206 = vmatpush2.msra.mxu0 0.0
    %3207 = vmatprep.subr.mxu0 0.0
    %3208 = vmatpush2.msra.mxu0 0.0
    %3209 = vmatprep.subr.mxu0 0.0
    %3210 = vmatpush2.msra.mxu0 0.0
    %3211 = vmatprep.subr.mxu0 0.0
    %3212 = vmatpush2.msra.mxu0 0.0
    %3213 = vmatprep.subr.mxu0 0.0
    %3214 = vmatpush2.msra.mxu0 0.0
    %3215 = vmatprep.subr.mxu0 0.0
    %3216 = vmatpush2.msra.mxu0 0.0
    %3217 = vmatprep.subr.mxu0 0.0
    %3218 = vmatpush2.msra.mxu0 0.0
    %3219 = vmatprep.mubr.f32.mxu0 0.0
    %3220 = vmatmul.mubr.f32.gmra.mxu0 %v3153
    %v3221 = vpop.f32.mrf.mxu0
    %v3222 = vadd.f32 %v1660, %v3221
    %v3223 = vpop.f32.mrf.mxu0
    %3224 = vdwg.mxu0
    %3226 = vrot.lane.b32.xlu0 %v3222, 16
    %v3227 = vpop.permute.xlu0 %3226
    %vm3229 = vcmask 255104
    %3230 = vst.msk [vmem:[#allocation7] sm:$0x3] %vm3229, %v3227
    %3231 = vmatprep.subr.mxu0 0.0
    %3232 = vmatpush1.msra.mxu0 0.0
    %3233 = vmatprep.subr.mxu0 0.0
    %3234 = vmatpush1.msra.mxu0 0.0
    %3235 = vmatprep.subr.mxu0 0.0
    %3236 = vmatpush1.msra.mxu0 0.0
    %3237 = vmatprep.subr.mxu0 0.0
    %3238 = vmatpush1.msra.mxu0 0.0
    %3239 = vmatprep.subr.mxu0 0.0
    %3240 = vmatpush1.msra.mxu0 0.0
    %3241 = vmatprep.subr.mxu0 0.0
    %3242 = vmatpush1.msra.mxu0 0.0
    %3243 = vmatprep.subr.mxu0 0.0
    %3244 = vmatpush1.msra.mxu0 0.0
    %3245 = vmatprep.subr.mxu0 0.0
    %3246 = vmatpush1.msra.mxu0 0.0
    %3247 = vmatprep.subr.mxu0 0.0
    %3248 = vmatpush1.msra.mxu0 0.0
    %3249 = vmatprep.subr.mxu0 0.0
    %3250 = vmatpush1.msra.mxu0 0.0
    %3251 = vmatprep.subr.mxu0 0.0
    %3252 = vmatpush1.msra.mxu0 0.0
    %3253 = vmatprep.subr.mxu0 0.0
    %3254 = vmatpush1.msra.mxu0 0.0
    %3255 = vmatprep.subr.mxu0 0.0
    %3256 = vmatpush1.msra.mxu0 %v73
    %3257 = vmatprep.subr.mxu0 0.0
    %3258 = vmatpush1.msra.mxu0 %v72
    %3259 = vmatprep.subr.mxu0 0.0
    %3260 = vmatpush1.msra.mxu0 %v71
    %3261 = vmatprep.subr.mxu0 0.0
    %3262 = vmatpush1.msra.mxu0 %v70
    %3263 = vmatprep.subr.mxu0 0.0
    %3264 = vmatpush2.msra.mxu0 0.0
    %3265 = vmatprep.subr.mxu0 0.0
    %3266 = vmatpush2.msra.mxu0 0.0
    %3267 = vmatprep.subr.mxu0 0.0
    %3268 = vmatpush2.msra.mxu0 0.0
    %3269 = vmatprep.subr.mxu0 0.0
    %3270 = vmatpush2.msra.mxu0 0.0
    %3271 = vmatprep.subr.mxu0 0.0
    %3272 = vmatpush2.msra.mxu0 0.0
    %3273 = vmatprep.subr.mxu0 0.0
    %3274 = vmatpush2.msra.mxu0 0.0
    %3275 = vmatprep.subr.mxu0 0.0
    %3276 = vmatpush2.msra.mxu0 0.0
    %3277 = vmatprep.subr.mxu0 0.0
    %3278 = vmatpush2.msra.mxu0 0.0
    %3279 = vmatprep.subr.mxu0 0.0
    %3280 = vmatpush2.msra.mxu0 0.0
    %3281 = vmatprep.subr.mxu0 0.0
    %3282 = vmatpush2.msra.mxu0 0.0
    %3283 = vmatprep.subr.mxu0 0.0
    %3284 = vmatpush2.msra.mxu0 0.0
    %3285 = vmatprep.subr.mxu0 0.0
    %3286 = vmatpush2.msra.mxu0 0.0
    %3287 = vmatprep.subr.mxu0 0.0
    %3288 = vmatpush2.msra.mxu0 0.0
    %3289 = vmatprep.subr.mxu0 0.0
    %3290 = vmatpush2.msra.mxu0 0.0
    %3291 = vmatprep.subr.mxu0 0.0
    %3292 = vmatpush2.msra.mxu0 0.0
    %3293 = vmatprep.subr.mxu0 0.0
    %3294 = vmatpush2.msra.mxu0 0.0
    %3295 = vmatprep.mubr.f32.mxu0 0.0
    %3296 = vmatmul.mubr.f32.gmra.mxu0 %v3153
    %v3297 = vpop.f32.mrf.mxu0
    %v3298 = vadd.f32 0.0, %v3297
    %v3299 = vpop.f32.mrf.mxu0
    %3300 = vdwg.mxu0
    %v3301 = vsel %vm155, %v3222, 0
    %3303 = vmatprep.subr.mxu0 0.0
    %3304 = vmatpush1.msra.mxu0 0.0
    %3305 = vmatprep.subr.mxu0 0.0
    %3306 = vmatpush1.msra.mxu0 0.0
    %3307 = vmatprep.subr.mxu0 0.0
    %3308 = vmatpush1.msra.mxu0 0.0
    %3309 = vmatprep.subr.mxu0 0.0
    %3310 = vmatpush1.msra.mxu0 0.0
    %3311 = vmatprep.subr.mxu0 0.0
    %3312 = vmatpush1.msra.mxu0 0.0
    %3313 = vmatprep.subr.mxu0 0.0
    %3314 = vmatpush1.msra.mxu0 0.0
    %3315 = vmatprep.subr.mxu0 0.0
    %3316 = vmatpush1.msra.mxu0 0.0
    %3317 = vmatprep.subr.mxu0 0.0
    %3318 = vmatpush1.msra.mxu0 0.0
    %3319 = vmatprep.subr.mxu0 0.0
    %3320 = vmatpush1.msra.mxu0 0.0
    %3321 = vmatprep.subr.mxu0 0.0
    %3322 = vmatpush1.msra.mxu0 0.0
    %3323 = vmatprep.subr.mxu0 0.0
    %3324 = vmatpush1.msra.mxu0 0.0
    %3325 = vmatprep.subr.mxu0 0.0
    %3326 = vmatpush1.msra.mxu0 0.0
    %3327 = vmatprep.subr.mxu0 0.0
    %3328 = vmatpush1.msra.mxu0 0.0
    %3329 = vmatprep.subr.mxu0 0.0
    %3330 = vmatpush1.msra.mxu0 0.0
    %3331 = vmatprep.subr.mxu0 0.0
    %3332 = vmatpush1.msra.mxu0 %v69
    %3333 = vmatprep.subr.mxu0 0.0
    %3334 = vmatpush1.msra.mxu0 %v68
    %3335 = vmatprep.subr.mxu0 0.0
    %3336 = vmatpush2.msra.mxu0 0.0
    %3337 = vmatprep.subr.mxu0 0.0
    %3338 = vmatpush2.msra.mxu0 0.0
    %3339 = vmatprep.subr.mxu0 0.0
    %3340 = vmatpush2.msra.mxu0 0.0
    %3341 = vmatprep.subr.mxu0 0.0
    %3342 = vmatpush2.msra.mxu0 0.0
    %3343 = vmatprep.subr.mxu0 0.0
    %3344 = vmatpush2.msra.mxu0 0.0
    %3345 = vmatprep.subr.mxu0 0.0
    %3346 = vmatpush2.msra.mxu0 0.0
    %3347 = vmatprep.subr.mxu0 0.0
    %3348 = vmatpush2.msra.mxu0 0.0
    %3349 = vmatprep.subr.mxu0 0.0
    %3350 = vmatpush2.msra.mxu0 0.0
    %3351 = vmatprep.subr.mxu0 0.0
    %3352 = vmatpush2.msra.mxu0 0.0
    %3353 = vmatprep.subr.mxu0 0.0
    %3354 = vmatpush2.msra.mxu0 0.0
    %3355 = vmatprep.subr.mxu0 0.0
    %3356 = vmatpush2.msra.mxu0 0.0
    %3357 = vmatprep.subr.mxu0 0.0
    %3358 = vmatpush2.msra.mxu0 0.0
    %3359 = vmatprep.subr.mxu0 0.0
    %3360 = vmatpush2.msra.mxu0 0.0
    %3361 = vmatprep.subr.mxu0 0.0
    %3362 = vmatpush2.msra.mxu0 0.0
    %3363 = vmatprep.subr.mxu0 0.0
    %3364 = vmatpush2.msra.mxu0 0.0
    %3365 = vmatprep.subr.mxu0 0.0
    %3366 = vmatpush2.msra.mxu0 0.0
    %3367 = vmatprep.mubr.f32.mxu0 0.0
    %3368 = vmatmul.mubr.f32.gmra.mxu0 %v3301
    %v3369 = vpop.f32.mrf.mxu0
    %v3370 = vadd.f32 %v3298, %v3369
    %v3371 = vpop.f32.mrf.mxu0
    %3372 = vdwg.mxu0
    %v3373 = vadd.f32 %v3370, %v1629
    %v3374 = vxor.u32 %v3373, 2147483648
    %v3375 = vmul.f32 %v3374, 1.442695
    %v3376 = vpow.pop %v3375
    %v3377 = vadd.f32 %v3376, 1.0
    %v3378 = vrcp.pop %v3377
    %v3379 = vmul.f32 1.0, %v3378
    %v3380 = vtanh.pop %v3373
    %v3381 = vmul.f32 %v3379, %v3143
    %3383 = vrot.lane.b32.xlu0 %v3380, 64
    %v3384 = vpop.permute.xlu0 %3383
    %v3386 = vmul.f32 %v3379, %v3384
    %3388 = vrot.lane.b32.xlu0 %v3386, 32
    %v3389 = vpop.permute.xlu0 %3388
    %v3391 = vadd.f32 %v3381, %v3389
    %v3392 = vtanh.pop %v3391
    %3394 = vrot.lane.b32.xlu0 %v3392, 64
    %v3395 = vpop.permute.xlu0 %3394
    %v3397 = vmul.f32 %v3379, %v3395
    %3399 = vrot.lane.b32.xlu0 %v3397, 32
    %v3400 = vpop.permute.xlu0 %3399
    %v3401 = vsel %vm81, %v3400, 0
    %3403 = vmatprep.subr.mxu0 0.0
    %3404 = vmatpush1.msra.mxu0 0.0
    %3405 = vmatprep.subr.mxu0 0.0
    %3406 = vmatpush1.msra.mxu0 0.0
    %3407 = vmatprep.subr.mxu0 0.0
    %3408 = vmatpush1.msra.mxu0 0.0
    %3409 = vmatprep.subr.mxu0 0.0
    %3410 = vmatpush1.msra.mxu0 0.0
    %3411 = vmatprep.subr.mxu0 0.0
    %3412 = vmatpush1.msra.mxu0 0.0
    %3413 = vmatprep.subr.mxu0 0.0
    %3414 = vmatpush1.msra.mxu0 0.0
    %3415 = vmatprep.subr.mxu0 0.0
    %3416 = vmatpush1.msra.mxu0 0.0
    %3417 = vmatprep.subr.mxu0 0.0
    %3418 = vmatpush1.msra.mxu0 0.0
    %3419 = vmatprep.subr.mxu0 0.0
    %3420 = vmatpush1.msra.mxu0 0.0
    %3421 = vmatprep.subr.mxu0 0.0
    %3422 = vmatpush1.msra.mxu0 0.0
    %3423 = vmatprep.subr.mxu0 0.0
    %3424 = vmatpush1.msra.mxu0 0.0
    %3425 = vmatprep.subr.mxu0 0.0
    %3426 = vmatpush1.msra.mxu0 0.0
    %3427 = vmatprep.subr.mxu0 0.0
    %3428 = vmatpush1.msra.mxu0 %v78
    %3429 = vmatprep.subr.mxu0 0.0
    %3430 = vmatpush1.msra.mxu0 %v77
    %3431 = vmatprep.subr.mxu0 0.0
    %3432 = vmatpush1.msra.mxu0 %v76
    %3433 = vmatprep.subr.mxu0 0.0
    %3434 = vmatpush1.msra.mxu0 %v75
    %3435 = vmatprep.subr.mxu0 0.0
    %3436 = vmatpush2.msra.mxu0 0.0
    %3437 = vmatprep.subr.mxu0 0.0
    %3438 = vmatpush2.msra.mxu0 0.0
    %3439 = vmatprep.subr.mxu0 0.0
    %3440 = vmatpush2.msra.mxu0 0.0
    %3441 = vmatprep.subr.mxu0 0.0
    %3442 = vmatpush2.msra.mxu0 0.0
    %3443 = vmatprep.subr.mxu0 0.0
    %3444 = vmatpush2.msra.mxu0 0.0
    %3445 = vmatprep.subr.mxu0 0.0
    %3446 = vmatpush2.msra.mxu0 0.0
    %3447 = vmatprep.subr.mxu0 0.0
    %3448 = vmatpush2.msra.mxu0 0.0
    %3449 = vmatprep.subr.mxu0 0.0
    %3450 = vmatpush2.msra.mxu0 0.0
    %3451 = vmatprep.subr.mxu0 0.0
    %3452 = vmatpush2.msra.mxu0 0.0
    %3453 = vmatprep.subr.mxu0 0.0
    %3454 = vmatpush2.msra.mxu0 0.0
    %3455 = vmatprep.subr.mxu0 0.0
    %3456 = vmatpush2.msra.mxu0 0.0
    %3457 = vmatprep.subr.mxu0 0.0
    %3458 = vmatpush2.msra.mxu0 0.0
    %3459 = vmatprep.subr.mxu0 0.0
    %3460 = vmatpush2.msra.mxu0 0.0
    %3461 = vmatprep.subr.mxu0 0.0
    %3462 = vmatpush2.msra.mxu0 0.0
    %3463 = vmatprep.subr.mxu0 0.0
    %3464 = vmatpush2.msra.mxu0 0.0
    %3465 = vmatprep.subr.mxu0 0.0
    %3466 = vmatpush2.msra.mxu0 0.0
    %3467 = vmatprep.mubr.f32.mxu0 0.0
    %3468 = vmatmul.mubr.f32.gmra.mxu0 %v3401
    %v3469 = vpop.f32.mrf.mxu0
    %v3470 = vadd.f32 %v1660, %v3469
    %v3471 = vpop.f32.mrf.mxu0
    %3472 = vdwg.mxu0
    %vm3473 = vcmask 123904
    %3474 = vst.msk [vmem:[#allocation7] sm:$0x3] %vm3473, %v3470
    // Predicated region
    $region46: #{tpu_custom_call.1} parent=1 // pred_check
      _
    $region47: #{tpu_custom_call.1} parent=1 // pred_check_branch
      %3476 = sbr.rel (0) target = $region49
    $region48: #{tpu_custom_call.1} parent=1 // pred_region
      %s3478 = ssub.s32 32, 32
      %3479 = vsyncadd [#allocation4], %s3478
      %s3481 = sshll.u32 [#allocation7], 4
      %s3482 = int_to_ptr.vmem [resolvable:$true] %s3481
      %3484 = dma.vmem_to_hbm [thread:$0]  %s3482, 32, %s9, [#allocation4]
    $region49: #{tpu_custom_call.1} parent=1 // pred_fallthru
      _
    // Predicated region
    $region50: #{tpu_custom_call.1} parent=1 // pred_check
      _
    $region51: #{tpu_custom_call.1} parent=1 // pred_check_branch
      %3486 = sbr.rel (0) target = $region53
    $region52: #{tpu_custom_call.1} parent=1 // pred_region
      %3487 = dma.done [#allocation4], 32
    $region53: #{tpu_custom_call.1} parent=1 // pred_fallthru
      _
    %3488 = vsyncpa [#allocation3], 1
    %3489 = vsyncpa [#allocation6], 1
    %3490 = vsyncpa [#allocation4], 1

</llo_original>
